<compile_context>
chip_gen: v6e
topology: v6e:2x2x1
jax: 0.10.0
libtpu: 0.0.40
codegen_flags: <defaults>
</compile_context>

<pallas_src>
import jax
import jax.numpy as jnp
from jax import lax
from jax.experimental import pallas as pl
from jax.experimental.pallas import tpu as pltpu

B = 2
CIN, COUT, K = 1, 20, 3
H = W = 28
HC = WC = H - K + 1          # 26 conv output size
HP = WP = HC // 2            # 13 after MaxPool2d(2, 2)
NPOS = HP * WP               # 169 pooled positions
NPOSP = 256                  # 169 padded to 2*128 lanes per pool sub-position
LANES = B * 4 * NPOSP        # 2048 conv lanes (batch x 4 sub-positions x 256)
FLAT = COUT * NPOS           # 3380 (= Linear in_features)
FLATP = 3456                 # 3380 padded to a multiple of 128 (27 * 128)
HIDDEN = 128
OUT = 10
OUT_PAD = 128                # final Linear padded to a lane-dense width


# ---------------------------------------------------------------------------
# Single fused kernel (one grid step for the whole batch):
#   conv (one im2col matmul) + bias + ReLU + max-pool + flatten
#   + Linear(3380,128) + ReLU + Linear(128,OUT_PAD).
# ---------------------------------------------------------------------------
def fused_cnn_kernel(patch_ref, wc_ref, bc_ref, w1_ref, b1_ref, w2_ref, b2_ref,
                     out_ref, flat_ref):
    # patch_ref: (9, 2048) f32, lane = b*1024 + d*256 + p  (d = pool sub-position)
    # wc_ref:    (20, 9) f32     bc_ref: (20, 1) f32
    # w1_ref:    (3456, 128) bf16 (rows 3380..3455 zero)   b1_ref: (1, 128) f32
    # w2_ref:    (128, 128) f32 (cols 10..127 zero)        b2_ref: (1, 128) f32
    # out_ref:   (B, 128) f32    flat_ref: (B, 3456) f32 VMEM scratch

    # One conv matmul for the whole batch and all four pool sub-positions.
    conv = jnp.dot(wc_ref[...], patch_ref[...],
                   preferred_element_type=jnp.float32) + bc_ref[...]    # (20, 2048)
    conv = jnp.maximum(conv, 0.0)                                       # ReLU pre-pool

    # Zero the 76-lane pad tail so padded w1 rows never multiply stale VMEM (NaN*0=NaN).
    flat_ref[:, pl.ds(FLAT, FLATP - FLAT)] = jnp.zeros((B, FLATP - FLAT), jnp.float32)

    # 2x2/2 max-pool = max over the four lane-aligned 256-wide sub-position slabs,
    # then PyTorch (C,H,W)-order flatten via per-channel lane stores.
    for b in range(B):                      # static unroll (B = 2)
        base = b * 4 * NPOSP
        p0 = conv[:, base + 0 * NPOSP: base + 1 * NPOSP]
        p1 = conv[:, base + 1 * NPOSP: base + 2 * NPOSP]
        p2 = conv[:, base + 2 * NPOSP: base + 3 * NPOSP]
        p3 = conv[:, base + 3 * NPOSP: base + 4 * NPOSP]
        pooled = jnp.maximum(jnp.maximum(p0, p1), jnp.maximum(p2, p3))  # (20, 256)
        for c in range(COUT):               # 20 lane stores, static unroll
            flat_ref[pl.ds(b, 1), pl.ds(c * NPOS, NPOS)] = pooled[c:c + 1, :NPOS]

    # TODO(synk): nn.Dropout(p=0.5) is identity here (eval-mode semantics).

    # Fused MLP: Linear(3380,128) -> ReLU -> Linear(128,OUT_PAD).
    # bf16 activations x bf16 w1 feed the MXU natively; accumulation stays f32.
    flat_bf16 = flat_ref[...].astype(jnp.bfloat16)                      # (B, 3456)
    h = jnp.dot(flat_bf16, w1_ref[...],
                preferred_element_type=jnp.float32) + b1_ref[...]       # (B, 128)
    h = jnp.maximum(h, 0.0)
    out_ref[...] = (jnp.dot(h, w2_ref[...], preferred_element_type=jnp.float32)
                    + b2_ref[...])


_FLOPS = (2 * COUT * (K * K) * LANES          # conv matmul
          + 2 * B * FLATP * HIDDEN            # Linear 1
          + 2 * B * HIDDEN * OUT_PAD)         # Linear 2
_BYTES = ((K * K) * LANES * 4                 # patches
          + COUT * (K * K) * 4 + COUT * 4     # conv weight / bias
          + FLATP * HIDDEN * 2                # bf16 w1
          + HIDDEN * 4 + HIDDEN * OUT_PAD * 4 + OUT_PAD * 4
          + B * OUT_PAD * 4)                  # logits


def fused_forward(patches, wmat, bcol, w1p, b1r, w2p, b2p):
    return pl.pallas_call(
        fused_cnn_kernel,
        out_shape=jax.ShapeDtypeStruct((B, OUT_PAD), jnp.float32),
        grid=(1,),
        in_specs=[
            pl.BlockSpec((K * K, LANES), lambda i: (0, 0)),
            pl.BlockSpec((COUT, K * K), lambda i: (0, 0)),
            pl.BlockSpec((COUT, 1), lambda i: (0, 0)),
            pl.BlockSpec((FLATP, HIDDEN), lambda i: (0, 0)),
            pl.BlockSpec((1, HIDDEN), lambda i: (0, 0)),
            pl.BlockSpec((HIDDEN, OUT_PAD), lambda i: (0, 0)),
            pl.BlockSpec((1, OUT_PAD), lambda i: (0, 0)),
        ],
        out_specs=pl.BlockSpec((B, OUT_PAD), lambda i: (0, 0)),
        scratch_shapes=[pltpu.VMEM((B, FLATP), jnp.float32)],
        compiler_params=pltpu.CompilerParams(dimension_semantics=("arbitrary",)),
        cost_estimate=pl.CostEstimate(
            flops=_FLOPS, transcendentals=0, bytes_accessed=_BYTES),
    )(patches, wmat, bcol, w1p, b1r, w2p, b2p)


# ---------------------------------------------------------------------------
# Host-side glue.
# ---------------------------------------------------------------------------
def make_patches(x):
    # x: (B, 1, 28, 28) -> (9, B*1024):
    #   patches[ki*3+kj, b*1024 + (di*2+dj)*256 + (pi*13+pj)]
    #     = x[b, 0, 2*pi+di+ki, 2*pj+dj+kj]   (lanes 169..255 of each 256-slab are zero)
    # TODO(synk): this stride-2 pooled-patch gather stays as (cheap, fusible) XLA glue;
    # an in-kernel version needs lane-strided gathers Mosaic doesn't lower cleanly.
    xs = x[:, 0]
    taps = jnp.stack(
        [xs[:, ki:ki + HC, kj:kj + WC] for ki in range(K) for kj in range(K)],
        axis=1)                                   # (B, 9, 26, 26)
    taps = taps.reshape(B, K * K, HP, 2, WP, 2)
    taps = taps.transpose(0, 3, 5, 1, 2, 4)       # (B, di, dj, tap, pi, pj)
    taps = taps.reshape(B, 4, K * K, NPOS)        # (B, 4, 9, 169)
    taps = jnp.pad(taps, ((0, 0), (0, 0), (0, 0), (0, NPOSP - NPOS)))  # (B, 4, 9, 256)
    taps = taps.transpose(2, 0, 1, 3)             # (9, B, 4, 256)
    return taps.reshape(K * K, LANES)             # (9, 2048)


def prepare_params(wc, bc, w1, b1, w2, b2):
    """One-time weight preprocessing — call OUTSIDE the per-step forward."""
    wmat = wc.reshape(COUT, K * K).astype(jnp.float32)                      # (20, 9)
    bcol = bc.reshape(COUT, 1).astype(jnp.float32)                          # (20, 1)
    w1p = jnp.pad(w1.T, ((0, FLATP - FLAT), (0, 0))).astype(jnp.bfloat16)   # (3456, 128)
    b1r = b1.reshape(1, HIDDEN).astype(jnp.float32)
    w2p = jnp.pad(w2.T, ((0, 0), (0, OUT_PAD - OUT))).astype(jnp.float32)   # (128, 128)
    b2p = jnp.pad(b2, ((0, OUT_PAD - OUT),)).reshape(1, OUT_PAD).astype(jnp.float32)
    return wmat, bcol, w1p, b1r, w2p, b2p


def mycnn_forward(x, wmat, bcol, w1p, b1r, w2p, b2p):
    patches = make_patches(x)
    out = fused_forward(patches, wmat, bcol, w1p, b1r, w2p, b2p)   # (B, 128)
    return out[:, :OUT]                                            # (B, OUT)


# ---------------------------------------------------------------------------
# Pure-JAX reference. Mirrors the kernel's deliberate bf16 rounding of w1 and of
# the flattened activations (MXU accumulates in f32 on both paths), so the check
# isolates kernel correctness from the chosen quantization.
# ---------------------------------------------------------------------------
def reference_forward(x, wc, bc, w1, b1, w2, b2):
    conv = lax.conv_general_dilated(
        x, wc, (1, 1), "VALID", dimension_numbers=("NCHW", "OIHW", "NCHW"),
        precision=lax.Precision.HIGHEST) + bc.reshape(1, COUT, 1, 1)
    conv = jnp.maximum(conv, 0.0)
    pooled = conv.reshape(B, COUT, HP, 2, WP, 2).max(axis=(3, 5))
    flat = pooled.reshape(B, FLAT)
    flat_q = flat.astype(jnp.bfloat16).astype(jnp.float32)
    w1q = w1.astype(jnp.bfloat16).astype(jnp.float32)
    h = jnp.maximum(jnp.dot(flat_q, w1q.T, precision="highest") + b1, 0.0)
    return jnp.dot(h, w2.T, precision="highest") + b2


if __name__ == "__main__":
    key = jax.random.PRNGKey(0)
    ks = jax.random.split(key, 7)

    def uinit(k, shape, fan_in):
        bound = 1.0 / (fan_in ** 0.5)
        return jax.random.uniform(k, shape, jnp.float32, -bound, bound)

    wc = uinit(ks[0], (COUT, CIN, K, K), CIN * K * K)
    bc = uinit(ks[1], (COUT,), CIN * K * K)
    w1 = uinit(ks[2], (HIDDEN, FLAT), FLAT)
    b1 = uinit(ks[3], (HIDDEN,), FLAT)
    w2 = uinit(ks[4], (OUT, HIDDEN), HIDDEN)
    b2 = uinit(ks[5], (OUT,), HIDDEN)
    x = jax.random.normal(ks[6], (B, CIN, H, W), jnp.float32)

    params = prepare_params(wc, bc, w1, b1, w2, b2)
    out = jax.jit(mycnn_forward)(x, *params)
    out = jax.block_until_ready(out)

    ref = reference_forward(x, wc, bc, w1, b1, w2, b2)

    assert out.shape == (B, OUT)
    assert jnp.allclose(out, ref, rtol=2e-3, atol=2e-3)
    print("KERNEL_OK")
</pallas_src>

<mosaic_0001>
module attributes {stable_mosaic.version = 11 : i64} {
  func.func @fused_cnn_kernel(%arg0: i32, %arg1: memref<9x2048xf32, #tpu.memory_space<vmem>>, %arg2: memref<20x9xf32, #tpu.memory_space<vmem>>, %arg3: memref<20x1xf32, #tpu.memory_space<vmem>>, %arg4: memref<3456x128xbf16, #tpu.memory_space<vmem>>, %arg5: memref<1x128xf32, #tpu.memory_space<vmem>>, %arg6: memref<128x128xf32, #tpu.memory_space<vmem>>, %arg7: memref<1x128xf32, #tpu.memory_space<vmem>>, %arg8: memref<2x128xf32, #tpu.memory_space<vmem>>, %arg9: memref<2x3456xf32, #tpu.memory_space<vmem>>) attributes {dimension_semantics = [#tpu.dimension_semantics<arbitrary>], iteration_bounds = array<i64: 1>, scalar_prefetch = 0 : i64, scratch_operands = 1 : i64, tpu.core_type = #tpu.core_type<tc>, window_params = [{pipeline_mode = #tpu.pipeline_mode<synchronous>, transform_indices = @transform_0, window_bounds = array<i64: 9, 2048>}, {pipeline_mode = #tpu.pipeline_mode<synchronous>, transform_indices = @transform_1, window_bounds = array<i64: 20, 9>}, {pipeline_mode = #tpu.pipeline_mode<synchronous>, transform_indices = @transform_2, window_bounds = array<i64: 20, 1>}, {pipeline_mode = #tpu.pipeline_mode<synchronous>, transform_indices = @transform_3, window_bounds = array<i64: 3456, 128>}, {pipeline_mode = #tpu.pipeline_mode<synchronous>, transform_indices = @transform_4, window_bounds = array<i64: 1, 128>}, {pipeline_mode = #tpu.pipeline_mode<synchronous>, transform_indices = @transform_5, window_bounds = array<i64: 128, 128>}, {pipeline_mode = #tpu.pipeline_mode<synchronous>, transform_indices = @transform_6, window_bounds = array<i64: 1, 128>}, {pipeline_mode = #tpu.pipeline_mode<synchronous>, transform_indices = @transform_7, window_bounds = array<i64: 2, 128>}]} {
    %c0 = arith.constant 0 : index
    %c0_0 = arith.constant 0 : index
    %0 = vector.load %arg2[%c0, %c0_0] : memref<20x9xf32, #tpu.memory_space<vmem>>, vector<20x9xf32>
    %c0_1 = arith.constant 0 : index
    %c0_2 = arith.constant 0 : index
    %1 = vector.load %arg1[%c0_1, %c0_2] : memref<9x2048xf32, #tpu.memory_space<vmem>>, vector<9x2048xf32>
    %cst = arith.constant dense<0.000000e+00> : vector<20x2048xf32>
    %2 = tpu.matmul %0, %1, %cst {dimension_numbers = #tpu.dot_dimension_numbers<[1], [0], [0], [1], [0, 0, 1, 1], [], []>} : vector<20x9xf32>, vector<9x2048xf32>, vector<20x2048xf32> -> vector<20x2048xf32>
    %c0_3 = arith.constant 0 : index
    %c0_4 = arith.constant 0 : index
    %3 = vector.load %arg3[%c0_3, %c0_4] : memref<20x1xf32, #tpu.memory_space<vmem>>, vector<20x1xf32>
    %4 = vector.broadcast %3 : vector<20x1xf32> to vector<20x2048xf32>
    %5 = arith.addf %2, %4 : vector<20x2048xf32>
    %cst_5 = arith.constant 0.000000e+00 : f32
    %6 = vector.broadcast %cst_5 : f32 to vector<20x2048xf32>
    %7 = arith.maximumf %5, %6 : vector<20x2048xf32>
    %cst_6 = arith.constant 0.000000e+00 : f32
    %8 = vector.broadcast %cst_6 : f32 to vector<2x76xf32>
    %c0_7 = arith.constant 0 : index
    %c3380 = arith.constant 3380 : index
    %9 = vector.load %arg9[%c0_7, %c3380] : memref<2x3456xf32, #tpu.memory_space<vmem>>, vector<2x76xf32>
    tpu.vector_store %arg9[%c0_7, %c3380], %8 {strides = array<i32>} : memref<2x3456xf32, #tpu.memory_space<vmem>>, vector<2x76xf32>,
    %10 = vector.extract_strided_slice %7 {offsets = [0, 0], sizes = [20, 256], strides = [1, 1]} : vector<20x2048xf32> to vector<20x256xf32>
    %11 = vector.extract_strided_slice %7 {offsets = [0, 256], sizes = [20, 256], strides = [1, 1]} : vector<20x2048xf32> to vector<20x256xf32>
    %12 = vector.extract_strided_slice %7 {offsets = [0, 512], sizes = [20, 256], strides = [1, 1]} : vector<20x2048xf32> to vector<20x256xf32>
    %13 = vector.extract_strided_slice %7 {offsets = [0, 768], sizes = [20, 256], strides = [1, 1]} : vector<20x2048xf32> to vector<20x256xf32>
    %14 = arith.maximumf %10, %11 : vector<20x256xf32>
    %15 = arith.maximumf %12, %13 : vector<20x256xf32>
    %16 = arith.maximumf %14, %15 : vector<20x256xf32>
    %17 = vector.extract_strided_slice %16 {offsets = [0, 0], sizes = [1, 169], strides = [1, 1]} : vector<20x256xf32> to vector<1x169xf32>
    %c0_8 = arith.constant 0 : index
    %c0_9 = arith.constant 0 : index
    %18 = vector.load %arg9[%c0_8, %c0_9] : memref<2x3456xf32, #tpu.memory_space<vmem>>, vector<1x169xf32>
    tpu.vector_store %arg9[%c0_8, %c0_9], %17 {strides = array<i32>} : memref<2x3456xf32, #tpu.memory_space<vmem>>, vector<1x169xf32>,
    %19 = vector.extract_strided_slice %16 {offsets = [1, 0], sizes = [1, 169], strides = [1, 1]} : vector<20x256xf32> to vector<1x169xf32>
    %c0_10 = arith.constant 0 : index
    %c169 = arith.constant 169 : index
    %20 = vector.load %arg9[%c0_10, %c169] : memref<2x3456xf32, #tpu.memory_space<vmem>>, vector<1x169xf32>
    tpu.vector_store %arg9[%c0_10, %c169], %19 {strides = array<i32>} : memref<2x3456xf32, #tpu.memory_space<vmem>>, vector<1x169xf32>,
    %21 = vector.extract_strided_slice %16 {offsets = [2, 0], sizes = [1, 169], strides = [1, 1]} : vector<20x256xf32> to vector<1x169xf32>
    %c0_11 = arith.constant 0 : index
    %c338 = arith.constant 338 : index
    %22 = vector.load %arg9[%c0_11, %c338] : memref<2x3456xf32, #tpu.memory_space<vmem>>, vector<1x169xf32>
    tpu.vector_store %arg9[%c0_11, %c338], %21 {strides = array<i32>} : memref<2x3456xf32, #tpu.memory_space<vmem>>, vector<1x169xf32>,
    %23 = vector.extract_strided_slice %16 {offsets = [3, 0], sizes = [1, 169], strides = [1, 1]} : vector<20x256xf32> to vector<1x169xf32>
    %c0_12 = arith.constant 0 : index
    %c507 = arith.constant 507 : index
    %24 = vector.load %arg9[%c0_12, %c507] : memref<2x3456xf32, #tpu.memory_space<vmem>>, vector<1x169xf32>
    tpu.vector_store %arg9[%c0_12, %c507], %23 {strides = array<i32>} : memref<2x3456xf32, #tpu.memory_space<vmem>>, vector<1x169xf32>,
    %25 = vector.extract_strided_slice %16 {offsets = [4, 0], sizes = [1, 169], strides = [1, 1]} : vector<20x256xf32> to vector<1x169xf32>
    %c0_13 = arith.constant 0 : index
    %c676 = arith.constant 676 : index
    %26 = vector.load %arg9[%c0_13, %c676] : memref<2x3456xf32, #tpu.memory_space<vmem>>, vector<1x169xf32>
    tpu.vector_store %arg9[%c0_13, %c676], %25 {strides = array<i32>} : memref<2x3456xf32, #tpu.memory_space<vmem>>, vector<1x169xf32>,
    %27 = vector.extract_strided_slice %16 {offsets = [5, 0], sizes = [1, 169], strides = [1, 1]} : vector<20x256xf32> to vector<1x169xf32>
    %c0_14 = arith.constant 0 : index
    %c845 = arith.constant 845 : index
    %28 = vector.load %arg9[%c0_14, %c845] : memref<2x3456xf32, #tpu.memory_space<vmem>>, vector<1x169xf32>
    tpu.vector_store %arg9[%c0_14, %c845], %27 {strides = array<i32>} : memref<2x3456xf32, #tpu.memory_space<vmem>>, vector<1x169xf32>,
    %29 = vector.extract_strided_slice %16 {offsets = [6, 0], sizes = [1, 169], strides = [1, 1]} : vector<20x256xf32> to vector<1x169xf32>
    %c0_15 = arith.constant 0 : index
    %c1014 = arith.constant 1014 : index
    %30 = vector.load %arg9[%c0_15, %c1014] : memref<2x3456xf32, #tpu.memory_space<vmem>>, vector<1x169xf32>
    tpu.vector_store %arg9[%c0_15, %c1014], %29 {strides = array<i32>} : memref<2x3456xf32, #tpu.memory_space<vmem>>, vector<1x169xf32>,
    %31 = vector.extract_strided_slice %16 {offsets = [7, 0], sizes = [1, 169], strides = [1, 1]} : vector<20x256xf32> to vector<1x169xf32>
    %c0_16 = arith.constant 0 : index
    %c1183 = arith.constant 1183 : index
    %32 = vector.load %arg9[%c0_16, %c1183] : memref<2x3456xf32, #tpu.memory_space<vmem>>, vector<1x169xf32>
    tpu.vector_store %arg9[%c0_16, %c1183], %31 {strides = array<i32>} : memref<2x3456xf32, #tpu.memory_space<vmem>>, vector<1x169xf32>,
    %33 = vector.extract_strided_slice %16 {offsets = [8, 0], sizes = [1, 169], strides = [1, 1]} : vector<20x256xf32> to vector<1x169xf32>
    %c0_17 = arith.constant 0 : index
    %c1352 = arith.constant 1352 : index
    %34 = vector.load %arg9[%c0_17, %c1352] : memref<2x3456xf32, #tpu.memory_space<vmem>>, vector<1x169xf32>
    tpu.vector_store %arg9[%c0_17, %c1352], %33 {strides = array<i32>} : memref<2x3456xf32, #tpu.memory_space<vmem>>, vector<1x169xf32>,
    %35 = vector.extract_strided_slice %16 {offsets = [9, 0], sizes = [1, 169], strides = [1, 1]} : vector<20x256xf32> to vector<1x169xf32>
    %c0_18 = arith.constant 0 : index
    %c1521 = arith.constant 1521 : index
    %36 = vector.load %arg9[%c0_18, %c1521] : memref<2x3456xf32, #tpu.memory_space<vmem>>, vector<1x169xf32>
    tpu.vector_store %arg9[%c0_18, %c1521], %35 {strides = array<i32>} : memref<2x3456xf32, #tpu.memory_space<vmem>>, vector<1x169xf32>,
    %37 = vector.extract_strided_slice %16 {offsets = [10, 0], sizes = [1, 169], strides = [1, 1]} : vector<20x256xf32> to vector<1x169xf32>
    %c0_19 = arith.constant 0 : index
    %c1690 = arith.constant 1690 : index
    %38 = vector.load %arg9[%c0_19, %c1690] : memref<2x3456xf32, #tpu.memory_space<vmem>>, vector<1x169xf32>
    tpu.vector_store %arg9[%c0_19, %c1690], %37 {strides = array<i32>} : memref<2x3456xf32, #tpu.memory_space<vmem>>, vector<1x169xf32>,
    %39 = vector.extract_strided_slice %16 {offsets = [11, 0], sizes = [1, 169], strides = [1, 1]} : vector<20x256xf32> to vector<1x169xf32>
    %c0_20 = arith.constant 0 : index
    %c1859 = arith.constant 1859 : index
    %40 = vector.load %arg9[%c0_20, %c1859] : memref<2x3456xf32, #tpu.memory_space<vmem>>, vector<1x169xf32>
    tpu.vector_store %arg9[%c0_20, %c1859], %39 {strides = array<i32>} : memref<2x3456xf32, #tpu.memory_space<vmem>>, vector<1x169xf32>,
    %41 = vector.extract_strided_slice %16 {offsets = [12, 0], sizes = [1, 169], strides = [1, 1]} : vector<20x256xf32> to vector<1x169xf32>
    %c0_21 = arith.constant 0 : index
    %c2028 = arith.constant 2028 : index
    %42 = vector.load %arg9[%c0_21, %c2028] : memref<2x3456xf32, #tpu.memory_space<vmem>>, vector<1x169xf32>
    tpu.vector_store %arg9[%c0_21, %c2028], %41 {strides = array<i32>} : memref<2x3456xf32, #tpu.memory_space<vmem>>, vector<1x169xf32>,
    %43 = vector.extract_strided_slice %16 {offsets = [13, 0], sizes = [1, 169], strides = [1, 1]} : vector<20x256xf32> to vector<1x169xf32>
    %c0_22 = arith.constant 0 : index
    %c2197 = arith.constant 2197 : index
    %44 = vector.load %arg9[%c0_22, %c2197] : memref<2x3456xf32, #tpu.memory_space<vmem>>, vector<1x169xf32>
    tpu.vector_store %arg9[%c0_22, %c2197], %43 {strides = array<i32>} : memref<2x3456xf32, #tpu.memory_space<vmem>>, vector<1x169xf32>,
    %45 = vector.extract_strided_slice %16 {offsets = [14, 0], sizes = [1, 169], strides = [1, 1]} : vector<20x256xf32> to vector<1x169xf32>
    %c0_23 = arith.constant 0 : index
    %c2366 = arith.constant 2366 : index
    %46 = vector.load %arg9[%c0_23, %c2366] : memref<2x3456xf32, #tpu.memory_space<vmem>>, vector<1x169xf32>
    tpu.vector_store %arg9[%c0_23, %c2366], %45 {strides = array<i32>} : memref<2x3456xf32, #tpu.memory_space<vmem>>, vector<1x169xf32>,
    %47 = vector.extract_strided_slice %16 {offsets = [15, 0], sizes = [1, 169], strides = [1, 1]} : vector<20x256xf32> to vector<1x169xf32>
    %c0_24 = arith.constant 0 : index
    %c2535 = arith.constant 2535 : index
    %48 = vector.load %arg9[%c0_24, %c2535] : memref<2x3456xf32, #tpu.memory_space<vmem>>, vector<1x169xf32>
    tpu.vector_store %arg9[%c0_24, %c2535], %47 {strides = array<i32>} : memref<2x3456xf32, #tpu.memory_space<vmem>>, vector<1x169xf32>,
    %49 = vector.extract_strided_slice %16 {offsets = [16, 0], sizes = [1, 169], strides = [1, 1]} : vector<20x256xf32> to vector<1x169xf32>
    %c0_25 = arith.constant 0 : index
    %c2704 = arith.constant 2704 : index
    %50 = vector.load %arg9[%c0_25, %c2704] : memref<2x3456xf32, #tpu.memory_space<vmem>>, vector<1x169xf32>
    tpu.vector_store %arg9[%c0_25, %c2704], %49 {strides = array<i32>} : memref<2x3456xf32, #tpu.memory_space<vmem>>, vector<1x169xf32>,
    %51 = vector.extract_strided_slice %16 {offsets = [17, 0], sizes = [1, 169], strides = [1, 1]} : vector<20x256xf32> to vector<1x169xf32>
    %c0_26 = arith.constant 0 : index
    %c2873 = arith.constant 2873 : index
    %52 = vector.load %arg9[%c0_26, %c2873] : memref<2x3456xf32, #tpu.memory_space<vmem>>, vector<1x169xf32>
    tpu.vector_store %arg9[%c0_26, %c2873], %51 {strides = array<i32>} : memref<2x3456xf32, #tpu.memory_space<vmem>>, vector<1x169xf32>,
    %53 = vector.extract_strided_slice %16 {offsets = [18, 0], sizes = [1, 169], strides = [1, 1]} : vector<20x256xf32> to vector<1x169xf32>
    %c0_27 = arith.constant 0 : index
    %c3042 = arith.constant 3042 : index
    %54 = vector.load %arg9[%c0_27, %c3042] : memref<2x3456xf32, #tpu.memory_space<vmem>>, vector<1x169xf32>
    tpu.vector_store %arg9[%c0_27, %c3042], %53 {strides = array<i32>} : memref<2x3456xf32, #tpu.memory_space<vmem>>, vector<1x169xf32>,
    %55 = vector.extract_strided_slice %16 {offsets = [19, 0], sizes = [1, 169], strides = [1, 1]} : vector<20x256xf32> to vector<1x169xf32>
    %c0_28 = arith.constant 0 : index
    %c3211 = arith.constant 3211 : index
    %56 = vector.load %arg9[%c0_28, %c3211] : memref<2x3456xf32, #tpu.memory_space<vmem>>, vector<1x169xf32>
    tpu.vector_store %arg9[%c0_28, %c3211], %55 {strides = array<i32>} : memref<2x3456xf32, #tpu.memory_space<vmem>>, vector<1x169xf32>,
    %57 = vector.extract_strided_slice %7 {offsets = [0, 1024], sizes = [20, 256], strides = [1, 1]} : vector<20x2048xf32> to vector<20x256xf32>
    %58 = vector.extract_strided_slice %7 {offsets = [0, 1280], sizes = [20, 256], strides = [1, 1]} : vector<20x2048xf32> to vector<20x256xf32>
    %59 = vector.extract_strided_slice %7 {offsets = [0, 1536], sizes = [20, 256], strides = [1, 1]} : vector<20x2048xf32> to vector<20x256xf32>
    %60 = vector.extract_strided_slice %7 {offsets = [0, 1792], sizes = [20, 256], strides = [1, 1]} : vector<20x2048xf32> to vector<20x256xf32>
    %61 = arith.maximumf %57, %58 : vector<20x256xf32>
    %62 = arith.maximumf %59, %60 : vector<20x256xf32>
    %63 = arith.maximumf %61, %62 : vector<20x256xf32>
    %64 = vector.extract_strided_slice %63 {offsets = [0, 0], sizes = [1, 169], strides = [1, 1]} : vector<20x256xf32> to vector<1x169xf32>
    %c1 = arith.constant 1 : index
    %c0_29 = arith.constant 0 : index
    %65 = vector.load %arg9[%c1, %c0_29] : memref<2x3456xf32, #tpu.memory_space<vmem>>, vector<1x169xf32>
    tpu.vector_store %arg9[%c1, %c0_29], %64 {strides = array<i32>} : memref<2x3456xf32, #tpu.memory_space<vmem>>, vector<1x169xf32>,
    %66 = vector.extract_strided_slice %63 {offsets = [1, 0], sizes = [1, 169], strides = [1, 1]} : vector<20x256xf32> to vector<1x169xf32>
    %c1_30 = arith.constant 1 : index
    %c169_31 = arith.constant 169 : index
    %67 = vector.load %arg9[%c1_30, %c169_31] : memref<2x3456xf32, #tpu.memory_space<vmem>>, vector<1x169xf32>
    tpu.vector_store %arg9[%c1_30, %c169_31], %66 {strides = array<i32>} : memref<2x3456xf32, #tpu.memory_space<vmem>>, vector<1x169xf32>,
    %68 = vector.extract_strided_slice %63 {offsets = [2, 0], sizes = [1, 169], strides = [1, 1]} : vector<20x256xf32> to vector<1x169xf32>
    %c1_32 = arith.constant 1 : index
    %c338_33 = arith.constant 338 : index
    %69 = vector.load %arg9[%c1_32, %c338_33] : memref<2x3456xf32, #tpu.memory_space<vmem>>, vector<1x169xf32>
    tpu.vector_store %arg9[%c1_32, %c338_33], %68 {strides = array<i32>} : memref<2x3456xf32, #tpu.memory_space<vmem>>, vector<1x169xf32>,
    %70 = vector.extract_strided_slice %63 {offsets = [3, 0], sizes = [1, 169], strides = [1, 1]} : vector<20x256xf32> to vector<1x169xf32>
    %c1_34 = arith.constant 1 : index
    %c507_35 = arith.constant 507 : index
    %71 = vector.load %arg9[%c1_34, %c507_35] : memref<2x3456xf32, #tpu.memory_space<vmem>>, vector<1x169xf32>
    tpu.vector_store %arg9[%c1_34, %c507_35], %70 {strides = array<i32>} : memref<2x3456xf32, #tpu.memory_space<vmem>>, vector<1x169xf32>,
    %72 = vector.extract_strided_slice %63 {offsets = [4, 0], sizes = [1, 169], strides = [1, 1]} : vector<20x256xf32> to vector<1x169xf32>
    %c1_36 = arith.constant 1 : index
    %c676_37 = arith.constant 676 : index
    %73 = vector.load %arg9[%c1_36, %c676_37] : memref<2x3456xf32, #tpu.memory_space<vmem>>, vector<1x169xf32>
    tpu.vector_store %arg9[%c1_36, %c676_37], %72 {strides = array<i32>} : memref<2x3456xf32, #tpu.memory_space<vmem>>, vector<1x169xf32>,
    %74 = vector.extract_strided_slice %63 {offsets = [5, 0], sizes = [1, 169], strides = [1, 1]} : vector<20x256xf32> to vector<1x169xf32>
    %c1_38 = arith.constant 1 : index
    %c845_39 = arith.constant 845 : index
    %75 = vector.load %arg9[%c1_38, %c845_39] : memref<2x3456xf32, #tpu.memory_space<vmem>>, vector<1x169xf32>
    tpu.vector_store %arg9[%c1_38, %c845_39], %74 {strides = array<i32>} : memref<2x3456xf32, #tpu.memory_space<vmem>>, vector<1x169xf32>,
    %76 = vector.extract_strided_slice %63 {offsets = [6, 0], sizes = [1, 169], strides = [1, 1]} : vector<20x256xf32> to vector<1x169xf32>
    %c1_40 = arith.constant 1 : index
    %c1014_41 = arith.constant 1014 : index
    %77 = vector.load %arg9[%c1_40, %c1014_41] : memref<2x3456xf32, #tpu.memory_space<vmem>>, vector<1x169xf32>
    tpu.vector_store %arg9[%c1_40, %c1014_41], %76 {strides = array<i32>} : memref<2x3456xf32, #tpu.memory_space<vmem>>, vector<1x169xf32>,
    %78 = vector.extract_strided_slice %63 {offsets = [7, 0], sizes = [1, 169], strides = [1, 1]} : vector<20x256xf32> to vector<1x169xf32>
    %c1_42 = arith.constant 1 : index
    %c1183_43 = arith.constant 1183 : index
    %79 = vector.load %arg9[%c1_42, %c1183_43] : memref<2x3456xf32, #tpu.memory_space<vmem>>, vector<1x169xf32>
    tpu.vector_store %arg9[%c1_42, %c1183_43], %78 {strides = array<i32>} : memref<2x3456xf32, #tpu.memory_space<vmem>>, vector<1x169xf32>,
    %80 = vector.extract_strided_slice %63 {offsets = [8, 0], sizes = [1, 169], strides = [1, 1]} : vector<20x256xf32> to vector<1x169xf32>
    %c1_44 = arith.constant 1 : index
    %c1352_45 = arith.constant 1352 : index
    %81 = vector.load %arg9[%c1_44, %c1352_45] : memref<2x3456xf32, #tpu.memory_space<vmem>>, vector<1x169xf32>
    tpu.vector_store %arg9[%c1_44, %c1352_45], %80 {strides = array<i32>} : memref<2x3456xf32, #tpu.memory_space<vmem>>, vector<1x169xf32>,
    %82 = vector.extract_strided_slice %63 {offsets = [9, 0], sizes = [1, 169], strides = [1, 1]} : vector<20x256xf32> to vector<1x169xf32>
    %c1_46 = arith.constant 1 : index
    %c1521_47 = arith.constant 1521 : index
    %83 = vector.load %arg9[%c1_46, %c1521_47] : memref<2x3456xf32, #tpu.memory_space<vmem>>, vector<1x169xf32>
    tpu.vector_store %arg9[%c1_46, %c1521_47], %82 {strides = array<i32>} : memref<2x3456xf32, #tpu.memory_space<vmem>>, vector<1x169xf32>,
    %84 = vector.extract_strided_slice %63 {offsets = [10, 0], sizes = [1, 169], strides = [1, 1]} : vector<20x256xf32> to vector<1x169xf32>
    %c1_48 = arith.constant 1 : index
    %c1690_49 = arith.constant 1690 : index
    %85 = vector.load %arg9[%c1_48, %c1690_49] : memref<2x3456xf32, #tpu.memory_space<vmem>>, vector<1x169xf32>
    tpu.vector_store %arg9[%c1_48, %c1690_49], %84 {strides = array<i32>} : memref<2x3456xf32, #tpu.memory_space<vmem>>, vector<1x169xf32>,
    %86 = vector.extract_strided_slice %63 {offsets = [11, 0], sizes = [1, 169], strides = [1, 1]} : vector<20x256xf32> to vector<1x169xf32>
    %c1_50 = arith.constant 1 : index
    %c1859_51 = arith.constant 1859 : index
    %87 = vector.load %arg9[%c1_50, %c1859_51] : memref<2x3456xf32, #tpu.memory_space<vmem>>, vector<1x169xf32>
    tpu.vector_store %arg9[%c1_50, %c1859_51], %86 {strides = array<i32>} : memref<2x3456xf32, #tpu.memory_space<vmem>>, vector<1x169xf32>,
    %88 = vector.extract_strided_slice %63 {offsets = [12, 0], sizes = [1, 169], strides = [1, 1]} : vector<20x256xf32> to vector<1x169xf32>
    %c1_52 = arith.constant 1 : index
    %c2028_53 = arith.constant 2028 : index
    %89 = vector.load %arg9[%c1_52, %c2028_53] : memref<2x3456xf32, #tpu.memory_space<vmem>>, vector<1x169xf32>
    tpu.vector_store %arg9[%c1_52, %c2028_53], %88 {strides = array<i32>} : memref<2x3456xf32, #tpu.memory_space<vmem>>, vector<1x169xf32>,
    %90 = vector.extract_strided_slice %63 {offsets = [13, 0], sizes = [1, 169], strides = [1, 1]} : vector<20x256xf32> to vector<1x169xf32>
    %c1_54 = arith.constant 1 : index
    %c2197_55 = arith.constant 2197 : index
    %91 = vector.load %arg9[%c1_54, %c2197_55] : memref<2x3456xf32, #tpu.memory_space<vmem>>, vector<1x169xf32>
    tpu.vector_store %arg9[%c1_54, %c2197_55], %90 {strides = array<i32>} : memref<2x3456xf32, #tpu.memory_space<vmem>>, vector<1x169xf32>,
    %92 = vector.extract_strided_slice %63 {offsets = [14, 0], sizes = [1, 169], strides = [1, 1]} : vector<20x256xf32> to vector<1x169xf32>
    %c1_56 = arith.constant 1 : index
    %c2366_57 = arith.constant 2366 : index
    %93 = vector.load %arg9[%c1_56, %c2366_57] : memref<2x3456xf32, #tpu.memory_space<vmem>>, vector<1x169xf32>
    tpu.vector_store %arg9[%c1_56, %c2366_57], %92 {strides = array<i32>} : memref<2x3456xf32, #tpu.memory_space<vmem>>, vector<1x169xf32>,
    %94 = vector.extract_strided_slice %63 {offsets = [15, 0], sizes = [1, 169], strides = [1, 1]} : vector<20x256xf32> to vector<1x169xf32>
    %c1_58 = arith.constant 1 : index
    %c2535_59 = arith.constant 2535 : index
    %95 = vector.load %arg9[%c1_58, %c2535_59] : memref<2x3456xf32, #tpu.memory_space<vmem>>, vector<1x169xf32>
    tpu.vector_store %arg9[%c1_58, %c2535_59], %94 {strides = array<i32>} : memref<2x3456xf32, #tpu.memory_space<vmem>>, vector<1x169xf32>,
    %96 = vector.extract_strided_slice %63 {offsets = [16, 0], sizes = [1, 169], strides = [1, 1]} : vector<20x256xf32> to vector<1x169xf32>
    %c1_60 = arith.constant 1 : index
    %c2704_61 = arith.constant 2704 : index
    %97 = vector.load %arg9[%c1_60, %c2704_61] : memref<2x3456xf32, #tpu.memory_space<vmem>>, vector<1x169xf32>
    tpu.vector_store %arg9[%c1_60, %c2704_61], %96 {strides = array<i32>} : memref<2x3456xf32, #tpu.memory_space<vmem>>, vector<1x169xf32>,
    %98 = vector.extract_strided_slice %63 {offsets = [17, 0], sizes = [1, 169], strides = [1, 1]} : vector<20x256xf32> to vector<1x169xf32>
    %c1_62 = arith.constant 1 : index
    %c2873_63 = arith.constant 2873 : index
    %99 = vector.load %arg9[%c1_62, %c2873_63] : memref<2x3456xf32, #tpu.memory_space<vmem>>, vector<1x169xf32>
    tpu.vector_store %arg9[%c1_62, %c2873_63], %98 {strides = array<i32>} : memref<2x3456xf32, #tpu.memory_space<vmem>>, vector<1x169xf32>,
    %100 = vector.extract_strided_slice %63 {offsets = [18, 0], sizes = [1, 169], strides = [1, 1]} : vector<20x256xf32> to vector<1x169xf32>
    %c1_64 = arith.constant 1 : index
    %c3042_65 = arith.constant 3042 : index
    %101 = vector.load %arg9[%c1_64, %c3042_65] : memref<2x3456xf32, #tpu.memory_space<vmem>>, vector<1x169xf32>
    tpu.vector_store %arg9[%c1_64, %c3042_65], %100 {strides = array<i32>} : memref<2x3456xf32, #tpu.memory_space<vmem>>, vector<1x169xf32>,
    %102 = vector.extract_strided_slice %63 {offsets = [19, 0], sizes = [1, 169], strides = [1, 1]} : vector<20x256xf32> to vector<1x169xf32>
    %c1_66 = arith.constant 1 : index
    %c3211_67 = arith.constant 3211 : index
    %103 = vector.load %arg9[%c1_66, %c3211_67] : memref<2x3456xf32, #tpu.memory_space<vmem>>, vector<1x169xf32>
    tpu.vector_store %arg9[%c1_66, %c3211_67], %102 {strides = array<i32>} : memref<2x3456xf32, #tpu.memory_space<vmem>>, vector<1x169xf32>,
    %c0_68 = arith.constant 0 : index
    %c0_69 = arith.constant 0 : index
    %104 = vector.load %arg9[%c0_68, %c0_69] : memref<2x3456xf32, #tpu.memory_space<vmem>>, vector<2x3456xf32>
    %105 = arith.truncf %104 : vector<2x3456xf32> to vector<2x3456xbf16>
    %c0_70 = arith.constant 0 : index
    %c0_71 = arith.constant 0 : index
    %106 = vector.load %arg4[%c0_70, %c0_71] : memref<3456x128xbf16, #tpu.memory_space<vmem>>, vector<3456x128xbf16>
    %cst_72 = arith.constant dense<0.000000e+00> : vector<2x128xf32>
    %107 = tpu.matmul %105, %106, %cst_72 {dimension_numbers = #tpu.dot_dimension_numbers<[1], [0], [0], [1], [0, 0, 1, 1], [], []>} : vector<2x3456xbf16>, vector<3456x128xbf16>, vector<2x128xf32> -> vector<2x128xf32>
    %c0_73 = arith.constant 0 : index
    %c0_74 = arith.constant 0 : index
    %108 = vector.load %arg5[%c0_73, %c0_74] : memref<1x128xf32, #tpu.memory_space<vmem>>, vector<1x128xf32>
    %109 = vector.broadcast %108 : vector<1x128xf32> to vector<2x128xf32>
    %110 = arith.addf %107, %109 : vector<2x128xf32>
    %cst_75 = arith.constant 0.000000e+00 : f32
    %111 = vector.broadcast %cst_75 : f32 to vector<2x128xf32>
    %112 = arith.maximumf %110, %111 : vector<2x128xf32>
    %c0_76 = arith.constant 0 : index
    %c0_77 = arith.constant 0 : index
    %113 = vector.load %arg6[%c0_76, %c0_77] : memref<128x128xf32, #tpu.memory_space<vmem>>, vector<128x128xf32>
    %cst_78 = arith.constant dense<0.000000e+00> : vector<2x128xf32>
    %114 = tpu.matmul %112, %113, %cst_78 {dimension_numbers = #tpu.dot_dimension_numbers<[1], [0], [0], [1], [0, 0, 1, 1], [], []>} : vector<2x128xf32>, vector<128x128xf32>, vector<2x128xf32> -> vector<2x128xf32>
    %c0_79 = arith.constant 0 : index
    %c0_80 = arith.constant 0 : index
    %115 = vector.load %arg7[%c0_79, %c0_80] : memref<1x128xf32, #tpu.memory_space<vmem>>, vector<1x128xf32>
    %116 = vector.broadcast %115 : vector<1x128xf32> to vector<2x128xf32>
    %117 = arith.addf %114, %116 : vector<2x128xf32>
    %c0_81 = arith.constant 0 : index
    %c0_82 = arith.constant 0 : index
    %118 = vector.load %arg8[%c0_81, %c0_82] : memref<2x128xf32, #tpu.memory_space<vmem>>, vector<2x128xf32>
    tpu.vector_store %arg8[%c0_81, %c0_82], %117 {strides = array<i32>} : memref<2x128xf32, #tpu.memory_space<vmem>>, vector<2x128xf32>,
    return
  }
  func.func @transform_0(%arg0: i32) -> (i32, i32) {
    %c0_i32 = arith.constant 0 : i32
    %c0_i32_0 = arith.constant 0 : i32
    %c0_i32_1 = arith.constant 0 : i32
    return %c0_i32, %c0_i32_0 : i32, i32
  }
  func.func @transform_1(%arg0: i32) -> (i32, i32) {
    %c0_i32 = arith.constant 0 : i32
    %c0_i32_0 = arith.constant 0 : i32
    %c0_i32_1 = arith.constant 0 : i32
    return %c0_i32, %c0_i32_0 : i32, i32
  }
  func.func @transform_2(%arg0: i32) -> (i32, i32) {
    %c0_i32 = arith.constant 0 : i32
    %c0_i32_0 = arith.constant 0 : i32
    %c0_i32_1 = arith.constant 0 : i32
    return %c0_i32, %c0_i32_0 : i32, i32
  }
  func.func @transform_3(%arg0: i32) -> (i32, i32) {
    %c0_i32 = arith.constant 0 : i32
    %c0_i32_0 = arith.constant 0 : i32
    %c0_i32_1 = arith.constant 0 : i32
    return %c0_i32, %c0_i32_0 : i32, i32
  }
  func.func @transform_4(%arg0: i32) -> (i32, i32) {
    %c0_i32 = arith.constant 0 : i32
    %c0_i32_0 = arith.constant 0 : i32
    %c0_i32_1 = arith.constant 0 : i32
    return %c0_i32, %c0_i32_0 : i32, i32
  }
  func.func @transform_5(%arg0: i32) -> (i32, i32) {
    %c0_i32 = arith.constant 0 : i32
    %c0_i32_0 = arith.constant 0 : i32
    %c0_i32_1 = arith.constant 0 : i32
    return %c0_i32, %c0_i32_0 : i32, i32
  }
  func.func @transform_6(%arg0: i32) -> (i32, i32) {
    %c0_i32 = arith.constant 0 : i32
    %c0_i32_0 = arith.constant 0 : i32
    %c0_i32_1 = arith.constant 0 : i32
    return %c0_i32, %c0_i32_0 : i32, i32
  }
  func.func @transform_7(%arg0: i32) -> (i32, i32) {
    %c0_i32 = arith.constant 0 : i32
    %c0_i32_0 = arith.constant 0 : i32
    %c0_i32_1 = arith.constant 0 : i32
    return %c0_i32, %c0_i32_0 : i32, i32
  }
}

</mosaic_0001>

<llo_original>
// kernel: mycnn_forward.1
$region0: #{mycnn_forward.1}
  #allocation0 [shape = 'u32[]', space=smem, size = 0x4, offset = 0x4, fixed_abs, tag = 'smem constant byte address 0x4 - core index']
  #allocation1 [shape = 'u32[144,128]{1,0:T(1,128)}', space=vmem, size = 0x12000, scoped, tag = 'internal scratch']
  #allocation2 [shape = 'f32[2,3456]{1,0:T(2,128)}', space=vmem, size = 0x6c00, scoped, tag = 'scratch operand']
  %s0 = inlined_call_operand.vmem [shape: f32[9,2048], index: 0, kind: input, shape index: {}]
  %s1 = inlined_call_operand.vmem [shape: f32[20,9], index: 1, kind: input, shape index: {}]
  %s2 = inlined_call_operand.vmem [shape: f32[20,1], index: 2, kind: input, shape index: {}]
  %s3 = inlined_call_operand.vmem [shape: bf16[3456,128], index: 3, kind: input, shape index: {}]
  %s4 = inlined_call_operand.vmem [shape: f32[1,128], index: 4, kind: input, shape index: {}]
  %s5 = inlined_call_operand.vmem [shape: f32[128,128], index: 5, kind: input, shape index: {}]
  %s6 = inlined_call_operand.vmem [shape: f32[1,128], index: 6, kind: input, shape index: {}]
  %s7 = inlined_call_operand.hbm [shape: f32[2,128], index: 7, kind: output, shape index: {}]
  %s8 = sld [smem:[#allocation0]]
  $region38: #{mycnn_forward.1} parent=0
    _
  %s10 = ssub.s32 1, %s8
  %s11 = scalar_select 0, %s10, %s8
  $region1: #{mycnn_forward.1} parent=0
    #allocation3 [shape = 'u8[1024]{0}', space=vmem, size = 0x400, scoped, tag = 'output window, operand 0, single buffered']
    #allocation4 [shape = 's32[1]{0}', space=sflag, size = 0x4, scoped, tag = 'scoped memory for mycnn_forward.1']
    %12 = vsyncpa [#allocation4], 0
    // Predicated region
    $region2: #{mycnn_forward.1} parent=1 // pred_check
      _
    $region3: #{mycnn_forward.1} parent=1 // pred_check_branch
      %14 = sbr.rel (0) target = $region5
    $region4: #{mycnn_forward.1} parent=1 // pred_region
      _
    $region5: #{mycnn_forward.1} parent=1 // pred_fallthru
      _
    // Predicated region
    $region6: #{mycnn_forward.1} parent=1 // pred_check
      _
    $region7: #{mycnn_forward.1} parent=1 // pred_check_branch
      %16 = sbr.rel (0) target = $region9
    $region8: #{mycnn_forward.1} parent=1 // pred_region
      _
    $region9: #{mycnn_forward.1} parent=1 // pred_fallthru
      _
    // Predicated region
    $region10: #{mycnn_forward.1} parent=1 // pred_check
      _
    $region11: #{mycnn_forward.1} parent=1 // pred_check_branch
      %18 = sbr.rel (0) target = $region13
    $region12: #{mycnn_forward.1} parent=1 // pred_region
      _
    $region13: #{mycnn_forward.1} parent=1 // pred_fallthru
      _
    // Predicated region
    $region14: #{mycnn_forward.1} parent=1 // pred_check
      _
    $region15: #{mycnn_forward.1} parent=1 // pred_check_branch
      %20 = sbr.rel (0) target = $region17
    $region16: #{mycnn_forward.1} parent=1 // pred_region
      _
    $region17: #{mycnn_forward.1} parent=1 // pred_fallthru
      _
    // Predicated region
    $region18: #{mycnn_forward.1} parent=1 // pred_check
      _
    $region19: #{mycnn_forward.1} parent=1 // pred_check_branch
      %22 = sbr.rel (0) target = $region21
    $region20: #{mycnn_forward.1} parent=1 // pred_region
      _
    $region21: #{mycnn_forward.1} parent=1 // pred_fallthru
      _
    // Predicated region
    $region22: #{mycnn_forward.1} parent=1 // pred_check
      _
    $region23: #{mycnn_forward.1} parent=1 // pred_check_branch
      %24 = sbr.rel (0) target = $region25
    $region24: #{mycnn_forward.1} parent=1 // pred_region
      _
    $region25: #{mycnn_forward.1} parent=1 // pred_fallthru
      _
    // Predicated region
    $region26: #{mycnn_forward.1} parent=1 // pred_check
      _
    $region27: #{mycnn_forward.1} parent=1 // pred_check_branch
      %26 = sbr.rel (0) target = $region29
    $region28: #{mycnn_forward.1} parent=1 // pred_region
      _
    $region29: #{mycnn_forward.1} parent=1 // pred_fallthru
      _
    %v28 = vld [vmem:[%s1] sm:$0xff]
    %v29 = vld [vmem:[%s1 + $0x8] sm:$0xff]
    %v30 = vld [vmem:[%s1 + $0x10] sm:$0xf]
    %v31 = vld [vmem:[%s0] sm:$0xff]
    %v32 = vld [vmem:[%s0 + $0x8] sm:$0xff]
    %v33 = vld [vmem:[%s0 + $0x10] sm:$0xff]
    %v34 = vld [vmem:[%s0 + $0x18] sm:$0xff]
    %v35 = vld [vmem:[%s0 + $0x20] sm:$0xff]
    %v36 = vld [vmem:[%s0 + $0x28] sm:$0xff]
    %v37 = vld [vmem:[%s0 + $0x30] sm:$0xff]
    %v38 = vld [vmem:[%s0 + $0x38] sm:$0xff]
    %v39 = vld [vmem:[%s0 + $0x40] sm:$0xff]
    %v40 = vld [vmem:[%s0 + $0x48] sm:$0xff]
    %v41 = vld [vmem:[%s0 + $0x50] sm:$0xff]
    %v42 = vld [vmem:[%s0 + $0x58] sm:$0xff]
    %v43 = vld [vmem:[%s0 + $0x60] sm:$0xff]
    %v44 = vld [vmem:[%s0 + $0x68] sm:$0xff]
    %v45 = vld [vmem:[%s0 + $0x70] sm:$0xff]
    %v46 = vld [vmem:[%s0 + $0x78] sm:$0xff]
    %v47 = vld [vmem:[%s0 + $0x80] sm:$0x1]
    %v48 = vld [vmem:[%s0 + $0x88] sm:$0x1]
    %v49 = vld [vmem:[%s0 + $0x90] sm:$0x1]
    %v50 = vld [vmem:[%s0 + $0x98] sm:$0x1]
    %v51 = vld [vmem:[%s0 + $0xa0] sm:$0x1]
    %v52 = vld [vmem:[%s0 + $0xa8] sm:$0x1]
    %v53 = vld [vmem:[%s0 + $0xb0] sm:$0x1]
    %v54 = vld [vmem:[%s0 + $0xb8] sm:$0x1]
    %v55 = vld [vmem:[%s0 + $0xc0] sm:$0x1]
    %v56 = vld [vmem:[%s0 + $0xc8] sm:$0x1]
    %v57 = vld [vmem:[%s0 + $0xd0] sm:$0x1]
    %v58 = vld [vmem:[%s0 + $0xd8] sm:$0x1]
    %v59 = vld [vmem:[%s0 + $0xe0] sm:$0x1]
    %v60 = vld [vmem:[%s0 + $0xe8] sm:$0x1]
    %v61 = vld [vmem:[%s0 + $0xf0] sm:$0x1]
    %v62 = vld [vmem:[%s0 + $0xf8] sm:$0x1]
    %v63 = vld [vmem:[%s2] sm:$0xff]
    %v64 = vld [vmem:[%s2 + $0x8] sm:$0xff]
    %v65 = vld [vmem:[%s2 + $0x10] sm:$0xf]
    %67 = vset.pattern.permute.xlu0 0
    %68 = vperm.xlu0 %67, %v63
    %v69 = vpop.permute.xlu0 %68
    %72 = vset.pattern.permute.xlu0 0
    %73 = vperm.xlu0 %72, %v64
    %v74 = vpop.permute.xlu0 %73
    %77 = vset.pattern.permute.xlu0 0
    %78 = vperm.xlu0 %77, %v65
    %v79 = vpop.permute.xlu0 %78
    %vm81 = vcmask 72704
    %v83 = vsel %vm81, %v28, 0
    %v86 = vsel %vm81, %v29, 0
    %v89 = vsel %vm81, %v30, 0
    %vm91 = vcmask 1040384
    %v93 = vsel %vm91, %v47, 0
    %v96 = vsel %vm91, %v48, 0
    %v99 = vsel %vm91, %v49, 0
    %v102 = vsel %vm91, %v50, 0
    %v105 = vsel %vm91, %v51, 0
    %v108 = vsel %vm91, %v52, 0
    %v111 = vsel %vm91, %v53, 0
    %v114 = vsel %vm91, %v54, 0
    %v117 = vsel %vm91, %v55, 0
    %v120 = vsel %vm91, %v56, 0
    %v123 = vsel %vm91, %v57, 0
    %v126 = vsel %vm91, %v58, 0
    %v129 = vsel %vm91, %v59, 0
    %v132 = vsel %vm91, %v60, 0
    %v135 = vsel %vm91, %v61, 0
    %v138 = vsel %vm91, %v62, 0
    %140 = vmatprep.subr.mxu0 0.0
    %141 = vmatpush1.msra.mxu0 0.0
    %142 = vmatprep.subr.mxu0 0.0
    %143 = vmatpush1.msra.mxu0 0.0
    %144 = vmatprep.subr.mxu0 0.0
    %145 = vmatpush1.msra.mxu0 0.0
    %146 = vmatprep.subr.mxu0 0.0
    %147 = vmatpush1.msra.mxu0 0.0
    %148 = vmatprep.subr.mxu0 0.0
    %149 = vmatpush1.msra.mxu0 0.0
    %150 = vmatprep.subr.mxu0 0.0
    %151 = vmatpush1.msra.mxu0 0.0
    %152 = vmatprep.subr.mxu0 0.0
    %153 = vmatpush1.msra.mxu0 0.0
    %154 = vmatprep.subr.mxu0 0.0
    %155 = vmatpush1.msra.mxu0 0.0
    %156 = vmatprep.subr.mxu0 0.0
    %157 = vmatpush1.msra.mxu0 0.0
    %158 = vmatprep.subr.mxu0 0.0
    %159 = vmatpush1.msra.mxu0 0.0
    %160 = vmatprep.subr.mxu0 0.0
    %161 = vmatpush1.msra.mxu0 0.0
    %162 = vmatprep.subr.mxu0 0.0
    %163 = vmatpush1.msra.mxu0 0.0
    %164 = vmatprep.subr.mxu0 0.0
    %165 = vmatpush1.msra.mxu0 0.0
    %166 = vmatprep.subr.mxu0 0.0
    %167 = vmatpush1.msra.mxu0 0.0
    %168 = vmatprep.subr.mxu0 %v96
    %169 = vmatpush1.msra.mxu0 %v93
    %170 = vmatprep.subr.mxu0 %v32
    %171 = vmatpush1.msra.mxu0 %v31
    %172 = vmatprep.subr.mxu0 0.0
    %173 = vmatpush2.msra.mxu0 0.0
    %174 = vmatprep.subr.mxu0 0.0
    %175 = vmatpush2.msra.mxu0 0.0
    %176 = vmatprep.subr.mxu0 0.0
    %177 = vmatpush2.msra.mxu0 0.0
    %178 = vmatprep.subr.mxu0 0.0
    %179 = vmatpush2.msra.mxu0 0.0
    %180 = vmatprep.subr.mxu0 0.0
    %181 = vmatpush2.msra.mxu0 0.0
    %182 = vmatprep.subr.mxu0 0.0
    %183 = vmatpush2.msra.mxu0 0.0
    %184 = vmatprep.subr.mxu0 0.0
    %185 = vmatpush2.msra.mxu0 0.0
    %186 = vmatprep.subr.mxu0 0.0
    %187 = vmatpush2.msra.mxu0 0.0
    %188 = vmatprep.subr.mxu0 0.0
    %189 = vmatpush2.msra.mxu0 0.0
    %190 = vmatprep.subr.mxu0 0.0
    %191 = vmatpush2.msra.mxu0 0.0
    %192 = vmatprep.subr.mxu0 0.0
    %193 = vmatpush2.msra.mxu0 0.0
    %194 = vmatprep.subr.mxu0 0.0
    %195 = vmatpush2.msra.mxu0 0.0
    %196 = vmatprep.subr.mxu0 0.0
    %197 = vmatpush2.msra.mxu0 0.0
    %198 = vmatprep.subr.mxu0 0.0
    %199 = vmatpush2.msra.mxu0 0.0
    %200 = vmatprep.subr.mxu0 0.0
    %201 = vmatpush2.msra.mxu0 0.0
    %202 = vmatprep.subr.mxu0 0.0
    %203 = vmatpush2.msra.mxu0 0.0
    %204 = vmatprep.mubr.f32.mxu0 0.0
    %205 = vmatmul.mubr.f32.gmra.mxu0 %v83
    %v206 = vpop.f32.mrf.mxu0
    %v207 = vadd.f32 %v69, %v206
    %v208 = vpop.f32.mrf.mxu0
    %v209 = vadd.f32 %v69, %v208
    %210 = vmatprep.mubr.f32.mxu0 0.0
    %211 = vmatmul.mubr.f32.gmra.mxu0 %v86
    %v212 = vpop.f32.mrf.mxu0
    %v213 = vadd.f32 %v74, %v212
    %v214 = vpop.f32.mrf.mxu0
    %v215 = vadd.f32 %v74, %v214
    %216 = vmatprep.mubr.f32.mxu0 0.0
    %217 = vmatmul.mubr.f32.gmra.mxu0 %v89
    %v218 = vpop.f32.mrf.mxu0
    %v219 = vadd.f32 %v79, %v218
    %v220 = vpop.f32.mrf.mxu0
    %v221 = vadd.f32 %v79, %v220
    %222 = vdwg.mxu0
    %223 = vmatprep.subr.mxu0 0.0
    %224 = vmatpush1.msra.mxu0 0.0
    %225 = vmatprep.subr.mxu0 0.0
    %226 = vmatpush1.msra.mxu0 0.0
    %227 = vmatprep.subr.mxu0 0.0
    %228 = vmatpush1.msra.mxu0 0.0
    %229 = vmatprep.subr.mxu0 0.0
    %230 = vmatpush1.msra.mxu0 0.0
    %231 = vmatprep.subr.mxu0 0.0
    %232 = vmatpush1.msra.mxu0 0.0
    %233 = vmatprep.subr.mxu0 0.0
    %234 = vmatpush1.msra.mxu0 0.0
    %235 = vmatprep.subr.mxu0 0.0
    %236 = vmatpush1.msra.mxu0 0.0
    %237 = vmatprep.subr.mxu0 0.0
    %238 = vmatpush1.msra.mxu0 0.0
    %239 = vmatprep.subr.mxu0 0.0
    %240 = vmatpush1.msra.mxu0 0.0
    %241 = vmatprep.subr.mxu0 0.0
    %242 = vmatpush1.msra.mxu0 0.0
    %243 = vmatprep.subr.mxu0 0.0
    %244 = vmatpush1.msra.mxu0 0.0
    %245 = vmatprep.subr.mxu0 0.0
    %246 = vmatpush1.msra.mxu0 0.0
    %247 = vmatprep.subr.mxu0 0.0
    %248 = vmatpush1.msra.mxu0 0.0
    %249 = vmatprep.subr.mxu0 0.0
    %250 = vmatpush1.msra.mxu0 0.0
    %251 = vmatprep.subr.mxu0 %v102
    %252 = vmatpush1.msra.mxu0 %v99
    %253 = vmatprep.subr.mxu0 %v34
    %254 = vmatpush1.msra.mxu0 %v33
    %255 = vmatprep.subr.mxu0 0.0
    %256 = vmatpush2.msra.mxu0 0.0
    %257 = vmatprep.subr.mxu0 0.0
    %258 = vmatpush2.msra.mxu0 0.0
    %259 = vmatprep.subr.mxu0 0.0
    %260 = vmatpush2.msra.mxu0 0.0
    %261 = vmatprep.subr.mxu0 0.0
    %262 = vmatpush2.msra.mxu0 0.0
    %263 = vmatprep.subr.mxu0 0.0
    %264 = vmatpush2.msra.mxu0 0.0
    %265 = vmatprep.subr.mxu0 0.0
    %266 = vmatpush2.msra.mxu0 0.0
    %267 = vmatprep.subr.mxu0 0.0
    %268 = vmatpush2.msra.mxu0 0.0
    %269 = vmatprep.subr.mxu0 0.0
    %270 = vmatpush2.msra.mxu0 0.0
    %271 = vmatprep.subr.mxu0 0.0
    %272 = vmatpush2.msra.mxu0 0.0
    %273 = vmatprep.subr.mxu0 0.0
    %274 = vmatpush2.msra.mxu0 0.0
    %275 = vmatprep.subr.mxu0 0.0
    %276 = vmatpush2.msra.mxu0 0.0
    %277 = vmatprep.subr.mxu0 0.0
    %278 = vmatpush2.msra.mxu0 0.0
    %279 = vmatprep.subr.mxu0 0.0
    %280 = vmatpush2.msra.mxu0 0.0
    %281 = vmatprep.subr.mxu0 0.0
    %282 = vmatpush2.msra.mxu0 0.0
    %283 = vmatprep.subr.mxu0 0.0
    %284 = vmatpush2.msra.mxu0 0.0
    %285 = vmatprep.subr.mxu0 0.0
    %286 = vmatpush2.msra.mxu0 0.0
    %287 = vmatprep.mubr.f32.mxu0 0.0
    %288 = vmatmul.mubr.f32.gmra.mxu0 %v83
    %v289 = vpop.f32.mrf.mxu0
    %v290 = vadd.f32 %v69, %v289
    %v291 = vpop.f32.mrf.mxu0
    %v292 = vadd.f32 %v69, %v291
    %293 = vmatprep.mubr.f32.mxu0 0.0
    %294 = vmatmul.mubr.f32.gmra.mxu0 %v86
    %v295 = vpop.f32.mrf.mxu0
    %v296 = vadd.f32 %v74, %v295
    %v297 = vpop.f32.mrf.mxu0
    %v298 = vadd.f32 %v74, %v297
    %299 = vmatprep.mubr.f32.mxu0 0.0
    %300 = vmatmul.mubr.f32.gmra.mxu0 %v89
    %v301 = vpop.f32.mrf.mxu0
    %v302 = vadd.f32 %v79, %v301
    %v303 = vpop.f32.mrf.mxu0
    %v304 = vadd.f32 %v79, %v303
    %305 = vdwg.mxu0
    %306 = vmatprep.subr.mxu0 0.0
    %307 = vmatpush1.msra.mxu0 0.0
    %308 = vmatprep.subr.mxu0 0.0
    %309 = vmatpush1.msra.mxu0 0.0
    %310 = vmatprep.subr.mxu0 0.0
    %311 = vmatpush1.msra.mxu0 0.0
    %312 = vmatprep.subr.mxu0 0.0
    %313 = vmatpush1.msra.mxu0 0.0
    %314 = vmatprep.subr.mxu0 0.0
    %315 = vmatpush1.msra.mxu0 0.0
    %316 = vmatprep.subr.mxu0 0.0
    %317 = vmatpush1.msra.mxu0 0.0
    %318 = vmatprep.subr.mxu0 0.0
    %319 = vmatpush1.msra.mxu0 0.0
    %320 = vmatprep.subr.mxu0 0.0
    %321 = vmatpush1.msra.mxu0 0.0
    %322 = vmatprep.subr.mxu0 0.0
    %323 = vmatpush1.msra.mxu0 0.0
    %324 = vmatprep.subr.mxu0 0.0
    %325 = vmatpush1.msra.mxu0 0.0
    %326 = vmatprep.subr.mxu0 0.0
    %327 = vmatpush1.msra.mxu0 0.0
    %328 = vmatprep.subr.mxu0 0.0
    %329 = vmatpush1.msra.mxu0 0.0
    %330 = vmatprep.subr.mxu0 0.0
    %331 = vmatpush1.msra.mxu0 0.0
    %332 = vmatprep.subr.mxu0 0.0
    %333 = vmatpush1.msra.mxu0 0.0
    %334 = vmatprep.subr.mxu0 %v108
    %335 = vmatpush1.msra.mxu0 %v105
    %336 = vmatprep.subr.mxu0 %v36
    %337 = vmatpush1.msra.mxu0 %v35
    %338 = vmatprep.subr.mxu0 0.0
    %339 = vmatpush2.msra.mxu0 0.0
    %340 = vmatprep.subr.mxu0 0.0
    %341 = vmatpush2.msra.mxu0 0.0
    %342 = vmatprep.subr.mxu0 0.0
    %343 = vmatpush2.msra.mxu0 0.0
    %344 = vmatprep.subr.mxu0 0.0
    %345 = vmatpush2.msra.mxu0 0.0
    %346 = vmatprep.subr.mxu0 0.0
    %347 = vmatpush2.msra.mxu0 0.0
    %348 = vmatprep.subr.mxu0 0.0
    %349 = vmatpush2.msra.mxu0 0.0
    %350 = vmatprep.subr.mxu0 0.0
    %351 = vmatpush2.msra.mxu0 0.0
    %352 = vmatprep.subr.mxu0 0.0
    %353 = vmatpush2.msra.mxu0 0.0
    %354 = vmatprep.subr.mxu0 0.0
    %355 = vmatpush2.msra.mxu0 0.0
    %356 = vmatprep.subr.mxu0 0.0
    %357 = vmatpush2.msra.mxu0 0.0
    %358 = vmatprep.subr.mxu0 0.0
    %359 = vmatpush2.msra.mxu0 0.0
    %360 = vmatprep.subr.mxu0 0.0
    %361 = vmatpush2.msra.mxu0 0.0
    %362 = vmatprep.subr.mxu0 0.0
    %363 = vmatpush2.msra.mxu0 0.0
    %364 = vmatprep.subr.mxu0 0.0
    %365 = vmatpush2.msra.mxu0 0.0
    %366 = vmatprep.subr.mxu0 0.0
    %367 = vmatpush2.msra.mxu0 0.0
    %368 = vmatprep.subr.mxu0 0.0
    %369 = vmatpush2.msra.mxu0 0.0
    %370 = vmatprep.mubr.f32.mxu0 0.0
    %371 = vmatmul.mubr.f32.gmra.mxu0 %v83
    %v372 = vpop.f32.mrf.mxu0
    %v373 = vadd.f32 %v69, %v372
    %v374 = vpop.f32.mrf.mxu0
    %v375 = vadd.f32 %v69, %v374
    %376 = vmatprep.mubr.f32.mxu0 0.0
    %377 = vmatmul.mubr.f32.gmra.mxu0 %v86
    %v378 = vpop.f32.mrf.mxu0
    %v379 = vadd.f32 %v74, %v378
    %v380 = vpop.f32.mrf.mxu0
    %v381 = vadd.f32 %v74, %v380
    %382 = vmatprep.mubr.f32.mxu0 0.0
    %383 = vmatmul.mubr.f32.gmra.mxu0 %v89
    %v384 = vpop.f32.mrf.mxu0
    %v385 = vadd.f32 %v79, %v384
    %v386 = vpop.f32.mrf.mxu0
    %v387 = vadd.f32 %v79, %v386
    %388 = vdwg.mxu0
    %389 = vmatprep.subr.mxu0 0.0
    %390 = vmatpush1.msra.mxu0 0.0
    %391 = vmatprep.subr.mxu0 0.0
    %392 = vmatpush1.msra.mxu0 0.0
    %393 = vmatprep.subr.mxu0 0.0
    %394 = vmatpush1.msra.mxu0 0.0
    %395 = vmatprep.subr.mxu0 0.0
    %396 = vmatpush1.msra.mxu0 0.0
    %397 = vmatprep.subr.mxu0 0.0
    %398 = vmatpush1.msra.mxu0 0.0
    %399 = vmatprep.subr.mxu0 0.0
    %400 = vmatpush1.msra.mxu0 0.0
    %401 = vmatprep.subr.mxu0 0.0
    %402 = vmatpush1.msra.mxu0 0.0
    %403 = vmatprep.subr.mxu0 0.0
    %404 = vmatpush1.msra.mxu0 0.0
    %405 = vmatprep.subr.mxu0 0.0
    %406 = vmatpush1.msra.mxu0 0.0
    %407 = vmatprep.subr.mxu0 0.0
    %408 = vmatpush1.msra.mxu0 0.0
    %409 = vmatprep.subr.mxu0 0.0
    %410 = vmatpush1.msra.mxu0 0.0
    %411 = vmatprep.subr.mxu0 0.0
    %412 = vmatpush1.msra.mxu0 0.0
    %413 = vmatprep.subr.mxu0 0.0
    %414 = vmatpush1.msra.mxu0 0.0
    %415 = vmatprep.subr.mxu0 0.0
    %416 = vmatpush1.msra.mxu0 0.0
    %417 = vmatprep.subr.mxu0 %v114
    %418 = vmatpush1.msra.mxu0 %v111
    %419 = vmatprep.subr.mxu0 %v38
    %420 = vmatpush1.msra.mxu0 %v37
    %421 = vmatprep.subr.mxu0 0.0
    %422 = vmatpush2.msra.mxu0 0.0
    %423 = vmatprep.subr.mxu0 0.0
    %424 = vmatpush2.msra.mxu0 0.0
    %425 = vmatprep.subr.mxu0 0.0
    %426 = vmatpush2.msra.mxu0 0.0
    %427 = vmatprep.subr.mxu0 0.0
    %428 = vmatpush2.msra.mxu0 0.0
    %429 = vmatprep.subr.mxu0 0.0
    %430 = vmatpush2.msra.mxu0 0.0
    %431 = vmatprep.subr.mxu0 0.0
    %432 = vmatpush2.msra.mxu0 0.0
    %433 = vmatprep.subr.mxu0 0.0
    %434 = vmatpush2.msra.mxu0 0.0
    %435 = vmatprep.subr.mxu0 0.0
    %436 = vmatpush2.msra.mxu0 0.0
    %437 = vmatprep.subr.mxu0 0.0
    %438 = vmatpush2.msra.mxu0 0.0
    %439 = vmatprep.subr.mxu0 0.0
    %440 = vmatpush2.msra.mxu0 0.0
    %441 = vmatprep.subr.mxu0 0.0
    %442 = vmatpush2.msra.mxu0 0.0
    %443 = vmatprep.subr.mxu0 0.0
    %444 = vmatpush2.msra.mxu0 0.0
    %445 = vmatprep.subr.mxu0 0.0
    %446 = vmatpush2.msra.mxu0 0.0
    %447 = vmatprep.subr.mxu0 0.0
    %448 = vmatpush2.msra.mxu0 0.0
    %449 = vmatprep.subr.mxu0 0.0
    %450 = vmatpush2.msra.mxu0 0.0
    %451 = vmatprep.subr.mxu0 0.0
    %452 = vmatpush2.msra.mxu0 0.0
    %453 = vmatprep.mubr.f32.mxu0 0.0
    %454 = vmatmul.mubr.f32.gmra.mxu0 %v83
    %v455 = vpop.f32.mrf.mxu0
    %v456 = vadd.f32 %v69, %v455
    %v457 = vpop.f32.mrf.mxu0
    %v458 = vadd.f32 %v69, %v457
    %459 = vmatprep.mubr.f32.mxu0 0.0
    %460 = vmatmul.mubr.f32.gmra.mxu0 %v86
    %v461 = vpop.f32.mrf.mxu0
    %v462 = vadd.f32 %v74, %v461
    %v463 = vpop.f32.mrf.mxu0
    %v464 = vadd.f32 %v74, %v463
    %465 = vmatprep.mubr.f32.mxu0 0.0
    %466 = vmatmul.mubr.f32.gmra.mxu0 %v89
    %v467 = vpop.f32.mrf.mxu0
    %v468 = vadd.f32 %v79, %v467
    %v469 = vpop.f32.mrf.mxu0
    %v470 = vadd.f32 %v79, %v469
    %471 = vdwg.mxu0
    %472 = vmatprep.subr.mxu0 0.0
    %473 = vmatpush1.msra.mxu0 0.0
    %474 = vmatprep.subr.mxu0 0.0
    %475 = vmatpush1.msra.mxu0 0.0
    %476 = vmatprep.subr.mxu0 0.0
    %477 = vmatpush1.msra.mxu0 0.0
    %478 = vmatprep.subr.mxu0 0.0
    %479 = vmatpush1.msra.mxu0 0.0
    %480 = vmatprep.subr.mxu0 0.0
    %481 = vmatpush1.msra.mxu0 0.0
    %482 = vmatprep.subr.mxu0 0.0
    %483 = vmatpush1.msra.mxu0 0.0
    %484 = vmatprep.subr.mxu0 0.0
    %485 = vmatpush1.msra.mxu0 0.0
    %486 = vmatprep.subr.mxu0 0.0
    %487 = vmatpush1.msra.mxu0 0.0
    %488 = vmatprep.subr.mxu0 0.0
    %489 = vmatpush1.msra.mxu0 0.0
    %490 = vmatprep.subr.mxu0 0.0
    %491 = vmatpush1.msra.mxu0 0.0
    %492 = vmatprep.subr.mxu0 0.0
    %493 = vmatpush1.msra.mxu0 0.0
    %494 = vmatprep.subr.mxu0 0.0
    %495 = vmatpush1.msra.mxu0 0.0
    %496 = vmatprep.subr.mxu0 0.0
    %497 = vmatpush1.msra.mxu0 0.0
    %498 = vmatprep.subr.mxu0 0.0
    %499 = vmatpush1.msra.mxu0 0.0
    %500 = vmatprep.subr.mxu0 %v120
    %501 = vmatpush1.msra.mxu0 %v117
    %502 = vmatprep.subr.mxu0 %v40
    %503 = vmatpush1.msra.mxu0 %v39
    %504 = vmatprep.subr.mxu0 0.0
    %505 = vmatpush2.msra.mxu0 0.0
    %506 = vmatprep.subr.mxu0 0.0
    %507 = vmatpush2.msra.mxu0 0.0
    %508 = vmatprep.subr.mxu0 0.0
    %509 = vmatpush2.msra.mxu0 0.0
    %510 = vmatprep.subr.mxu0 0.0
    %511 = vmatpush2.msra.mxu0 0.0
    %512 = vmatprep.subr.mxu0 0.0
    %513 = vmatpush2.msra.mxu0 0.0
    %514 = vmatprep.subr.mxu0 0.0
    %515 = vmatpush2.msra.mxu0 0.0
    %516 = vmatprep.subr.mxu0 0.0
    %517 = vmatpush2.msra.mxu0 0.0
    %518 = vmatprep.subr.mxu0 0.0
    %519 = vmatpush2.msra.mxu0 0.0
    %520 = vmatprep.subr.mxu0 0.0
    %521 = vmatpush2.msra.mxu0 0.0
    %522 = vmatprep.subr.mxu0 0.0
    %523 = vmatpush2.msra.mxu0 0.0
    %524 = vmatprep.subr.mxu0 0.0
    %525 = vmatpush2.msra.mxu0 0.0
    %526 = vmatprep.subr.mxu0 0.0
    %527 = vmatpush2.msra.mxu0 0.0
    %528 = vmatprep.subr.mxu0 0.0
    %529 = vmatpush2.msra.mxu0 0.0
    %530 = vmatprep.subr.mxu0 0.0
    %531 = vmatpush2.msra.mxu0 0.0
    %532 = vmatprep.subr.mxu0 0.0
    %533 = vmatpush2.msra.mxu0 0.0
    %534 = vmatprep.subr.mxu0 0.0
    %535 = vmatpush2.msra.mxu0 0.0
    %536 = vmatprep.mubr.f32.mxu0 0.0
    %537 = vmatmul.mubr.f32.gmra.mxu0 %v83
    %v538 = vpop.f32.mrf.mxu0
    %v539 = vadd.f32 %v69, %v538
    %v540 = vpop.f32.mrf.mxu0
    %v541 = vadd.f32 %v69, %v540
    %542 = vmatprep.mubr.f32.mxu0 0.0
    %543 = vmatmul.mubr.f32.gmra.mxu0 %v86
    %v544 = vpop.f32.mrf.mxu0
    %v545 = vadd.f32 %v74, %v544
    %v546 = vpop.f32.mrf.mxu0
    %v547 = vadd.f32 %v74, %v546
    %548 = vmatprep.mubr.f32.mxu0 0.0
    %549 = vmatmul.mubr.f32.gmra.mxu0 %v89
    %v550 = vpop.f32.mrf.mxu0
    %v551 = vadd.f32 %v79, %v550
    %v552 = vpop.f32.mrf.mxu0
    %v553 = vadd.f32 %v79, %v552
    %554 = vdwg.mxu0
    %555 = vmatprep.subr.mxu0 0.0
    %556 = vmatpush1.msra.mxu0 0.0
    %557 = vmatprep.subr.mxu0 0.0
    %558 = vmatpush1.msra.mxu0 0.0
    %559 = vmatprep.subr.mxu0 0.0
    %560 = vmatpush1.msra.mxu0 0.0
    %561 = vmatprep.subr.mxu0 0.0
    %562 = vmatpush1.msra.mxu0 0.0
    %563 = vmatprep.subr.mxu0 0.0
    %564 = vmatpush1.msra.mxu0 0.0
    %565 = vmatprep.subr.mxu0 0.0
    %566 = vmatpush1.msra.mxu0 0.0
    %567 = vmatprep.subr.mxu0 0.0
    %568 = vmatpush1.msra.mxu0 0.0
    %569 = vmatprep.subr.mxu0 0.0
    %570 = vmatpush1.msra.mxu0 0.0
    %571 = vmatprep.subr.mxu0 0.0
    %572 = vmatpush1.msra.mxu0 0.0
    %573 = vmatprep.subr.mxu0 0.0
    %574 = vmatpush1.msra.mxu0 0.0
    %575 = vmatprep.subr.mxu0 0.0
    %576 = vmatpush1.msra.mxu0 0.0
    %577 = vmatprep.subr.mxu0 0.0
    %578 = vmatpush1.msra.mxu0 0.0
    %579 = vmatprep.subr.mxu0 0.0
    %580 = vmatpush1.msra.mxu0 0.0
    %581 = vmatprep.subr.mxu0 0.0
    %582 = vmatpush1.msra.mxu0 0.0
    %583 = vmatprep.subr.mxu0 %v126
    %584 = vmatpush1.msra.mxu0 %v123
    %585 = vmatprep.subr.mxu0 %v42
    %586 = vmatpush1.msra.mxu0 %v41
    %587 = vmatprep.subr.mxu0 0.0
    %588 = vmatpush2.msra.mxu0 0.0
    %589 = vmatprep.subr.mxu0 0.0
    %590 = vmatpush2.msra.mxu0 0.0
    %591 = vmatprep.subr.mxu0 0.0
    %592 = vmatpush2.msra.mxu0 0.0
    %593 = vmatprep.subr.mxu0 0.0
    %594 = vmatpush2.msra.mxu0 0.0
    %595 = vmatprep.subr.mxu0 0.0
    %596 = vmatpush2.msra.mxu0 0.0
    %597 = vmatprep.subr.mxu0 0.0
    %598 = vmatpush2.msra.mxu0 0.0
    %599 = vmatprep.subr.mxu0 0.0
    %600 = vmatpush2.msra.mxu0 0.0
    %601 = vmatprep.subr.mxu0 0.0
    %602 = vmatpush2.msra.mxu0 0.0
    %603 = vmatprep.subr.mxu0 0.0
    %604 = vmatpush2.msra.mxu0 0.0
    %605 = vmatprep.subr.mxu0 0.0
    %606 = vmatpush2.msra.mxu0 0.0
    %607 = vmatprep.subr.mxu0 0.0
    %608 = vmatpush2.msra.mxu0 0.0
    %609 = vmatprep.subr.mxu0 0.0
    %610 = vmatpush2.msra.mxu0 0.0
    %611 = vmatprep.subr.mxu0 0.0
    %612 = vmatpush2.msra.mxu0 0.0
    %613 = vmatprep.subr.mxu0 0.0
    %614 = vmatpush2.msra.mxu0 0.0
    %615 = vmatprep.subr.mxu0 0.0
    %616 = vmatpush2.msra.mxu0 0.0
    %617 = vmatprep.subr.mxu0 0.0
    %618 = vmatpush2.msra.mxu0 0.0
    %619 = vmatprep.mubr.f32.mxu0 0.0
    %620 = vmatmul.mubr.f32.gmra.mxu0 %v83
    %v621 = vpop.f32.mrf.mxu0
    %v622 = vadd.f32 %v69, %v621
    %v623 = vpop.f32.mrf.mxu0
    %v624 = vadd.f32 %v69, %v623
    %625 = vmatprep.mubr.f32.mxu0 0.0
    %626 = vmatmul.mubr.f32.gmra.mxu0 %v86
    %v627 = vpop.f32.mrf.mxu0
    %v628 = vadd.f32 %v74, %v627
    %v629 = vpop.f32.mrf.mxu0
    %v630 = vadd.f32 %v74, %v629
    %631 = vmatprep.mubr.f32.mxu0 0.0
    %632 = vmatmul.mubr.f32.gmra.mxu0 %v89
    %v633 = vpop.f32.mrf.mxu0
    %v634 = vadd.f32 %v79, %v633
    %v635 = vpop.f32.mrf.mxu0
    %v636 = vadd.f32 %v79, %v635
    %637 = vdwg.mxu0
    %638 = vmatprep.subr.mxu0 0.0
    %639 = vmatpush1.msra.mxu0 0.0
    %640 = vmatprep.subr.mxu0 0.0
    %641 = vmatpush1.msra.mxu0 0.0
    %642 = vmatprep.subr.mxu0 0.0
    %643 = vmatpush1.msra.mxu0 0.0
    %644 = vmatprep.subr.mxu0 0.0
    %645 = vmatpush1.msra.mxu0 0.0
    %646 = vmatprep.subr.mxu0 0.0
    %647 = vmatpush1.msra.mxu0 0.0
    %648 = vmatprep.subr.mxu0 0.0
    %649 = vmatpush1.msra.mxu0 0.0
    %650 = vmatprep.subr.mxu0 0.0
    %651 = vmatpush1.msra.mxu0 0.0
    %652 = vmatprep.subr.mxu0 0.0
    %653 = vmatpush1.msra.mxu0 0.0
    %654 = vmatprep.subr.mxu0 0.0
    %655 = vmatpush1.msra.mxu0 0.0
    %656 = vmatprep.subr.mxu0 0.0
    %657 = vmatpush1.msra.mxu0 0.0
    %658 = vmatprep.subr.mxu0 0.0
    %659 = vmatpush1.msra.mxu0 0.0
    %660 = vmatprep.subr.mxu0 0.0
    %661 = vmatpush1.msra.mxu0 0.0
    %662 = vmatprep.subr.mxu0 0.0
    %663 = vmatpush1.msra.mxu0 0.0
    %664 = vmatprep.subr.mxu0 0.0
    %665 = vmatpush1.msra.mxu0 0.0
    %666 = vmatprep.subr.mxu0 %v132
    %667 = vmatpush1.msra.mxu0 %v129
    %668 = vmatprep.subr.mxu0 %v44
    %669 = vmatpush1.msra.mxu0 %v43
    %670 = vmatprep.subr.mxu0 0.0
    %671 = vmatpush2.msra.mxu0 0.0
    %672 = vmatprep.subr.mxu0 0.0
    %673 = vmatpush2.msra.mxu0 0.0
    %674 = vmatprep.subr.mxu0 0.0
    %675 = vmatpush2.msra.mxu0 0.0
    %676 = vmatprep.subr.mxu0 0.0
    %677 = vmatpush2.msra.mxu0 0.0
    %678 = vmatprep.subr.mxu0 0.0
    %679 = vmatpush2.msra.mxu0 0.0
    %680 = vmatprep.subr.mxu0 0.0
    %681 = vmatpush2.msra.mxu0 0.0
    %682 = vmatprep.subr.mxu0 0.0
    %683 = vmatpush2.msra.mxu0 0.0
    %684 = vmatprep.subr.mxu0 0.0
    %685 = vmatpush2.msra.mxu0 0.0
    %686 = vmatprep.subr.mxu0 0.0
    %687 = vmatpush2.msra.mxu0 0.0
    %688 = vmatprep.subr.mxu0 0.0
    %689 = vmatpush2.msra.mxu0 0.0
    %690 = vmatprep.subr.mxu0 0.0
    %691 = vmatpush2.msra.mxu0 0.0
    %692 = vmatprep.subr.mxu0 0.0
    %693 = vmatpush2.msra.mxu0 0.0
    %694 = vmatprep.subr.mxu0 0.0
    %695 = vmatpush2.msra.mxu0 0.0
    %696 = vmatprep.subr.mxu0 0.0
    %697 = vmatpush2.msra.mxu0 0.0
    %698 = vmatprep.subr.mxu0 0.0
    %699 = vmatpush2.msra.mxu0 0.0
    %700 = vmatprep.subr.mxu0 0.0
    %701 = vmatpush2.msra.mxu0 0.0
    %702 = vmatprep.mubr.f32.mxu0 0.0
    %703 = vmatmul.mubr.f32.gmra.mxu0 %v83
    %v704 = vpop.f32.mrf.mxu0
    %v705 = vadd.f32 %v69, %v704
    %v706 = vpop.f32.mrf.mxu0
    %v707 = vadd.f32 %v69, %v706
    %708 = vmatprep.mubr.f32.mxu0 0.0
    %709 = vmatmul.mubr.f32.gmra.mxu0 %v86
    %v710 = vpop.f32.mrf.mxu0
    %v711 = vadd.f32 %v74, %v710
    %v712 = vpop.f32.mrf.mxu0
    %v713 = vadd.f32 %v74, %v712
    %714 = vmatprep.mubr.f32.mxu0 0.0
    %715 = vmatmul.mubr.f32.gmra.mxu0 %v89
    %v716 = vpop.f32.mrf.mxu0
    %v717 = vadd.f32 %v79, %v716
    %v718 = vpop.f32.mrf.mxu0
    %v719 = vadd.f32 %v79, %v718
    %720 = vdwg.mxu0
    %721 = vmatprep.subr.mxu0 0.0
    %722 = vmatpush1.msra.mxu0 0.0
    %723 = vmatprep.subr.mxu0 0.0
    %724 = vmatpush1.msra.mxu0 0.0
    %725 = vmatprep.subr.mxu0 0.0
    %726 = vmatpush1.msra.mxu0 0.0
    %727 = vmatprep.subr.mxu0 0.0
    %728 = vmatpush1.msra.mxu0 0.0
    %729 = vmatprep.subr.mxu0 0.0
    %730 = vmatpush1.msra.mxu0 0.0
    %731 = vmatprep.subr.mxu0 0.0
    %732 = vmatpush1.msra.mxu0 0.0
    %733 = vmatprep.subr.mxu0 0.0
    %734 = vmatpush1.msra.mxu0 0.0
    %735 = vmatprep.subr.mxu0 0.0
    %736 = vmatpush1.msra.mxu0 0.0
    %737 = vmatprep.subr.mxu0 0.0
    %738 = vmatpush1.msra.mxu0 0.0
    %739 = vmatprep.subr.mxu0 0.0
    %740 = vmatpush1.msra.mxu0 0.0
    %741 = vmatprep.subr.mxu0 0.0
    %742 = vmatpush1.msra.mxu0 0.0
    %743 = vmatprep.subr.mxu0 0.0
    %744 = vmatpush1.msra.mxu0 0.0
    %745 = vmatprep.subr.mxu0 0.0
    %746 = vmatpush1.msra.mxu0 0.0
    %747 = vmatprep.subr.mxu0 0.0
    %748 = vmatpush1.msra.mxu0 0.0
    %749 = vmatprep.subr.mxu0 %v138
    %750 = vmatpush1.msra.mxu0 %v135
    %751 = vmatprep.subr.mxu0 %v46
    %752 = vmatpush1.msra.mxu0 %v45
    %753 = vmatprep.subr.mxu0 0.0
    %754 = vmatpush2.msra.mxu0 0.0
    %755 = vmatprep.subr.mxu0 0.0
    %756 = vmatpush2.msra.mxu0 0.0
    %757 = vmatprep.subr.mxu0 0.0
    %758 = vmatpush2.msra.mxu0 0.0
    %759 = vmatprep.subr.mxu0 0.0
    %760 = vmatpush2.msra.mxu0 0.0
    %761 = vmatprep.subr.mxu0 0.0
    %762 = vmatpush2.msra.mxu0 0.0
    %763 = vmatprep.subr.mxu0 0.0
    %764 = vmatpush2.msra.mxu0 0.0
    %765 = vmatprep.subr.mxu0 0.0
    %766 = vmatpush2.msra.mxu0 0.0
    %767 = vmatprep.subr.mxu0 0.0
    %768 = vmatpush2.msra.mxu0 0.0
    %769 = vmatprep.subr.mxu0 0.0
    %770 = vmatpush2.msra.mxu0 0.0
    %771 = vmatprep.subr.mxu0 0.0
    %772 = vmatpush2.msra.mxu0 0.0
    %773 = vmatprep.subr.mxu0 0.0
    %774 = vmatpush2.msra.mxu0 0.0
    %775 = vmatprep.subr.mxu0 0.0
    %776 = vmatpush2.msra.mxu0 0.0
    %777 = vmatprep.subr.mxu0 0.0
    %778 = vmatpush2.msra.mxu0 0.0
    %779 = vmatprep.subr.mxu0 0.0
    %780 = vmatpush2.msra.mxu0 0.0
    %781 = vmatprep.subr.mxu0 0.0
    %782 = vmatpush2.msra.mxu0 0.0
    %783 = vmatprep.subr.mxu0 0.0
    %784 = vmatpush2.msra.mxu0 0.0
    %785 = vmatprep.mubr.f32.mxu0 0.0
    %786 = vmatmul.mubr.f32.gmra.mxu0 %v83
    %v787 = vpop.f32.mrf.mxu0
    %v788 = vadd.f32 %v69, %v787
    %v789 = vpop.f32.mrf.mxu0
    %v790 = vadd.f32 %v69, %v789
    %791 = vmatprep.mubr.f32.mxu0 0.0
    %792 = vmatmul.mubr.f32.gmra.mxu0 %v86
    %v793 = vpop.f32.mrf.mxu0
    %v794 = vadd.f32 %v74, %v793
    %v795 = vpop.f32.mrf.mxu0
    %v796 = vadd.f32 %v74, %v795
    %797 = vmatprep.mubr.f32.mxu0 0.0
    %798 = vmatmul.mubr.f32.gmra.mxu0 %v89
    %v799 = vpop.f32.mrf.mxu0
    %v800 = vadd.f32 %v79, %v799
    %v801 = vpop.f32.mrf.mxu0
    %v802 = vadd.f32 %v79, %v801
    %803 = vdwg.mxu0
    %v804 = vmax.f32 %v207, 0.0
    %v805 = vmax.f32 %v209, 0.0
    %v806 = vmax.f32 %v290, 0.0
    %v807 = vmax.f32 %v292, 0.0
    %v808 = vmax.f32 %v373, 0.0
    %v809 = vmax.f32 %v375, 0.0
    %v810 = vmax.f32 %v456, 0.0
    %v811 = vmax.f32 %v458, 0.0
    %v812 = vmax.f32 %v539, 0.0
    %v813 = vmax.f32 %v541, 0.0
    %v814 = vmax.f32 %v622, 0.0
    %v815 = vmax.f32 %v624, 0.0
    %v816 = vmax.f32 %v705, 0.0
    %v817 = vmax.f32 %v707, 0.0
    %v818 = vmax.f32 %v788, 0.0
    %v819 = vmax.f32 %v790, 0.0
    %v820 = vmax.f32 %v213, 0.0
    %v821 = vmax.f32 %v215, 0.0
    %v822 = vmax.f32 %v296, 0.0
    %v823 = vmax.f32 %v298, 0.0
    %v824 = vmax.f32 %v379, 0.0
    %v825 = vmax.f32 %v381, 0.0
    %v826 = vmax.f32 %v462, 0.0
    %v827 = vmax.f32 %v464, 0.0
    %v828 = vmax.f32 %v545, 0.0
    %v829 = vmax.f32 %v547, 0.0
    %v830 = vmax.f32 %v628, 0.0
    %v831 = vmax.f32 %v630, 0.0
    %v832 = vmax.f32 %v711, 0.0
    %v833 = vmax.f32 %v713, 0.0
    %v834 = vmax.f32 %v794, 0.0
    %v835 = vmax.f32 %v796, 0.0
    %v836 = vmax.f32 %v219, 0.0
    %v837 = vmax.f32 %v221, 0.0
    %v838 = vmax.f32 %v302, 0.0
    %v839 = vmax.f32 %v304, 0.0
    %v840 = vmax.f32 %v385, 0.0
    %v841 = vmax.f32 %v387, 0.0
    %v842 = vmax.f32 %v468, 0.0
    %v843 = vmax.f32 %v470, 0.0
    %v844 = vmax.f32 %v551, 0.0
    %v845 = vmax.f32 %v553, 0.0
    %v846 = vmax.f32 %v634, 0.0
    %v847 = vmax.f32 %v636, 0.0
    %v848 = vmax.f32 %v717, 0.0
    %v849 = vmax.f32 %v719, 0.0
    %v850 = vmax.f32 %v800, 0.0
    %v851 = vmax.f32 %v802, 0.0
    %vm852 = vcmask 1041824
    %853 = vst.msk [vmem:[#allocation2 + $0x34] sm:$0x3] %vm852, 0.0
    %v854 = vmax.f32 %v804, %v806
    %v855 = vmax.f32 %v805, %v807
    %v856 = vmax.f32 %v820, %v822
    %v857 = vmax.f32 %v821, %v823
    %v858 = vmax.f32 %v836, %v838
    %v859 = vmax.f32 %v837, %v839
    %v860 = vmax.f32 %v808, %v810
    %v861 = vmax.f32 %v809, %v811
    %v862 = vmax.f32 %v824, %v826
    %v863 = vmax.f32 %v825, %v827
    %v864 = vmax.f32 %v840, %v842
    %v865 = vmax.f32 %v841, %v843
    %v866 = vmax.f32 %v854, %v860
    %v867 = vmax.f32 %v855, %v861
    %v868 = vmax.f32 %v856, %v862
    %v869 = vmax.f32 %v857, %v863
    %v870 = vmax.f32 %v858, %v864
    %v871 = vmax.f32 %v859, %v865
    %v874 = vcombine.low %v866, %v867
    %v876 = vunpack.c.l.s4 1966171168
    %v877 = vunpack.c.0.s8 %v876
    %v878 = vlaneseq
    %v879 = vshrl.u32 %v878, 7
    %v880 = vsub.s32 %v877, %v879
    %v881 = vrot.slane %v874, %v880
    %v883 = vunpack.c.l.s4 1966171168
    %v884 = vunpack.c.0.s8 %v883
    %v885 = vlaneseq
    %v886 = vshrl.u32 %v885, 7
    %v887 = vsub.s32 %v884, %v886
    %v888 = vrot.slane %v881, %v887
    %v890 = vlaneseq
    %vm891 = vcmp.ge.s32.totalorder %v890, 0
    %vm892 = vcmp.lt.s32.totalorder %v890, 169
    %vm893 = vmand %vm891, %vm892
    %894 = vst.msk [vmem:[#allocation2] ss:$2 sm:$0x3] %vm893, %v888
    %v895 = vcombine.high %v881, %v881
    %v897 = vunpack.c.l.s4 1966171168
    %v898 = vunpack.c.0.s8 %v897
    %v899 = vlaneseq
    %v900 = vshrl.u32 %v899, 7
    %v901 = vsub.s32 %v898, %v900
    %v902 = vrot.slane %v895, %v901
    %903 = vrot.lane.b32.xlu0 %v902, 41
    %v904 = vpop.permute.xlu0 %903
    %v905 = vrot.slane %v904, 7
    %vm906 = vcmask 334848
    %v907 = vsel %vm906, %v905, %v904
    %vm909 = vcmp.ge.s32.totalorder %v890, 41
    %vm910 = vcmp.lt.s32.totalorder %v890, 210
    %vm911 = vmand %vm909, %vm910
    %s912 = scalar_lea.vmem [#allocation2], 2
    %913 = vst.msk [vmem:[%s912] ss:$2 sm:$0x3] %vm911, %v907
    %v914 = vcombine.high %v888, %v888
    %915 = vrot.lane.b32.xlu0 %v914, 82
    %v916 = vpop.permute.xlu0 %915
    %v917 = vrot.slane %v916, 7
    %vm918 = vcmask 670720
    %v919 = vsel %vm918, %v917, %v916
    %vm921 = vcmp.ge.s32.totalorder %v890, 82
    %vm922 = vcmp.lt.s32.totalorder %v890, 251
    %vm923 = vmand %vm921, %vm922
    %s924 = scalar_lea.vmem [#allocation2], 4
    %925 = vst.msk [vmem:[%s924] ss:$2 sm:$0x3] %vm923, %v919
    %v926 = vcombine.high %v902, %v902
    %927 = vrot.lane.b32.xlu0 %v926, 123
    %v928 = vpop.permute.xlu0 %927
    %v929 = vrot.slane %v928, 7
    %vm930 = vcmask 1006592
    %v931 = vsel %vm930, %v929, %v928
    %vm933 = vcmp.ge.s32.totalorder %v890, 123
    %vm934 = vcmp.lt.s32.totalorder %v890, 292
    %vm935 = vmand %vm933, %vm934
    %s936 = scalar_lea.vmem [#allocation2], 6
    %937 = vst.msk [vmem:[%s936] ss:$2 sm:$0x7] %vm935, %v931
    %v938 = vcombine.high %v866, %v867
    %v940 = vunpack.c.l.s4 1966171168
    %v941 = vunpack.c.0.s8 %v940
    %v942 = vlaneseq
    %v943 = vshrl.u32 %v942, 7
    %v944 = vsub.s32 %v941, %v943
    %v945 = vrot.slane %v938, %v944
    %v947 = vunpack.c.l.s4 1966171168
    %v948 = vunpack.c.0.s8 %v947
    %v949 = vlaneseq
    %v950 = vshrl.u32 %v949, 7
    %v951 = vsub.s32 %v948, %v950
    %v952 = vrot.slane %v945, %v951
    %953 = vrot.lane.b32.xlu0 %v952, 36
    %v954 = vpop.permute.xlu0 %953
    %v955 = vrot.slane %v954, 7
    %vm956 = vcmask 293888
    %v957 = vsel %vm956, %v955, %v954
    %vm959 = vcmp.ge.s32.totalorder %v890, 36
    %vm960 = vcmp.lt.s32.totalorder %v890, 205
    %vm961 = vmand %vm959, %vm960
    %s962 = scalar_lea.vmem [#allocation2], 10
    %963 = vst.msk [vmem:[%s962] ss:$2 sm:$0x3] %vm961, %v957
    %v964 = vcombine.high %v945, %v945
    %v966 = vunpack.c.l.s4 1966171168
    %v967 = vunpack.c.0.s8 %v966
    %v968 = vlaneseq
    %v969 = vshrl.u32 %v968, 7
    %v970 = vsub.s32 %v967, %v969
    %v971 = vrot.slane %v964, %v970
    %972 = vrot.lane.b32.xlu0 %v971, 77
    %v973 = vpop.permute.xlu0 %972
    %v974 = vrot.slane %v973, 7
    %vm975 = vcmask 629760
    %v976 = vsel %vm975, %v974, %v973
    %vm978 = vcmp.ge.s32.totalorder %v890, 77
    %vm979 = vcmp.lt.s32.totalorder %v890, 246
    %vm980 = vmand %vm978, %vm979
    %s981 = scalar_lea.vmem [#allocation2], 12
    %982 = vst.msk [vmem:[%s981] ss:$2 sm:$0x3] %vm980, %v976
    %v983 = vcombine.high %v952, %v952
    %984 = vrot.lane.b32.xlu0 %v983, 118
    %v985 = vpop.permute.xlu0 %984
    %v986 = vrot.slane %v985, 7
    %vm987 = vcmask 965632
    %v988 = vsel %vm987, %v986, %v985
    %vm990 = vcmp.ge.s32.totalorder %v890, 118
    %vm991 = vcmp.lt.s32.totalorder %v890, 287
    %vm992 = vmand %vm990, %vm991
    %s993 = scalar_lea.vmem [#allocation2], 14
    %994 = vst.msk [vmem:[%s993] ss:$2 sm:$0x7] %vm992, %v988
    %v995 = vcombine.high %v971, %v971
    %996 = vrot.lane.b32.xlu0 %v995, 31
    %v997 = vpop.permute.xlu0 %996
    %v998 = vrot.slane %v997, 7
    %vm999 = vcmask 252928
    %v1000 = vsel %vm999, %v998, %v997
    %vm1002 = vcmp.ge.s32.totalorder %v890, 31
    %vm1003 = vcmp.lt.s32.totalorder %v890, 200
    %vm1004 = vmand %vm1002, %vm1003
    %s1005 = scalar_lea.vmem [#allocation2], 18
    %1006 = vst.msk [vmem:[%s1005] ss:$2 sm:$0x3] %vm1004, %v1000
    %v1009 = vcombine.low %v868, %v869
    %v1011 = vunpack.c.l.s4 1966171168
    %v1012 = vunpack.c.0.s8 %v1011
    %v1013 = vlaneseq
    %v1014 = vshrl.u32 %v1013, 7
    %v1015 = vsub.s32 %v1012, %v1014
    %v1016 = vrot.slane %v1009, %v1015
    %v1018 = vunpack.c.l.s4 1966171168
    %v1019 = vunpack.c.0.s8 %v1018
    %v1020 = vlaneseq
    %v1021 = vshrl.u32 %v1020, 7
    %v1022 = vsub.s32 %v1019, %v1021
    %v1023 = vrot.slane %v1016, %v1022
    %1024 = vrot.lane.b32.xlu0 %v1023, 72
    %v1025 = vpop.permute.xlu0 %1024
    %v1026 = vrot.slane %v1025, 7
    %vm1027 = vcmask 588800
    %v1028 = vsel %vm1027, %v1026, %v1025
    %vm1030 = vcmp.ge.s32.totalorder %v890, 72
    %vm1031 = vcmp.lt.s32.totalorder %v890, 241
    %vm1032 = vmand %vm1030, %vm1031
    %s1033 = scalar_lea.vmem [#allocation2], 20
    %1034 = vst.msk [vmem:[%s1033] ss:$2 sm:$0x3] %vm1032, %v1028
    %v1035 = vcombine.high %v1016, %v1016
    %v1037 = vunpack.c.l.s4 1966171168
    %v1038 = vunpack.c.0.s8 %v1037
    %v1039 = vlaneseq
    %v1040 = vshrl.u32 %v1039, 7
    %v1041 = vsub.s32 %v1038, %v1040
    %v1042 = vrot.slane %v1035, %v1041
    %1043 = vrot.lane.b32.xlu0 %v1042, 113
    %v1044 = vpop.permute.xlu0 %1043
    %v1045 = vrot.slane %v1044, 7
    %vm1046 = vcmask 924672
    %v1047 = vsel %vm1046, %v1045, %v1044
    %vm1049 = vcmp.ge.s32.totalorder %v890, 113
    %vm1050 = vcmp.lt.s32.totalorder %v890, 282
    %vm1051 = vmand %vm1049, %vm1050
    %s1052 = scalar_lea.vmem [#allocation2], 22
    %1053 = vst.msk [vmem:[%s1052] ss:$2 sm:$0x7] %vm1051, %v1047
    %v1054 = vcombine.high %v1023, %v1023
    %1055 = vrot.lane.b32.xlu0 %v1054, 26
    %v1056 = vpop.permute.xlu0 %1055
    %v1057 = vrot.slane %v1056, 7
    %vm1058 = vcmask 211968
    %v1059 = vsel %vm1058, %v1057, %v1056
    %vm1061 = vcmp.ge.s32.totalorder %v890, 26
    %vm1062 = vcmp.lt.s32.totalorder %v890, 195
    %vm1063 = vmand %vm1061, %vm1062
    %s1064 = scalar_lea.vmem [#allocation2], 26
    %1065 = vst.msk [vmem:[%s1064] ss:$2 sm:$0x3] %vm1063, %v1059
    %v1066 = vcombine.high %v1042, %v1042
    %1067 = vrot.lane.b32.xlu0 %v1066, 67
    %v1068 = vpop.permute.xlu0 %1067
    %v1069 = vrot.slane %v1068, 7
    %vm1070 = vcmask 547840
    %v1071 = vsel %vm1070, %v1069, %v1068
    %vm1073 = vcmp.ge.s32.totalorder %v890, 67
    %vm1074 = vcmp.lt.s32.totalorder %v890, 236
    %vm1075 = vmand %vm1073, %vm1074
    %s1076 = scalar_lea.vmem [#allocation2], 28
    %1077 = vst.msk [vmem:[%s1076] ss:$2 sm:$0x3] %vm1075, %v1071
    %v1078 = vcombine.high %v868, %v869
    %v1080 = vunpack.c.l.s4 1966171168
    %v1081 = vunpack.c.0.s8 %v1080
    %v1082 = vlaneseq
    %v1083 = vshrl.u32 %v1082, 7
    %v1084 = vsub.s32 %v1081, %v1083
    %v1085 = vrot.slane %v1078, %v1084
    %v1087 = vunpack.c.l.s4 1966171168
    %v1088 = vunpack.c.0.s8 %v1087
    %v1089 = vlaneseq
    %v1090 = vshrl.u32 %v1089, 7
    %v1091 = vsub.s32 %v1088, %v1090
    %v1092 = vrot.slane %v1085, %v1091
    %1093 = vrot.lane.b32.xlu0 %v1092, 108
    %v1094 = vpop.permute.xlu0 %1093
    %v1095 = vrot.slane %v1094, 7
    %vm1096 = vcmask 883712
    %v1097 = vsel %vm1096, %v1095, %v1094
    %vm1099 = vcmp.ge.s32.totalorder %v890, 108
    %vm1100 = vcmp.lt.s32.totalorder %v890, 277
    %vm1101 = vmand %vm1099, %vm1100
    %s1102 = scalar_lea.vmem [#allocation2], 30
    %1103 = vst.msk [vmem:[%s1102] ss:$2 sm:$0x7] %vm1101, %v1097
    %v1104 = vcombine.high %v1085, %v1085
    %v1106 = vunpack.c.l.s4 1966171168
    %v1107 = vunpack.c.0.s8 %v1106
    %v1108 = vlaneseq
    %v1109 = vshrl.u32 %v1108, 7
    %v1110 = vsub.s32 %v1107, %v1109
    %v1111 = vrot.slane %v1104, %v1110
    %1112 = vrot.lane.b32.xlu0 %v1111, 21
    %v1113 = vpop.permute.xlu0 %1112
    %v1114 = vrot.slane %v1113, 7
    %vm1115 = vcmask 171008
    %v1116 = vsel %vm1115, %v1114, %v1113
    %vm1118 = vcmp.ge.s32.totalorder %v890, 21
    %vm1119 = vcmp.lt.s32.totalorder %v890, 190
    %vm1120 = vmand %vm1118, %vm1119
    %s1121 = scalar_lea.vmem [#allocation2], 34
    %1122 = vst.msk [vmem:[%s1121] ss:$2 sm:$0x3] %vm1120, %v1116
    %v1123 = vcombine.high %v1092, %v1092
    %1124 = vrot.lane.b32.xlu0 %v1123, 62
    %v1125 = vpop.permute.xlu0 %1124
    %v1126 = vrot.slane %v1125, 7
    %vm1127 = vcmask 506880
    %v1128 = vsel %vm1127, %v1126, %v1125
    %vm1130 = vcmp.ge.s32.totalorder %v890, 62
    %vm1131 = vcmp.lt.s32.totalorder %v890, 231
    %vm1132 = vmand %vm1130, %vm1131
    %s1133 = scalar_lea.vmem [#allocation2], 36
    %1134 = vst.msk [vmem:[%s1133] ss:$2 sm:$0x3] %vm1132, %v1128
    %v1135 = vcombine.high %v1111, %v1111
    %1136 = vrot.lane.b32.xlu0 %v1135, 103
    %v1137 = vpop.permute.xlu0 %1136
    %v1138 = vrot.slane %v1137, 7
    %vm1139 = vcmask 842752
    %v1140 = vsel %vm1139, %v1138, %v1137
    %vm1142 = vcmp.ge.s32.totalorder %v890, 103
    %vm1143 = vcmp.lt.s32.totalorder %v890, 272
    %vm1144 = vmand %vm1142, %vm1143
    %s1145 = scalar_lea.vmem [#allocation2], 38
    %1146 = vst.msk [vmem:[%s1145] ss:$2 sm:$0x7] %vm1144, %v1140
    %v1149 = vcombine.low %v870, %v871
    %v1151 = vunpack.c.l.s4 1966171168
    %v1152 = vunpack.c.0.s8 %v1151
    %v1153 = vlaneseq
    %v1154 = vshrl.u32 %v1153, 7
    %v1155 = vsub.s32 %v1152, %v1154
    %v1156 = vrot.slane %v1149, %v1155
    %v1158 = vunpack.c.l.s4 1966171168
    %v1159 = vunpack.c.0.s8 %v1158
    %v1160 = vlaneseq
    %v1161 = vshrl.u32 %v1160, 7
    %v1162 = vsub.s32 %v1159, %v1161
    %v1163 = vrot.slane %v1156, %v1162
    %1164 = vrot.lane.b32.xlu0 %v1163, 16
    %v1165 = vpop.permute.xlu0 %1164
    %v1166 = vrot.slane %v1165, 7
    %vm1167 = vcmask 130048
    %v1168 = vsel %vm1167, %v1166, %v1165
    %vm1170 = vcmp.ge.s32.totalorder %v890, 16
    %vm1171 = vcmp.lt.s32.totalorder %v890, 185
    %vm1172 = vmand %vm1170, %vm1171
    %s1173 = scalar_lea.vmem [#allocation2], 42
    %1174 = vst.msk [vmem:[%s1173] ss:$2 sm:$0x3] %vm1172, %v1168
    %v1175 = vcombine.high %v1156, %v1156
    %v1177 = vunpack.c.l.s4 1966171168
    %v1178 = vunpack.c.0.s8 %v1177
    %v1179 = vlaneseq
    %v1180 = vshrl.u32 %v1179, 7
    %v1181 = vsub.s32 %v1178, %v1180
    %v1182 = vrot.slane %v1175, %v1181
    %1183 = vrot.lane.b32.xlu0 %v1182, 57
    %v1184 = vpop.permute.xlu0 %1183
    %v1185 = vrot.slane %v1184, 7
    %vm1186 = vcmask 465920
    %v1187 = vsel %vm1186, %v1185, %v1184
    %vm1189 = vcmp.ge.s32.totalorder %v890, 57
    %vm1190 = vcmp.lt.s32.totalorder %v890, 226
    %vm1191 = vmand %vm1189, %vm1190
    %s1192 = scalar_lea.vmem [#allocation2], 44
    %1193 = vst.msk [vmem:[%s1192] ss:$2 sm:$0x3] %vm1191, %v1187
    %v1194 = vcombine.high %v1163, %v1163
    %1195 = vrot.lane.b32.xlu0 %v1194, 98
    %v1196 = vpop.permute.xlu0 %1195
    %v1197 = vrot.slane %v1196, 7
    %vm1198 = vcmask 801792
    %v1199 = vsel %vm1198, %v1197, %v1196
    %vm1201 = vcmp.ge.s32.totalorder %v890, 98
    %vm1202 = vcmp.lt.s32.totalorder %v890, 267
    %vm1203 = vmand %vm1201, %vm1202
    %s1204 = scalar_lea.vmem [#allocation2], 46
    %1205 = vst.msk [vmem:[%s1204] ss:$2 sm:$0x7] %vm1203, %v1199
    %v1206 = vcombine.high %v1182, %v1182
    %1207 = vrot.lane.b32.xlu0 %v1206, 11
    %v1208 = vpop.permute.xlu0 %1207
    %v1209 = vrot.slane %v1208, 7
    %vm1210 = vcmask 89088
    %v1211 = vsel %vm1210, %v1209, %v1208
    %vm1213 = vcmp.ge.s32.totalorder %v890, 11
    %vm1214 = vcmp.lt.s32.totalorder %v890, 180
    %vm1215 = vmand %vm1213, %vm1214
    %s1216 = scalar_lea.vmem [#allocation2], 50
    %1217 = vst.msk [vmem:[%s1216] ss:$2 sm:$0x3] %vm1215, %v1211
    %v1218 = vmax.f32 %v812, %v814
    %v1219 = vmax.f32 %v813, %v815
    %v1220 = vmax.f32 %v828, %v830
    %v1221 = vmax.f32 %v829, %v831
    %v1222 = vmax.f32 %v844, %v846
    %v1223 = vmax.f32 %v845, %v847
    %v1224 = vmax.f32 %v816, %v818
    %v1225 = vmax.f32 %v817, %v819
    %v1226 = vmax.f32 %v832, %v834
    %v1227 = vmax.f32 %v833, %v835
    %v1228 = vmax.f32 %v848, %v850
    %v1229 = vmax.f32 %v849, %v851
    %v1230 = vmax.f32 %v1218, %v1224
    %v1231 = vmax.f32 %v1219, %v1225
    %v1232 = vmax.f32 %v1220, %v1226
    %v1233 = vmax.f32 %v1221, %v1227
    %v1234 = vmax.f32 %v1222, %v1228
    %v1235 = vmax.f32 %v1223, %v1229
    %v1238 = vcombine.low %v1230, %v1231
    %v1240 = vunpack.c.l.s4 1966171168
    %v1241 = vunpack.c.0.s8 %v1240
    %v1242 = vlaneseq
    %v1243 = vshrl.u32 %v1242, 7
    %v1244 = vsub.s32 %v1241, %v1243
    %v1245 = vrot.slane %v1238, %v1244
    %v1247 = vunpack.c.l.s4 1966171168
    %v1248 = vunpack.c.0.s8 %v1247
    %v1249 = vlaneseq
    %v1250 = vshrl.u32 %v1249, 7
    %v1251 = vsub.s32 %v1248, %v1250
    %v1252 = vrot.slane %v1245, %v1251
    %s1254 = scalar_lea.vmem [#allocation2], 1
    %1255 = vst.msk [vmem:[%s1254] ss:$2 sm:$0x3] %vm893, %v1252
    %v1256 = vcombine.high %v1245, %v1245
    %v1258 = vunpack.c.l.s4 1966171168
    %v1259 = vunpack.c.0.s8 %v1258
    %v1260 = vlaneseq
    %v1261 = vshrl.u32 %v1260, 7
    %v1262 = vsub.s32 %v1259, %v1261
    %v1263 = vrot.slane %v1256, %v1262
    %1264 = vrot.lane.b32.xlu0 %v1263, 41
    %v1265 = vpop.permute.xlu0 %1264
    %v1266 = vrot.slane %v1265, 7
    %v1267 = vsel %vm906, %v1266, %v1265
    %s1269 = scalar_lea.vmem [#allocation2], 3
    %1270 = vst.msk [vmem:[%s1269] ss:$2 sm:$0x3] %vm911, %v1267
    %v1271 = vcombine.high %v1252, %v1252
    %1272 = vrot.lane.b32.xlu0 %v1271, 82
    %v1273 = vpop.permute.xlu0 %1272
    %v1274 = vrot.slane %v1273, 7
    %v1275 = vsel %vm918, %v1274, %v1273
    %s1277 = scalar_lea.vmem [#allocation2], 5
    %1278 = vst.msk [vmem:[%s1277] ss:$2 sm:$0x3] %vm923, %v1275
    %v1279 = vcombine.high %v1263, %v1263
    %1280 = vrot.lane.b32.xlu0 %v1279, 123
    %v1281 = vpop.permute.xlu0 %1280
    %v1282 = vrot.slane %v1281, 7
    %v1283 = vsel %vm930, %v1282, %v1281
    %s1285 = scalar_lea.vmem [#allocation2], 7
    %1286 = vst.msk [vmem:[%s1285] ss:$2 sm:$0x7] %vm935, %v1283
    %v1287 = vcombine.high %v1230, %v1231
    %v1289 = vunpack.c.l.s4 1966171168
    %v1290 = vunpack.c.0.s8 %v1289
    %v1291 = vlaneseq
    %v1292 = vshrl.u32 %v1291, 7
    %v1293 = vsub.s32 %v1290, %v1292
    %v1294 = vrot.slane %v1287, %v1293
    %v1296 = vunpack.c.l.s4 1966171168
    %v1297 = vunpack.c.0.s8 %v1296
    %v1298 = vlaneseq
    %v1299 = vshrl.u32 %v1298, 7
    %v1300 = vsub.s32 %v1297, %v1299
    %v1301 = vrot.slane %v1294, %v1300
    %1302 = vrot.lane.b32.xlu0 %v1301, 36
    %v1303 = vpop.permute.xlu0 %1302
    %v1304 = vrot.slane %v1303, 7
    %v1305 = vsel %vm956, %v1304, %v1303
    %s1307 = scalar_lea.vmem [#allocation2], 11
    %1308 = vst.msk [vmem:[%s1307] ss:$2 sm:$0x3] %vm961, %v1305
    %v1309 = vcombine.high %v1294, %v1294
    %v1311 = vunpack.c.l.s4 1966171168
    %v1312 = vunpack.c.0.s8 %v1311
    %v1313 = vlaneseq
    %v1314 = vshrl.u32 %v1313, 7
    %v1315 = vsub.s32 %v1312, %v1314
    %v1316 = vrot.slane %v1309, %v1315
    %1317 = vrot.lane.b32.xlu0 %v1316, 77
    %v1318 = vpop.permute.xlu0 %1317
    %v1319 = vrot.slane %v1318, 7
    %v1320 = vsel %vm975, %v1319, %v1318
    %s1322 = scalar_lea.vmem [#allocation2], 13
    %1323 = vst.msk [vmem:[%s1322] ss:$2 sm:$0x3] %vm980, %v1320
    %v1324 = vcombine.high %v1301, %v1301
    %1325 = vrot.lane.b32.xlu0 %v1324, 118
    %v1326 = vpop.permute.xlu0 %1325
    %v1327 = vrot.slane %v1326, 7
    %v1328 = vsel %vm987, %v1327, %v1326
    %s1330 = scalar_lea.vmem [#allocation2], 15
    %1331 = vst.msk [vmem:[%s1330] ss:$2 sm:$0x7] %vm992, %v1328
    %v1332 = vcombine.high %v1316, %v1316
    %1333 = vrot.lane.b32.xlu0 %v1332, 31
    %v1334 = vpop.permute.xlu0 %1333
    %v1335 = vrot.slane %v1334, 7
    %v1336 = vsel %vm999, %v1335, %v1334
    %s1338 = scalar_lea.vmem [#allocation2], 19
    %1339 = vst.msk [vmem:[%s1338] ss:$2 sm:$0x3] %vm1004, %v1336
    %v1342 = vcombine.low %v1232, %v1233
    %v1344 = vunpack.c.l.s4 1966171168
    %v1345 = vunpack.c.0.s8 %v1344
    %v1346 = vlaneseq
    %v1347 = vshrl.u32 %v1346, 7
    %v1348 = vsub.s32 %v1345, %v1347
    %v1349 = vrot.slane %v1342, %v1348
    %v1351 = vunpack.c.l.s4 1966171168
    %v1352 = vunpack.c.0.s8 %v1351
    %v1353 = vlaneseq
    %v1354 = vshrl.u32 %v1353, 7
    %v1355 = vsub.s32 %v1352, %v1354
    %v1356 = vrot.slane %v1349, %v1355
    %1357 = vrot.lane.b32.xlu0 %v1356, 72
    %v1358 = vpop.permute.xlu0 %1357
    %v1359 = vrot.slane %v1358, 7
    %v1360 = vsel %vm1027, %v1359, %v1358
    %s1362 = scalar_lea.vmem [#allocation2], 21
    %1363 = vst.msk [vmem:[%s1362] ss:$2 sm:$0x3] %vm1032, %v1360
    %v1364 = vcombine.high %v1349, %v1349
    %v1366 = vunpack.c.l.s4 1966171168
    %v1367 = vunpack.c.0.s8 %v1366
    %v1368 = vlaneseq
    %v1369 = vshrl.u32 %v1368, 7
    %v1370 = vsub.s32 %v1367, %v1369
    %v1371 = vrot.slane %v1364, %v1370
    %1372 = vrot.lane.b32.xlu0 %v1371, 113
    %v1373 = vpop.permute.xlu0 %1372
    %v1374 = vrot.slane %v1373, 7
    %v1375 = vsel %vm1046, %v1374, %v1373
    %s1377 = scalar_lea.vmem [#allocation2], 23
    %1378 = vst.msk [vmem:[%s1377] ss:$2 sm:$0x7] %vm1051, %v1375
    %v1379 = vcombine.high %v1356, %v1356
    %1380 = vrot.lane.b32.xlu0 %v1379, 26
    %v1381 = vpop.permute.xlu0 %1380
    %v1382 = vrot.slane %v1381, 7
    %v1383 = vsel %vm1058, %v1382, %v1381
    %s1385 = scalar_lea.vmem [#allocation2], 27
    %1386 = vst.msk [vmem:[%s1385] ss:$2 sm:$0x3] %vm1063, %v1383
    %v1387 = vcombine.high %v1371, %v1371
    %1388 = vrot.lane.b32.xlu0 %v1387, 67
    %v1389 = vpop.permute.xlu0 %1388
    %v1390 = vrot.slane %v1389, 7
    %v1391 = vsel %vm1070, %v1390, %v1389
    %s1393 = scalar_lea.vmem [#allocation2], 29
    %1394 = vst.msk [vmem:[%s1393] ss:$2 sm:$0x3] %vm1075, %v1391
    %v1395 = vcombine.high %v1232, %v1233
    %v1397 = vunpack.c.l.s4 1966171168
    %v1398 = vunpack.c.0.s8 %v1397
    %v1399 = vlaneseq
    %v1400 = vshrl.u32 %v1399, 7
    %v1401 = vsub.s32 %v1398, %v1400
    %v1402 = vrot.slane %v1395, %v1401
    %v1404 = vunpack.c.l.s4 1966171168
    %v1405 = vunpack.c.0.s8 %v1404
    %v1406 = vlaneseq
    %v1407 = vshrl.u32 %v1406, 7
    %v1408 = vsub.s32 %v1405, %v1407
    %v1409 = vrot.slane %v1402, %v1408
    %1410 = vrot.lane.b32.xlu0 %v1409, 108
    %v1411 = vpop.permute.xlu0 %1410
    %v1412 = vrot.slane %v1411, 7
    %v1413 = vsel %vm1096, %v1412, %v1411
    %s1415 = scalar_lea.vmem [#allocation2], 31
    %1416 = vst.msk [vmem:[%s1415] ss:$2 sm:$0x7] %vm1101, %v1413
    %v1417 = vcombine.high %v1402, %v1402
    %v1419 = vunpack.c.l.s4 1966171168
    %v1420 = vunpack.c.0.s8 %v1419
    %v1421 = vlaneseq
    %v1422 = vshrl.u32 %v1421, 7
    %v1423 = vsub.s32 %v1420, %v1422
    %v1424 = vrot.slane %v1417, %v1423
    %1425 = vrot.lane.b32.xlu0 %v1424, 21
    %v1426 = vpop.permute.xlu0 %1425
    %v1427 = vrot.slane %v1426, 7
    %v1428 = vsel %vm1115, %v1427, %v1426
    %s1430 = scalar_lea.vmem [#allocation2], 35
    %1431 = vst.msk [vmem:[%s1430] ss:$2 sm:$0x3] %vm1120, %v1428
    %v1432 = vcombine.high %v1409, %v1409
    %1433 = vrot.lane.b32.xlu0 %v1432, 62
    %v1434 = vpop.permute.xlu0 %1433
    %v1435 = vrot.slane %v1434, 7
    %v1436 = vsel %vm1127, %v1435, %v1434
    %s1438 = scalar_lea.vmem [#allocation2], 37
    %1439 = vst.msk [vmem:[%s1438] ss:$2 sm:$0x3] %vm1132, %v1436
    %v1440 = vcombine.high %v1424, %v1424
    %1441 = vrot.lane.b32.xlu0 %v1440, 103
    %v1442 = vpop.permute.xlu0 %1441
    %v1443 = vrot.slane %v1442, 7
    %v1444 = vsel %vm1139, %v1443, %v1442
    %s1446 = scalar_lea.vmem [#allocation2], 39
    %1447 = vst.msk [vmem:[%s1446] ss:$2 sm:$0x7] %vm1144, %v1444
    %v1450 = vcombine.low %v1234, %v1235
    %v1452 = vunpack.c.l.s4 1966171168
    %v1453 = vunpack.c.0.s8 %v1452
    %v1454 = vlaneseq
    %v1455 = vshrl.u32 %v1454, 7
    %v1456 = vsub.s32 %v1453, %v1455
    %v1457 = vrot.slane %v1450, %v1456
    %v1459 = vunpack.c.l.s4 1966171168
    %v1460 = vunpack.c.0.s8 %v1459
    %v1461 = vlaneseq
    %v1462 = vshrl.u32 %v1461, 7
    %v1463 = vsub.s32 %v1460, %v1462
    %v1464 = vrot.slane %v1457, %v1463
    %1465 = vrot.lane.b32.xlu0 %v1464, 16
    %v1466 = vpop.permute.xlu0 %1465
    %v1467 = vrot.slane %v1466, 7
    %v1468 = vsel %vm1167, %v1467, %v1466
    %s1470 = scalar_lea.vmem [#allocation2], 43
    %1471 = vst.msk [vmem:[%s1470] ss:$2 sm:$0x3] %vm1172, %v1468
    %v1472 = vcombine.high %v1457, %v1457
    %v1474 = vunpack.c.l.s4 1966171168
    %v1475 = vunpack.c.0.s8 %v1474
    %v1476 = vlaneseq
    %v1477 = vshrl.u32 %v1476, 7
    %v1478 = vsub.s32 %v1475, %v1477
    %v1479 = vrot.slane %v1472, %v1478
    %1480 = vrot.lane.b32.xlu0 %v1479, 57
    %v1481 = vpop.permute.xlu0 %1480
    %v1482 = vrot.slane %v1481, 7
    %v1483 = vsel %vm1186, %v1482, %v1481
    %s1485 = scalar_lea.vmem [#allocation2], 45
    %1486 = vst.msk [vmem:[%s1485] ss:$2 sm:$0x3] %vm1191, %v1483
    %v1487 = vcombine.high %v1464, %v1464
    %1488 = vrot.lane.b32.xlu0 %v1487, 98
    %v1489 = vpop.permute.xlu0 %1488
    %v1490 = vrot.slane %v1489, 7
    %v1491 = vsel %vm1198, %v1490, %v1489
    %s1493 = scalar_lea.vmem [#allocation2], 47
    %1494 = vst.msk [vmem:[%s1493] ss:$2 sm:$0x7] %vm1203, %v1491
    %v1495 = vcombine.high %v1479, %v1479
    %1496 = vrot.lane.b32.xlu0 %v1495, 11
    %v1497 = vpop.permute.xlu0 %1496
    %v1498 = vrot.slane %v1497, 7
    %v1499 = vsel %vm1210, %v1498, %v1497
    %s1501 = scalar_lea.vmem [#allocation2], 51
    %1502 = vst.msk [vmem:[%s1501] ss:$2 sm:$0x3] %vm1215, %v1499
    %v1503 = vld [vmem:[#allocation2] sm:$0xff]
    %v1504 = vld [vmem:[#allocation2 + $0x8] sm:$0xff]
    %v1505 = vld [vmem:[#allocation2 + $0x10] sm:$0xff]
    %v1506 = vld [vmem:[#allocation2 + $0x18] sm:$0xff]
    %v1507 = vld [vmem:[#allocation2 + $0x20] sm:$0xff]
    %v1508 = vld [vmem:[#allocation2 + $0x28] sm:$0xff]
    %v1509 = vld [vmem:[#allocation2 + $0x30] sm:$0x3f]
    %v1517 = vcombine.high %v1503, %v1503
    %v1519 = vunpack.c.l.s4 1983009808
    %v1520 = vunpack.c.0.s8 %v1519
    %v1521 = vlaneseq
    %v1522 = vshrl.u32 %v1521, 7
    %v1523 = vsub.s32 %v1520, %v1522
    %v1524 = vrot.slane %v1503, %v1523
    %v1526 = vunpack.c.l.s4 1983009808
    %v1527 = vunpack.c.0.s8 %v1526
    %v1528 = vlaneseq
    %v1529 = vshrl.u32 %v1528, 7
    %v1530 = vsub.s32 %v1527, %v1529
    %v1531 = vrot.slane %v1517, %v1530
    %v1532 = vcombine.high %v1524, %v1524
    %v1533 = vcombine.high %v1531, %v1531
    %v1534 = vcombine.high %v1504, %v1504
    %v1536 = vunpack.c.l.s4 1983009808
    %v1537 = vunpack.c.0.s8 %v1536
    %v1538 = vlaneseq
    %v1539 = vshrl.u32 %v1538, 7
    %v1540 = vsub.s32 %v1537, %v1539
    %v1541 = vrot.slane %v1504, %v1540
    %v1543 = vunpack.c.l.s4 1983009808
    %v1544 = vunpack.c.0.s8 %v1543
    %v1545 = vlaneseq
    %v1546 = vshrl.u32 %v1545, 7
    %v1547 = vsub.s32 %v1544, %v1546
    %v1548 = vrot.slane %v1534, %v1547
    %v1549 = vcombine.high %v1541, %v1541
    %v1550 = vcombine.high %v1548, %v1548
    %v1551 = vcombine.high %v1505, %v1505
    %v1553 = vunpack.c.l.s4 1983009808
    %v1554 = vunpack.c.0.s8 %v1553
    %v1555 = vlaneseq
    %v1556 = vshrl.u32 %v1555, 7
    %v1557 = vsub.s32 %v1554, %v1556
    %v1558 = vrot.slane %v1505, %v1557
    %v1560 = vunpack.c.l.s4 1983009808
    %v1561 = vunpack.c.0.s8 %v1560
    %v1562 = vlaneseq
    %v1563 = vshrl.u32 %v1562, 7
    %v1564 = vsub.s32 %v1561, %v1563
    %v1565 = vrot.slane %v1551, %v1564
    %v1566 = vcombine.high %v1558, %v1558
    %v1567 = vcombine.high %v1565, %v1565
    %v1568 = vcombine.high %v1506, %v1506
    %v1570 = vunpack.c.l.s4 1983009808
    %v1571 = vunpack.c.0.s8 %v1570
    %v1572 = vlaneseq
    %v1573 = vshrl.u32 %v1572, 7
    %v1574 = vsub.s32 %v1571, %v1573
    %v1575 = vrot.slane %v1506, %v1574
    %v1577 = vunpack.c.l.s4 1983009808
    %v1578 = vunpack.c.0.s8 %v1577
    %v1579 = vlaneseq
    %v1580 = vshrl.u32 %v1579, 7
    %v1581 = vsub.s32 %v1578, %v1580
    %v1582 = vrot.slane %v1568, %v1581
    %v1583 = vcombine.high %v1575, %v1575
    %v1584 = vcombine.high %v1582, %v1582
    %v1585 = vcombine.high %v1507, %v1507
    %v1587 = vunpack.c.l.s4 1983009808
    %v1588 = vunpack.c.0.s8 %v1587
    %v1589 = vlaneseq
    %v1590 = vshrl.u32 %v1589, 7
    %v1591 = vsub.s32 %v1588, %v1590
    %v1592 = vrot.slane %v1507, %v1591
    %v1594 = vunpack.c.l.s4 1983009808
    %v1595 = vunpack.c.0.s8 %v1594
    %v1596 = vlaneseq
    %v1597 = vshrl.u32 %v1596, 7
    %v1598 = vsub.s32 %v1595, %v1597
    %v1599 = vrot.slane %v1585, %v1598
    %v1600 = vcombine.high %v1592, %v1592
    %v1601 = vcombine.high %v1599, %v1599
    %v1602 = vcombine.high %v1508, %v1508
    %v1604 = vunpack.c.l.s4 1983009808
    %v1605 = vunpack.c.0.s8 %v1604
    %v1606 = vlaneseq
    %v1607 = vshrl.u32 %v1606, 7
    %v1608 = vsub.s32 %v1605, %v1607
    %v1609 = vrot.slane %v1508, %v1608
    %v1611 = vunpack.c.l.s4 1983009808
    %v1612 = vunpack.c.0.s8 %v1611
    %v1613 = vlaneseq
    %v1614 = vshrl.u32 %v1613, 7
    %v1615 = vsub.s32 %v1612, %v1614
    %v1616 = vrot.slane %v1602, %v1615
    %v1617 = vcombine.high %v1609, %v1609
    %v1618 = vcombine.high %v1616, %v1616
    %v1619 = vcombine.high %v1509, %v1509
    %v1621 = vunpack.c.l.s4 1983009808
    %v1622 = vunpack.c.0.s8 %v1621
    %v1623 = vlaneseq
    %v1624 = vshrl.u32 %v1623, 7
    %v1625 = vsub.s32 %v1622, %v1624
    %v1626 = vrot.slane %v1509, %v1625
    %v1628 = vunpack.c.l.s4 1983009808
    %v1629 = vunpack.c.0.s8 %v1628
    %v1630 = vlaneseq
    %v1631 = vshrl.u32 %v1630, 7
    %v1632 = vsub.s32 %v1629, %v1631
    %v1633 = vrot.slane %v1619, %v1632
    %v1634 = vcombine.high %v1626, %v1626
    %v1662 = vpack.c.bf16 %v1524, %v1524
    %v1663 = vpack.c.bf16 %v1532, %v1532
    %v1664 = vpack.c.bf16 %v1531, %v1531
    %v1665 = vpack.c.bf16 %v1533, %v1533
    %v1666 = vpack.c.bf16 %v1541, %v1541
    %v1667 = vpack.c.bf16 %v1549, %v1549
    %v1668 = vpack.c.bf16 %v1548, %v1548
    %v1669 = vpack.c.bf16 %v1550, %v1550
    %v1670 = vpack.c.bf16 %v1558, %v1558
    %v1671 = vpack.c.bf16 %v1566, %v1566
    %v1672 = vpack.c.bf16 %v1565, %v1565
    %v1673 = vpack.c.bf16 %v1567, %v1567
    %v1674 = vpack.c.bf16 %v1575, %v1575
    %v1675 = vpack.c.bf16 %v1583, %v1583
    %v1676 = vpack.c.bf16 %v1582, %v1582
    %v1677 = vpack.c.bf16 %v1584, %v1584
    %v1678 = vpack.c.bf16 %v1592, %v1592
    %v1679 = vpack.c.bf16 %v1600, %v1600
    %v1680 = vpack.c.bf16 %v1599, %v1599
    %v1681 = vpack.c.bf16 %v1601, %v1601
    %v1682 = vpack.c.bf16 %v1609, %v1609
    %v1683 = vpack.c.bf16 %v1617, %v1617
    %v1684 = vpack.c.bf16 %v1616, %v1616
    %v1685 = vpack.c.bf16 %v1618, %v1618
    %v1686 = vpack.c.bf16 %v1626, %v1626
    %v1687 = vpack.c.bf16 %v1634, %v1634
    %v1688 = vpack.c.bf16 %v1633, %v1633
    %v1689 = vld [vmem:[%s3] sm:$0xf]
    %v1690 = vld [vmem:[%s3 + $0x4] sm:$0xf]
    %v1691 = vld [vmem:[%s3 + $0x8] sm:$0xf]
    %v1692 = vld [vmem:[%s3 + $0xc] sm:$0xf]
    %v1693 = vld [vmem:[%s3 + $0x10] sm:$0xf]
    %v1694 = vld [vmem:[%s3 + $0x14] sm:$0xf]
    %v1695 = vld [vmem:[%s3 + $0x18] sm:$0xf]
    %v1696 = vld [vmem:[%s3 + $0x1c] sm:$0xf]
    %v1697 = vld [vmem:[%s3 + $0x20] sm:$0xf]
    %v1698 = vld [vmem:[%s3 + $0x24] sm:$0xf]
    %v1699 = vld [vmem:[%s3 + $0x28] sm:$0xf]
    %v1700 = vld [vmem:[%s3 + $0x2c] sm:$0xf]
    %v1701 = vld [vmem:[%s3 + $0x30] sm:$0xf]
    %v1702 = vld [vmem:[%s3 + $0x34] sm:$0xf]
    %v1703 = vld [vmem:[%s3 + $0x38] sm:$0xf]
    %v1704 = vld [vmem:[%s3 + $0x3c] sm:$0xf]
    %v1705 = vld [vmem:[%s3 + $0x40] sm:$0xf]
    %v1706 = vld [vmem:[%s3 + $0x44] sm:$0xf]
    %v1707 = vld [vmem:[%s3 + $0x48] sm:$0xf]
    %v1708 = vld [vmem:[%s3 + $0x4c] sm:$0xf]
    %v1709 = vld [vmem:[%s3 + $0x50] sm:$0xf]
    %v1710 = vld [vmem:[%s3 + $0x54] sm:$0xf]
    %v1711 = vld [vmem:[%s3 + $0x58] sm:$0xf]
    %v1712 = vld [vmem:[%s3 + $0x5c] sm:$0xf]
    %v1713 = vld [vmem:[%s3 + $0x60] sm:$0xf]
    %v1714 = vld [vmem:[%s3 + $0x64] sm:$0xf]
    %v1715 = vld [vmem:[%s3 + $0x68] sm:$0xf]
    %v1716 = vld [vmem:[%s3 + $0x6c] sm:$0xf]
    %v1717 = vld [vmem:[%s3 + $0x70] sm:$0xf]
    %v1718 = vld [vmem:[%s3 + $0x74] sm:$0xf]
    %v1719 = vld [vmem:[%s3 + $0x78] sm:$0xf]
    %v1720 = vld [vmem:[%s3 + $0x7c] sm:$0xf]
    %v1721 = vld [vmem:[%s3 + $0x80] sm:$0xf]
    %v1722 = vld [vmem:[%s3 + $0x84] sm:$0xf]
    %v1723 = vld [vmem:[%s3 + $0x88] sm:$0xf]
    %v1724 = vld [vmem:[%s3 + $0x8c] sm:$0xf]
    %v1725 = vld [vmem:[%s3 + $0x90] sm:$0xf]
    %v1726 = vld [vmem:[%s3 + $0x94] sm:$0xf]
    %v1727 = vld [vmem:[%s3 + $0x98] sm:$0xf]
    %v1728 = vld [vmem:[%s3 + $0x9c] sm:$0xf]
    %v1729 = vld [vmem:[%s3 + $0xa0] sm:$0xf]
    %v1730 = vld [vmem:[%s3 + $0xa4] sm:$0xf]
    %v1731 = vld [vmem:[%s3 + $0xa8] sm:$0xf]
    %v1732 = vld [vmem:[%s3 + $0xac] sm:$0xf]
    %v1733 = vld [vmem:[%s3 + $0xb0] sm:$0xf]
    %v1734 = vld [vmem:[%s3 + $0xb4] sm:$0xf]
    %v1735 = vld [vmem:[%s3 + $0xb8] sm:$0xf]
    %v1736 = vld [vmem:[%s3 + $0xbc] sm:$0xf]
    %v1737 = vld [vmem:[%s3 + $0xc0] sm:$0xf]
    %v1738 = vld [vmem:[%s3 + $0xc4] sm:$0xf]
    %v1739 = vld [vmem:[%s3 + $0xc8] sm:$0xf]
    %v1740 = vld [vmem:[%s3 + $0xcc] sm:$0xf]
    %v1741 = vld [vmem:[%s3 + $0xd0] sm:$0xf]
    %v1742 = vld [vmem:[%s3 + $0xd4] sm:$0xf]
    %v1743 = vld [vmem:[%s3 + $0xd8] sm:$0xf]
    %v1744 = vld [vmem:[%s3 + $0xdc] sm:$0xf]
    %v1745 = vld [vmem:[%s3 + $0xe0] sm:$0xf]
    %v1746 = vld [vmem:[%s3 + $0xe4] sm:$0xf]
    %v1747 = vld [vmem:[%s3 + $0xe8] sm:$0xf]
    %v1748 = vld [vmem:[%s3 + $0xec] sm:$0xf]
    %v1749 = vld [vmem:[%s3 + $0xf0] sm:$0xf]
    %v1750 = vld [vmem:[%s3 + $0xf4] sm:$0xf]
    %v1751 = vld [vmem:[%s3 + $0xf8] sm:$0xf]
    %v1752 = vld [vmem:[%s3 + $0xfc] sm:$0xf]
    %v1753 = vld [vmem:[%s3 + $0x100] sm:$0xf]
    %v1754 = vld [vmem:[%s3 + $0x104] sm:$0xf]
    %v1755 = vld [vmem:[%s3 + $0x108] sm:$0xf]
    %v1756 = vld [vmem:[%s3 + $0x10c] sm:$0xf]
    %v1757 = vld [vmem:[%s3 + $0x110] sm:$0xf]
    %v1758 = vld [vmem:[%s3 + $0x114] sm:$0xf]
    %v1759 = vld [vmem:[%s3 + $0x118] sm:$0xf]
    %v1760 = vld [vmem:[%s3 + $0x11c] sm:$0xf]
    %v1761 = vld [vmem:[%s3 + $0x120] sm:$0xf]
    %v1762 = vld [vmem:[%s3 + $0x124] sm:$0xf]
    %v1763 = vld [vmem:[%s3 + $0x128] sm:$0xf]
    %v1764 = vld [vmem:[%s3 + $0x12c] sm:$0xf]
    %v1765 = vld [vmem:[%s3 + $0x130] sm:$0xf]
    %v1766 = vld [vmem:[%s3 + $0x134] sm:$0xf]
    %v1767 = vld [vmem:[%s3 + $0x138] sm:$0xf]
    %v1768 = vld [vmem:[%s3 + $0x13c] sm:$0xf]
    %v1769 = vld [vmem:[%s3 + $0x140] sm:$0xf]
    %v1770 = vld [vmem:[%s3 + $0x144] sm:$0xf]
    %v1771 = vld [vmem:[%s3 + $0x148] sm:$0xf]
    %v1772 = vld [vmem:[%s3 + $0x14c] sm:$0xf]
    %v1773 = vld [vmem:[%s3 + $0x150] sm:$0xf]
    %v1774 = vld [vmem:[%s3 + $0x154] sm:$0xf]
    %v1775 = vld [vmem:[%s3 + $0x158] sm:$0xf]
    %v1776 = vld [vmem:[%s3 + $0x15c] sm:$0xf]
    %v1777 = vld [vmem:[%s3 + $0x160] sm:$0xf]
    %v1778 = vld [vmem:[%s3 + $0x164] sm:$0xf]
    %v1779 = vld [vmem:[%s3 + $0x168] sm:$0xf]
    %v1780 = vld [vmem:[%s3 + $0x16c] sm:$0xf]
    %v1781 = vld [vmem:[%s3 + $0x170] sm:$0xf]
    %v1782 = vld [vmem:[%s3 + $0x174] sm:$0xf]
    %v1783 = vld [vmem:[%s3 + $0x178] sm:$0xf]
    %v1784 = vld [vmem:[%s3 + $0x17c] sm:$0xf]
    %v1785 = vld [vmem:[%s3 + $0x180] sm:$0xf]
    %v1786 = vld [vmem:[%s3 + $0x184] sm:$0xf]
    %v1787 = vld [vmem:[%s3 + $0x188] sm:$0xf]
    %v1788 = vld [vmem:[%s3 + $0x18c] sm:$0xf]
    %v1789 = vld [vmem:[%s3 + $0x190] sm:$0xf]
    %v1790 = vld [vmem:[%s3 + $0x194] sm:$0xf]
    %v1791 = vld [vmem:[%s3 + $0x198] sm:$0xf]
    %v1792 = vld [vmem:[%s3 + $0x19c] sm:$0xf]
    %v1793 = vld [vmem:[%s3 + $0x1a0] sm:$0xf]
    %v1794 = vld [vmem:[%s3 + $0x1a4] sm:$0xf]
    %v1795 = vld [vmem:[%s3 + $0x1a8] sm:$0xf]
    %v1796 = vld [vmem:[%s3 + $0x1ac] sm:$0xf]
    %v1797 = vld [vmem:[%s3 + $0x1b0] sm:$0xf]
    %v1798 = vld [vmem:[%s3 + $0x1b4] sm:$0xf]
    %v1799 = vld [vmem:[%s3 + $0x1b8] sm:$0xf]
    %v1800 = vld [vmem:[%s3 + $0x1bc] sm:$0xf]
    %v1801 = vld [vmem:[%s3 + $0x1c0] sm:$0xf]
    %v1802 = vld [vmem:[%s3 + $0x1c4] sm:$0xf]
    %v1803 = vld [vmem:[%s3 + $0x1c8] sm:$0xf]
    %v1804 = vld [vmem:[%s3 + $0x1cc] sm:$0xf]
    %v1805 = vld [vmem:[%s3 + $0x1d0] sm:$0xf]
    %v1806 = vld [vmem:[%s3 + $0x1d4] sm:$0xf]
    %v1807 = vld [vmem:[%s3 + $0x1d8] sm:$0xf]
    %v1808 = vld [vmem:[%s3 + $0x1dc] sm:$0xf]
    %v1809 = vld [vmem:[%s3 + $0x1e0] sm:$0xf]
    %v1810 = vld [vmem:[%s3 + $0x1e4] sm:$0xf]
    %v1811 = vld [vmem:[%s3 + $0x1e8] sm:$0xf]
    %v1812 = vld [vmem:[%s3 + $0x1ec] sm:$0xf]
    %v1813 = vld [vmem:[%s3 + $0x1f0] sm:$0xf]
    %v1814 = vld [vmem:[%s3 + $0x1f4] sm:$0xf]
    %v1815 = vld [vmem:[%s3 + $0x1f8] sm:$0xf]
    %v1816 = vld [vmem:[%s3 + $0x1fc] sm:$0xf]
    %v1817 = vld [vmem:[%s3 + $0x200] sm:$0xf]
    %v1818 = vld [vmem:[%s3 + $0x204] sm:$0xf]
    %v1819 = vld [vmem:[%s3 + $0x208] sm:$0xf]
    %v1820 = vld [vmem:[%s3 + $0x20c] sm:$0xf]
    %v1821 = vld [vmem:[%s3 + $0x210] sm:$0xf]
    %v1822 = vld [vmem:[%s3 + $0x214] sm:$0xf]
    %v1823 = vld [vmem:[%s3 + $0x218] sm:$0xf]
    %v1824 = vld [vmem:[%s3 + $0x21c] sm:$0xf]
    %v1825 = vld [vmem:[%s3 + $0x220] sm:$0xf]
    %v1826 = vld [vmem:[%s3 + $0x224] sm:$0xf]
    %v1827 = vld [vmem:[%s3 + $0x228] sm:$0xf]
    %v1828 = vld [vmem:[%s3 + $0x22c] sm:$0xf]
    %v1829 = vld [vmem:[%s3 + $0x230] sm:$0xf]
    %v1830 = vld [vmem:[%s3 + $0x234] sm:$0xf]
    %v1831 = vld [vmem:[%s3 + $0x238] sm:$0xf]
    %v1832 = vld [vmem:[%s3 + $0x23c] sm:$0xf]
    %v1833 = vld [vmem:[%s3 + $0x240] sm:$0xf]
    %v1834 = vld [vmem:[%s3 + $0x244] sm:$0xf]
    %v1835 = vld [vmem:[%s3 + $0x248] sm:$0xf]
    %v1836 = vld [vmem:[%s3 + $0x24c] sm:$0xf]
    %v1837 = vld [vmem:[%s3 + $0x250] sm:$0xf]
    %v1838 = vld [vmem:[%s3 + $0x254] sm:$0xf]
    %v1839 = vld [vmem:[%s3 + $0x258] sm:$0xf]
    %v1840 = vld [vmem:[%s3 + $0x25c] sm:$0xf]
    %v1841 = vld [vmem:[%s3 + $0x260] sm:$0xf]
    %v1842 = vld [vmem:[%s3 + $0x264] sm:$0xf]
    %v1843 = vld [vmem:[%s3 + $0x268] sm:$0xf]
    %v1844 = vld [vmem:[%s3 + $0x26c] sm:$0xf]
    %v1845 = vld [vmem:[%s3 + $0x270] sm:$0xf]
    %v1846 = vld [vmem:[%s3 + $0x274] sm:$0xf]
    %v1847 = vld [vmem:[%s3 + $0x278] sm:$0xf]
    %v1848 = vld [vmem:[%s3 + $0x27c] sm:$0xf]
    %v1849 = vld [vmem:[%s3 + $0x280] sm:$0xf]
    %v1850 = vld [vmem:[%s3 + $0x284] sm:$0xf]
    %v1851 = vld [vmem:[%s3 + $0x288] sm:$0xf]
    %v1852 = vld [vmem:[%s3 + $0x28c] sm:$0xf]
    %v1853 = vld [vmem:[%s3 + $0x290] sm:$0xf]
    %v1854 = vld [vmem:[%s3 + $0x294] sm:$0xf]
    %v1855 = vld [vmem:[%s3 + $0x298] sm:$0xf]
    %v1856 = vld [vmem:[%s3 + $0x29c] sm:$0xf]
    %v1857 = vld [vmem:[%s3 + $0x2a0] sm:$0xf]
    %v1858 = vld [vmem:[%s3 + $0x2a4] sm:$0xf]
    %v1859 = vld [vmem:[%s3 + $0x2a8] sm:$0xf]
    %v1860 = vld [vmem:[%s3 + $0x2ac] sm:$0xf]
    %v1861 = vld [vmem:[%s3 + $0x2b0] sm:$0xf]
    %v1862 = vld [vmem:[%s3 + $0x2b4] sm:$0xf]
    %v1863 = vld [vmem:[%s3 + $0x2b8] sm:$0xf]
    %v1864 = vld [vmem:[%s3 + $0x2bc] sm:$0xf]
    %v1865 = vld [vmem:[%s3 + $0x2c0] sm:$0xf]
    %v1866 = vld [vmem:[%s3 + $0x2c4] sm:$0xf]
    %v1867 = vld [vmem:[%s3 + $0x2c8] sm:$0xf]
    %v1868 = vld [vmem:[%s3 + $0x2cc] sm:$0xf]
    %v1869 = vld [vmem:[%s3 + $0x2d0] sm:$0xf]
    %v1870 = vld [vmem:[%s3 + $0x2d4] sm:$0xf]
    %v1871 = vld [vmem:[%s3 + $0x2d8] sm:$0xf]
    %v1872 = vld [vmem:[%s3 + $0x2dc] sm:$0xf]
    %v1873 = vld [vmem:[%s3 + $0x2e0] sm:$0xf]
    %v1874 = vld [vmem:[%s3 + $0x2e4] sm:$0xf]
    %v1875 = vld [vmem:[%s3 + $0x2e8] sm:$0xf]
    %v1876 = vld [vmem:[%s3 + $0x2ec] sm:$0xf]
    %v1877 = vld [vmem:[%s3 + $0x2f0] sm:$0xf]
    %v1878 = vld [vmem:[%s3 + $0x2f4] sm:$0xf]
    %v1879 = vld [vmem:[%s3 + $0x2f8] sm:$0xf]
    %v1880 = vld [vmem:[%s3 + $0x2fc] sm:$0xf]
    %v1881 = vld [vmem:[%s3 + $0x300] sm:$0xf]
    %v1882 = vld [vmem:[%s3 + $0x304] sm:$0xf]
    %v1883 = vld [vmem:[%s3 + $0x308] sm:$0xf]
    %v1884 = vld [vmem:[%s3 + $0x30c] sm:$0xf]
    %v1885 = vld [vmem:[%s3 + $0x310] sm:$0xf]
    %v1886 = vld [vmem:[%s3 + $0x314] sm:$0xf]
    %v1887 = vld [vmem:[%s3 + $0x318] sm:$0xf]
    %v1888 = vld [vmem:[%s3 + $0x31c] sm:$0xf]
    %v1889 = vld [vmem:[%s3 + $0x320] sm:$0xf]
    %v1890 = vld [vmem:[%s3 + $0x324] sm:$0xf]
    %v1891 = vld [vmem:[%s3 + $0x328] sm:$0xf]
    %v1892 = vld [vmem:[%s3 + $0x32c] sm:$0xf]
    %v1893 = vld [vmem:[%s3 + $0x330] sm:$0xf]
    %v1894 = vld [vmem:[%s3 + $0x334] sm:$0xf]
    %v1895 = vld [vmem:[%s3 + $0x338] sm:$0xf]
    %v1896 = vld [vmem:[%s3 + $0x33c] sm:$0xf]
    %v1897 = vld [vmem:[%s3 + $0x340] sm:$0xf]
    %v1898 = vld [vmem:[%s3 + $0x344] sm:$0xf]
    %v1899 = vld [vmem:[%s3 + $0x348] sm:$0xf]
    %v1900 = vld [vmem:[%s3 + $0x34c] sm:$0xf]
    %v1901 = vld [vmem:[%s3 + $0x350] sm:$0xf]
    %v1902 = vld [vmem:[%s3 + $0x354] sm:$0xf]
    %v1903 = vld [vmem:[%s3 + $0x358] sm:$0xf]
    %v1904 = vld [vmem:[%s3 + $0x35c] sm:$0xf]
    %v1905 = vld [vmem:[%s3 + $0x360] sm:$0xf]
    %v1906 = vld [vmem:[%s3 + $0x364] sm:$0xf]
    %v1907 = vld [vmem:[%s3 + $0x368] sm:$0xf]
    %v1908 = vld [vmem:[%s3 + $0x36c] sm:$0xf]
    %v1909 = vld [vmem:[%s3 + $0x370] sm:$0xf]
    %v1910 = vld [vmem:[%s3 + $0x374] sm:$0xf]
    %v1911 = vld [vmem:[%s3 + $0x378] sm:$0xf]
    %v1912 = vld [vmem:[%s3 + $0x37c] sm:$0xf]
    %v1913 = vld [vmem:[%s3 + $0x380] sm:$0xf]
    %v1914 = vld [vmem:[%s3 + $0x384] sm:$0xf]
    %v1915 = vld [vmem:[%s3 + $0x388] sm:$0xf]
    %v1916 = vld [vmem:[%s3 + $0x38c] sm:$0xf]
    %v1917 = vld [vmem:[%s3 + $0x390] sm:$0xf]
    %v1918 = vld [vmem:[%s3 + $0x394] sm:$0xf]
    %v1919 = vld [vmem:[%s3 + $0x398] sm:$0xf]
    %v1920 = vld [vmem:[%s3 + $0x39c] sm:$0xf]
    %v1921 = vld [vmem:[%s3 + $0x3a0] sm:$0xf]
    %v1922 = vld [vmem:[%s3 + $0x3a4] sm:$0xf]
    %v1923 = vld [vmem:[%s3 + $0x3a8] sm:$0xf]
    %v1924 = vld [vmem:[%s3 + $0x3ac] sm:$0xf]
    %v1925 = vld [vmem:[%s3 + $0x3b0] sm:$0xf]
    %v1926 = vld [vmem:[%s3 + $0x3b4] sm:$0xf]
    %v1927 = vld [vmem:[%s3 + $0x3b8] sm:$0xf]
    %v1928 = vld [vmem:[%s3 + $0x3bc] sm:$0xf]
    %v1929 = vld [vmem:[%s3 + $0x3c0] sm:$0xf]
    %v1930 = vld [vmem:[%s3 + $0x3c4] sm:$0xf]
    %v1931 = vld [vmem:[%s3 + $0x3c8] sm:$0xf]
    %v1932 = vld [vmem:[%s3 + $0x3cc] sm:$0xf]
    %v1933 = vld [vmem:[%s3 + $0x3d0] sm:$0xf]
    %v1934 = vld [vmem:[%s3 + $0x3d4] sm:$0xf]
    %v1935 = vld [vmem:[%s3 + $0x3d8] sm:$0xf]
    %v1936 = vld [vmem:[%s3 + $0x3dc] sm:$0xf]
    %v1937 = vld [vmem:[%s3 + $0x3e0] sm:$0xf]
    %v1938 = vld [vmem:[%s3 + $0x3e4] sm:$0xf]
    %v1939 = vld [vmem:[%s3 + $0x3e8] sm:$0xf]
    %v1940 = vld [vmem:[%s3 + $0x3ec] sm:$0xf]
    %v1941 = vld [vmem:[%s3 + $0x3f0] sm:$0xf]
    %v1942 = vld [vmem:[%s3 + $0x3f4] sm:$0xf]
    %v1943 = vld [vmem:[%s3 + $0x3f8] sm:$0xf]
    %v1944 = vld [vmem:[%s3 + $0x3fc] sm:$0xf]
    %v1945 = vld [vmem:[%s3 + $0x400] sm:$0xf]
    %v1946 = vld [vmem:[%s3 + $0x404] sm:$0xf]
    %v1947 = vld [vmem:[%s3 + $0x408] sm:$0xf]
    %v1948 = vld [vmem:[%s3 + $0x40c] sm:$0xf]
    %v1949 = vld [vmem:[%s3 + $0x410] sm:$0xf]
    %v1950 = vld [vmem:[%s3 + $0x414] sm:$0xf]
    %v1951 = vld [vmem:[%s3 + $0x418] sm:$0xf]
    %v1952 = vld [vmem:[%s3 + $0x41c] sm:$0xf]
    %v1953 = vld [vmem:[%s3 + $0x420] sm:$0xf]
    %v1954 = vld [vmem:[%s3 + $0x424] sm:$0xf]
    %v1955 = vld [vmem:[%s3 + $0x428] sm:$0xf]
    %v1956 = vld [vmem:[%s3 + $0x42c] sm:$0xf]
    %v1957 = vld [vmem:[%s3 + $0x430] sm:$0xf]
    %v1958 = vld [vmem:[%s3 + $0x434] sm:$0xf]
    %v1959 = vld [vmem:[%s3 + $0x438] sm:$0xf]
    %v1960 = vld [vmem:[%s3 + $0x43c] sm:$0xf]
    %v1961 = vld [vmem:[%s3 + $0x440] sm:$0xf]
    %v1962 = vld [vmem:[%s3 + $0x444] sm:$0xf]
    %v1963 = vld [vmem:[%s3 + $0x448] sm:$0xf]
    %v1964 = vld [vmem:[%s3 + $0x44c] sm:$0xf]
    %v1965 = vld [vmem:[%s3 + $0x450] sm:$0xf]
    %v1966 = vld [vmem:[%s3 + $0x454] sm:$0xf]
    %v1967 = vld [vmem:[%s3 + $0x458] sm:$0xf]
    %v1968 = vld [vmem:[%s3 + $0x45c] sm:$0xf]
    %v1969 = vld [vmem:[%s3 + $0x460] sm:$0xf]
    %v1970 = vld [vmem:[%s3 + $0x464] sm:$0xf]
    %v1971 = vld [vmem:[%s3 + $0x468] sm:$0xf]
    %v1972 = vld [vmem:[%s3 + $0x46c] sm:$0xf]
    %v1973 = vld [vmem:[%s3 + $0x470] sm:$0xf]
    %v1974 = vld [vmem:[%s3 + $0x474] sm:$0xf]
    %v1975 = vld [vmem:[%s3 + $0x478] sm:$0xf]
    %v1976 = vld [vmem:[%s3 + $0x47c] sm:$0xf]
    %v1977 = vld [vmem:[%s3 + $0x480] sm:$0xf]
    %v1978 = vld [vmem:[%s3 + $0x484] sm:$0xf]
    %v1979 = vld [vmem:[%s3 + $0x488] sm:$0xf]
    %v1980 = vld [vmem:[%s3 + $0x48c] sm:$0xf]
    %v1981 = vld [vmem:[%s3 + $0x490] sm:$0xf]
    %v1982 = vld [vmem:[%s3 + $0x494] sm:$0xf]
    %v1983 = vld [vmem:[%s3 + $0x498] sm:$0xf]
    %v1984 = vld [vmem:[%s3 + $0x49c] sm:$0xf]
    %v1985 = vld [vmem:[%s3 + $0x4a0] sm:$0xf]
    %v1986 = vld [vmem:[%s3 + $0x4a4] sm:$0xf]
    %v1987 = vld [vmem:[%s3 + $0x4a8] sm:$0xf]
    %v1988 = vld [vmem:[%s3 + $0x4ac] sm:$0xf]
    %v1989 = vld [vmem:[%s3 + $0x4b0] sm:$0xf]
    %v1990 = vld [vmem:[%s3 + $0x4b4] sm:$0xf]
    %v1991 = vld [vmem:[%s3 + $0x4b8] sm:$0xf]
    %v1992 = vld [vmem:[%s3 + $0x4bc] sm:$0xf]
    %v1993 = vld [vmem:[%s3 + $0x4c0] sm:$0xf]
    %v1994 = vld [vmem:[%s3 + $0x4c4] sm:$0xf]
    %v1995 = vld [vmem:[%s3 + $0x4c8] sm:$0xf]
    %v1996 = vld [vmem:[%s3 + $0x4cc] sm:$0xf]
    %v1997 = vld [vmem:[%s3 + $0x4d0] sm:$0xf]
    %v1998 = vld [vmem:[%s3 + $0x4d4] sm:$0xf]
    %v1999 = vld [vmem:[%s3 + $0x4d8] sm:$0xf]
    %v2000 = vld [vmem:[%s3 + $0x4dc] sm:$0xf]
    %v2001 = vld [vmem:[%s3 + $0x4e0] sm:$0xf]
    %v2002 = vld [vmem:[%s3 + $0x4e4] sm:$0xf]
    %v2003 = vld [vmem:[%s3 + $0x4e8] sm:$0xf]
    %v2004 = vld [vmem:[%s3 + $0x4ec] sm:$0xf]
    %v2005 = vld [vmem:[%s3 + $0x4f0] sm:$0xf]
    %v2006 = vld [vmem:[%s3 + $0x4f4] sm:$0xf]
    %v2007 = vld [vmem:[%s3 + $0x4f8] sm:$0xf]
    %v2008 = vld [vmem:[%s3 + $0x4fc] sm:$0xf]
    %v2009 = vld [vmem:[%s3 + $0x500] sm:$0xf]
    %v2010 = vld [vmem:[%s3 + $0x504] sm:$0xf]
    %v2011 = vld [vmem:[%s3 + $0x508] sm:$0xf]
    %v2012 = vld [vmem:[%s3 + $0x50c] sm:$0xf]
    %v2013 = vld [vmem:[%s3 + $0x510] sm:$0xf]
    %v2014 = vld [vmem:[%s3 + $0x514] sm:$0xf]
    %v2015 = vld [vmem:[%s3 + $0x518] sm:$0xf]
    %v2016 = vld [vmem:[%s3 + $0x51c] sm:$0xf]
    %v2017 = vld [vmem:[%s3 + $0x520] sm:$0xf]
    %v2018 = vld [vmem:[%s3 + $0x524] sm:$0xf]
    %v2019 = vld [vmem:[%s3 + $0x528] sm:$0xf]
    %v2020 = vld [vmem:[%s3 + $0x52c] sm:$0xf]
    %v2021 = vld [vmem:[%s3 + $0x530] sm:$0xf]
    %v2022 = vld [vmem:[%s3 + $0x534] sm:$0xf]
    %v2023 = vld [vmem:[%s3 + $0x538] sm:$0xf]
    %v2024 = vld [vmem:[%s3 + $0x53c] sm:$0xf]
    %v2025 = vld [vmem:[%s3 + $0x540] sm:$0xf]
    %v2026 = vld [vmem:[%s3 + $0x544] sm:$0xf]
    %v2027 = vld [vmem:[%s3 + $0x548] sm:$0xf]
    %v2028 = vld [vmem:[%s3 + $0x54c] sm:$0xf]
    %v2029 = vld [vmem:[%s3 + $0x550] sm:$0xf]
    %v2030 = vld [vmem:[%s3 + $0x554] sm:$0xf]
    %v2031 = vld [vmem:[%s3 + $0x558] sm:$0xf]
    %v2032 = vld [vmem:[%s3 + $0x55c] sm:$0xf]
    %v2033 = vld [vmem:[%s3 + $0x560] sm:$0xf]
    %v2034 = vld [vmem:[%s3 + $0x564] sm:$0xf]
    %v2035 = vld [vmem:[%s3 + $0x568] sm:$0xf]
    %v2036 = vld [vmem:[%s3 + $0x56c] sm:$0xf]
    %v2037 = vld [vmem:[%s3 + $0x570] sm:$0xf]
    %v2038 = vld [vmem:[%s3 + $0x574] sm:$0xf]
    %v2039 = vld [vmem:[%s3 + $0x578] sm:$0xf]
    %v2040 = vld [vmem:[%s3 + $0x57c] sm:$0xf]
    %v2041 = vld [vmem:[%s3 + $0x580] sm:$0xf]
    %v2042 = vld [vmem:[%s3 + $0x584] sm:$0xf]
    %v2043 = vld [vmem:[%s3 + $0x588] sm:$0xf]
    %v2044 = vld [vmem:[%s3 + $0x58c] sm:$0xf]
    %v2045 = vld [vmem:[%s3 + $0x590] sm:$0xf]
    %v2046 = vld [vmem:[%s3 + $0x594] sm:$0xf]
    %v2047 = vld [vmem:[%s3 + $0x598] sm:$0xf]
    %v2048 = vld [vmem:[%s3 + $0x59c] sm:$0xf]
    %v2049 = vld [vmem:[%s3 + $0x5a0] sm:$0xf]
    %v2050 = vld [vmem:[%s3 + $0x5a4] sm:$0xf]
    %v2051 = vld [vmem:[%s3 + $0x5a8] sm:$0xf]
    %v2052 = vld [vmem:[%s3 + $0x5ac] sm:$0xf]
    %v2053 = vld [vmem:[%s3 + $0x5b0] sm:$0xf]
    %v2054 = vld [vmem:[%s3 + $0x5b4] sm:$0xf]
    %v2055 = vld [vmem:[%s3 + $0x5b8] sm:$0xf]
    %v2056 = vld [vmem:[%s3 + $0x5bc] sm:$0xf]
    %v2057 = vld [vmem:[%s3 + $0x5c0] sm:$0xf]
    %v2058 = vld [vmem:[%s3 + $0x5c4] sm:$0xf]
    %v2059 = vld [vmem:[%s3 + $0x5c8] sm:$0xf]
    %v2060 = vld [vmem:[%s3 + $0x5cc] sm:$0xf]
    %v2061 = vld [vmem:[%s3 + $0x5d0] sm:$0xf]
    %v2062 = vld [vmem:[%s3 + $0x5d4] sm:$0xf]
    %v2063 = vld [vmem:[%s3 + $0x5d8] sm:$0xf]
    %v2064 = vld [vmem:[%s3 + $0x5dc] sm:$0xf]
    %v2065 = vld [vmem:[%s3 + $0x5e0] sm:$0xf]
    %v2066 = vld [vmem:[%s3 + $0x5e4] sm:$0xf]
    %v2067 = vld [vmem:[%s3 + $0x5e8] sm:$0xf]
    %v2068 = vld [vmem:[%s3 + $0x5ec] sm:$0xf]
    %v2069 = vld [vmem:[%s3 + $0x5f0] sm:$0xf]
    %v2070 = vld [vmem:[%s3 + $0x5f4] sm:$0xf]
    %v2071 = vld [vmem:[%s3 + $0x5f8] sm:$0xf]
    %v2072 = vld [vmem:[%s3 + $0x5fc] sm:$0xf]
    %v2073 = vld [vmem:[%s3 + $0x600] sm:$0xf]
    %v2074 = vld [vmem:[%s3 + $0x604] sm:$0xf]
    %v2075 = vld [vmem:[%s3 + $0x608] sm:$0xf]
    %v2076 = vld [vmem:[%s3 + $0x60c] sm:$0xf]
    %v2077 = vld [vmem:[%s3 + $0x610] sm:$0xf]
    %v2078 = vld [vmem:[%s3 + $0x614] sm:$0xf]
    %v2079 = vld [vmem:[%s3 + $0x618] sm:$0xf]
    %v2080 = vld [vmem:[%s3 + $0x61c] sm:$0xf]
    %v2081 = vld [vmem:[%s3 + $0x620] sm:$0xf]
    %v2082 = vld [vmem:[%s3 + $0x624] sm:$0xf]
    %v2083 = vld [vmem:[%s3 + $0x628] sm:$0xf]
    %v2084 = vld [vmem:[%s3 + $0x62c] sm:$0xf]
    %v2085 = vld [vmem:[%s3 + $0x630] sm:$0xf]
    %v2086 = vld [vmem:[%s3 + $0x634] sm:$0xf]
    %v2087 = vld [vmem:[%s3 + $0x638] sm:$0xf]
    %v2088 = vld [vmem:[%s3 + $0x63c] sm:$0xf]
    %v2089 = vld [vmem:[%s3 + $0x640] sm:$0xf]
    %v2090 = vld [vmem:[%s3 + $0x644] sm:$0xf]
    %v2091 = vld [vmem:[%s3 + $0x648] sm:$0xf]
    %v2092 = vld [vmem:[%s3 + $0x64c] sm:$0xf]
    %v2093 = vld [vmem:[%s3 + $0x650] sm:$0xf]
    %v2094 = vld [vmem:[%s3 + $0x654] sm:$0xf]
    %v2095 = vld [vmem:[%s3 + $0x658] sm:$0xf]
    %v2096 = vld [vmem:[%s3 + $0x65c] sm:$0xf]
    %v2097 = vld [vmem:[%s3 + $0x660] sm:$0xf]
    %v2098 = vld [vmem:[%s3 + $0x664] sm:$0xf]
    %v2099 = vld [vmem:[%s3 + $0x668] sm:$0xf]
    %v2100 = vld [vmem:[%s3 + $0x66c] sm:$0xf]
    %v2101 = vld [vmem:[%s3 + $0x670] sm:$0xf]
    %v2102 = vld [vmem:[%s3 + $0x674] sm:$0xf]
    %v2103 = vld [vmem:[%s3 + $0x678] sm:$0xf]
    %v2104 = vld [vmem:[%s3 + $0x67c] sm:$0xf]
    %v2105 = vld [vmem:[%s3 + $0x680] sm:$0xf]
    %v2106 = vld [vmem:[%s3 + $0x684] sm:$0xf]
    %v2107 = vld [vmem:[%s3 + $0x688] sm:$0xf]
    %v2108 = vld [vmem:[%s3 + $0x68c] sm:$0xf]
    %v2109 = vld [vmem:[%s3 + $0x690] sm:$0xf]
    %v2110 = vld [vmem:[%s3 + $0x694] sm:$0xf]
    %v2111 = vld [vmem:[%s3 + $0x698] sm:$0xf]
    %v2112 = vld [vmem:[%s3 + $0x69c] sm:$0xf]
    %v2113 = vld [vmem:[%s3 + $0x6a0] sm:$0xf]
    %v2114 = vld [vmem:[%s3 + $0x6a4] sm:$0xf]
    %v2115 = vld [vmem:[%s3 + $0x6a8] sm:$0xf]
    %v2116 = vld [vmem:[%s3 + $0x6ac] sm:$0xf]
    %v2117 = vld [vmem:[%s3 + $0x6b0] sm:$0xf]
    %v2118 = vld [vmem:[%s3 + $0x6b4] sm:$0xf]
    %v2119 = vld [vmem:[%s3 + $0x6b8] sm:$0xf]
    %v2120 = vld [vmem:[%s3 + $0x6bc] sm:$0xf]
    %v2121 = vld [vmem:[%s4] sm:$0x1]
    %v2123 = vlaneseq
    %v2124 = vshrl.u32 %v2123, 7
    %v2125 = vsub.s32 0, %v2124
    %v2126 = vrot.slane %v2121, %v2125
    %v2560 = vunpack.c.l.b16 %v1689
    %v2561 = vunpack.c.l.b16 %v1690
    %v2562 = vunpack.c.l.b16 %v1691
    %v2563 = vunpack.c.l.b16 %v1692
    %v2564 = vunpack.c.l.b16 %v1693
    %v2565 = vunpack.c.l.b16 %v1694
    %v2566 = vunpack.c.l.b16 %v1695
    %v2567 = vunpack.c.l.b16 %v1696
    %v2568 = vunpack.c.l.b16 %v1697
    %v2569 = vunpack.c.l.b16 %v1698
    %v2570 = vunpack.c.l.b16 %v1699
    %v2571 = vunpack.c.l.b16 %v1700
    %v2572 = vunpack.c.l.b16 %v1701
    %v2573 = vunpack.c.l.b16 %v1702
    %v2574 = vunpack.c.l.b16 %v1703
    %v2575 = vunpack.c.l.b16 %v1704
    %v2576 = vunpack.c.l.b16 %v1705
    %v2577 = vunpack.c.l.b16 %v1706
    %v2578 = vunpack.c.l.b16 %v1707
    %v2579 = vunpack.c.l.b16 %v1708
    %v2580 = vunpack.c.l.b16 %v1709
    %v2581 = vunpack.c.l.b16 %v1710
    %v2582 = vunpack.c.l.b16 %v1711
    %v2583 = vunpack.c.l.b16 %v1712
    %v2584 = vunpack.c.l.b16 %v1713
    %v2585 = vunpack.c.l.b16 %v1714
    %v2586 = vunpack.c.l.b16 %v1715
    %v2587 = vunpack.c.l.b16 %v1716
    %v2588 = vunpack.c.l.b16 %v1717
    %v2589 = vunpack.c.l.b16 %v1718
    %v2590 = vunpack.c.l.b16 %v1719
    %v2591 = vunpack.c.l.b16 %v1720
    %v2592 = vunpack.c.l.b16 %v1721
    %v2593 = vunpack.c.l.b16 %v1722
    %v2594 = vunpack.c.l.b16 %v1723
    %v2595 = vunpack.c.l.b16 %v1724
    %v2596 = vunpack.c.l.b16 %v1725
    %v2597 = vunpack.c.l.b16 %v1726
    %v2598 = vunpack.c.l.b16 %v1727
    %v2599 = vunpack.c.l.b16 %v1728
    %v2600 = vunpack.c.l.b16 %v1729
    %v2601 = vunpack.c.l.b16 %v1730
    %v2602 = vunpack.c.l.b16 %v1731
    %v2603 = vunpack.c.l.b16 %v1732
    %v2604 = vunpack.c.l.b16 %v1733
    %v2605 = vunpack.c.l.b16 %v1734
    %v2606 = vunpack.c.l.b16 %v1735
    %v2607 = vunpack.c.l.b16 %v1736
    %v2608 = vunpack.c.l.b16 %v1737
    %v2609 = vunpack.c.l.b16 %v1738
    %v2610 = vunpack.c.l.b16 %v1739
    %v2611 = vunpack.c.l.b16 %v1740
    %v2612 = vunpack.c.l.b16 %v1741
    %v2613 = vunpack.c.l.b16 %v1742
    %v2614 = vunpack.c.l.b16 %v1743
    %v2615 = vunpack.c.l.b16 %v1744
    %v2616 = vunpack.c.l.b16 %v1745
    %v2617 = vunpack.c.l.b16 %v1746
    %v2618 = vunpack.c.l.b16 %v1747
    %v2619 = vunpack.c.l.b16 %v1748
    %v2620 = vunpack.c.l.b16 %v1749
    %v2621 = vunpack.c.l.b16 %v1750
    %v2622 = vunpack.c.l.b16 %v1751
    %v2623 = vunpack.c.l.b16 %v1752
    %v2624 = vunpack.c.l.b16 %v1753
    %v2625 = vunpack.c.l.b16 %v1754
    %v2626 = vunpack.c.l.b16 %v1755
    %v2627 = vunpack.c.l.b16 %v1756
    %v2628 = vunpack.c.l.b16 %v1757
    %v2629 = vunpack.c.l.b16 %v1758
    %v2630 = vunpack.c.l.b16 %v1759
    %v2631 = vunpack.c.l.b16 %v1760
    %v2632 = vunpack.c.l.b16 %v1761
    %v2633 = vunpack.c.l.b16 %v1762
    %v2634 = vunpack.c.l.b16 %v1763
    %v2635 = vunpack.c.l.b16 %v1764
    %v2636 = vunpack.c.l.b16 %v1765
    %v2637 = vunpack.c.l.b16 %v1766
    %v2638 = vunpack.c.l.b16 %v1767
    %v2639 = vunpack.c.l.b16 %v1768
    %v2640 = vunpack.c.l.b16 %v1769
    %v2641 = vunpack.c.l.b16 %v1770
    %v2642 = vunpack.c.l.b16 %v1771
    %v2643 = vunpack.c.l.b16 %v1772
    %v2644 = vunpack.c.l.b16 %v1773
    %v2645 = vunpack.c.l.b16 %v1774
    %v2646 = vunpack.c.l.b16 %v1775
    %v2647 = vunpack.c.l.b16 %v1776
    %v2648 = vunpack.c.l.b16 %v1777
    %v2649 = vunpack.c.l.b16 %v1778
    %v2650 = vunpack.c.l.b16 %v1779
    %v2651 = vunpack.c.l.b16 %v1780
    %v2652 = vunpack.c.l.b16 %v1781
    %v2653 = vunpack.c.l.b16 %v1782
    %v2654 = vunpack.c.l.b16 %v1783
    %v2655 = vunpack.c.l.b16 %v1784
    %v2656 = vunpack.c.l.b16 %v1785
    %v2657 = vunpack.c.l.b16 %v1786
    %v2658 = vunpack.c.l.b16 %v1787
    %v2659 = vunpack.c.l.b16 %v1788
    %v2660 = vunpack.c.l.b16 %v1789
    %v2661 = vunpack.c.l.b16 %v1790
    %v2662 = vunpack.c.l.b16 %v1791
    %v2663 = vunpack.c.l.b16 %v1792
    %v2664 = vunpack.c.l.b16 %v1793
    %v2665 = vunpack.c.l.b16 %v1794
    %v2666 = vunpack.c.l.b16 %v1795
    %v2667 = vunpack.c.l.b16 %v1796
    %v2668 = vunpack.c.l.b16 %v1797
    %v2669 = vunpack.c.l.b16 %v1798
    %v2670 = vunpack.c.l.b16 %v1799
    %v2671 = vunpack.c.l.b16 %v1800
    %v2672 = vunpack.c.l.b16 %v1801
    %v2673 = vunpack.c.l.b16 %v1802
    %v2674 = vunpack.c.l.b16 %v1803
    %v2675 = vunpack.c.l.b16 %v1804
    %v2676 = vunpack.c.l.b16 %v1805
    %v2677 = vunpack.c.l.b16 %v1806
    %v2678 = vunpack.c.l.b16 %v1807
    %v2679 = vunpack.c.l.b16 %v1808
    %v2680 = vunpack.c.l.b16 %v1809
    %v2681 = vunpack.c.l.b16 %v1810
    %v2682 = vunpack.c.l.b16 %v1811
    %v2683 = vunpack.c.l.b16 %v1812
    %v2684 = vunpack.c.l.b16 %v1813
    %v2685 = vunpack.c.l.b16 %v1814
    %v2686 = vunpack.c.l.b16 %v1815
    %v2687 = vunpack.c.l.b16 %v1816
    %v2688 = vunpack.c.l.b16 %v1817
    %v2689 = vunpack.c.l.b16 %v1818
    %v2690 = vunpack.c.l.b16 %v1819
    %v2691 = vunpack.c.l.b16 %v1820
    %v2692 = vunpack.c.l.b16 %v1821
    %v2693 = vunpack.c.l.b16 %v1822
    %v2694 = vunpack.c.l.b16 %v1823
    %v2695 = vunpack.c.l.b16 %v1824
    %v2696 = vunpack.c.l.b16 %v1825
    %v2697 = vunpack.c.l.b16 %v1826
    %v2698 = vunpack.c.l.b16 %v1827
    %v2699 = vunpack.c.l.b16 %v1828
    %v2700 = vunpack.c.l.b16 %v1829
    %v2701 = vunpack.c.l.b16 %v1830
    %v2702 = vunpack.c.l.b16 %v1831
    %v2703 = vunpack.c.l.b16 %v1832
    %v2704 = vunpack.c.l.b16 %v1833
    %v2705 = vunpack.c.l.b16 %v1834
    %v2706 = vunpack.c.l.b16 %v1835
    %v2707 = vunpack.c.l.b16 %v1836
    %v2708 = vunpack.c.l.b16 %v1837
    %v2709 = vunpack.c.l.b16 %v1838
    %v2710 = vunpack.c.l.b16 %v1839
    %v2711 = vunpack.c.l.b16 %v1840
    %v2712 = vunpack.c.l.b16 %v1841
    %v2713 = vunpack.c.l.b16 %v1842
    %v2714 = vunpack.c.l.b16 %v1843
    %v2715 = vunpack.c.l.b16 %v1844
    %v2716 = vunpack.c.l.b16 %v1845
    %v2717 = vunpack.c.l.b16 %v1846
    %v2718 = vunpack.c.l.b16 %v1847
    %v2719 = vunpack.c.l.b16 %v1848
    %v2720 = vunpack.c.l.b16 %v1849
    %v2721 = vunpack.c.l.b16 %v1850
    %v2722 = vunpack.c.l.b16 %v1851
    %v2723 = vunpack.c.l.b16 %v1852
    %v2724 = vunpack.c.l.b16 %v1853
    %v2725 = vunpack.c.l.b16 %v1854
    %v2726 = vunpack.c.l.b16 %v1855
    %v2727 = vunpack.c.l.b16 %v1856
    %v2728 = vunpack.c.l.b16 %v1857
    %v2729 = vunpack.c.l.b16 %v1858
    %v2730 = vunpack.c.l.b16 %v1859
    %v2731 = vunpack.c.l.b16 %v1860
    %v2732 = vunpack.c.l.b16 %v1861
    %v2733 = vunpack.c.l.b16 %v1862
    %v2734 = vunpack.c.l.b16 %v1863
    %v2735 = vunpack.c.l.b16 %v1864
    %v2736 = vunpack.c.l.b16 %v1865
    %v2737 = vunpack.c.l.b16 %v1866
    %v2738 = vunpack.c.l.b16 %v1867
    %v2739 = vunpack.c.l.b16 %v1868
    %v2740 = vunpack.c.l.b16 %v1869
    %v2741 = vunpack.c.l.b16 %v1870
    %v2742 = vunpack.c.l.b16 %v1871
    %v2743 = vunpack.c.l.b16 %v1872
    %v2744 = vunpack.c.l.b16 %v1873
    %v2745 = vunpack.c.l.b16 %v1874
    %v2746 = vunpack.c.l.b16 %v1875
    %v2747 = vunpack.c.l.b16 %v1876
    %v2748 = vunpack.c.l.b16 %v1877
    %v2749 = vunpack.c.l.b16 %v1878
    %v2750 = vunpack.c.l.b16 %v1879
    %v2751 = vunpack.c.l.b16 %v1880
    %v2752 = vunpack.c.l.b16 %v1881
    %v2753 = vunpack.c.l.b16 %v1882
    %v2754 = vunpack.c.l.b16 %v1883
    %v2755 = vunpack.c.l.b16 %v1884
    %v2756 = vunpack.c.l.b16 %v1885
    %v2757 = vunpack.c.l.b16 %v1886
    %v2758 = vunpack.c.l.b16 %v1887
    %v2759 = vunpack.c.l.b16 %v1888
    %v2760 = vunpack.c.l.b16 %v1889
    %v2761 = vunpack.c.l.b16 %v1890
    %v2762 = vunpack.c.l.b16 %v1891
    %v2763 = vunpack.c.l.b16 %v1892
    %v2764 = vunpack.c.l.b16 %v1893
    %v2765 = vunpack.c.l.b16 %v1894
    %v2766 = vunpack.c.l.b16 %v1895
    %v2767 = vunpack.c.l.b16 %v1896
    %v2768 = vunpack.c.l.b16 %v1897
    %v2769 = vunpack.c.l.b16 %v1898
    %v2770 = vunpack.c.l.b16 %v1899
    %v2771 = vunpack.c.l.b16 %v1900
    %v2772 = vunpack.c.l.b16 %v1901
    %v2773 = vunpack.c.l.b16 %v1902
    %v2774 = vunpack.c.l.b16 %v1903
    %v2775 = vunpack.c.l.b16 %v1904
    %v2776 = vunpack.c.l.b16 %v1905
    %v2777 = vunpack.c.l.b16 %v1906
    %v2778 = vunpack.c.l.b16 %v1907
    %v2779 = vunpack.c.l.b16 %v1908
    %v2780 = vunpack.c.l.b16 %v1909
    %v2781 = vunpack.c.l.b16 %v1910
    %v2782 = vunpack.c.l.b16 %v1911
    %v2783 = vunpack.c.l.b16 %v1912
    %v2784 = vunpack.c.l.b16 %v1913
    %v2785 = vunpack.c.l.b16 %v1914
    %v2786 = vunpack.c.l.b16 %v1915
    %v2787 = vunpack.c.l.b16 %v1916
    %v2788 = vunpack.c.l.b16 %v1917
    %v2789 = vunpack.c.l.b16 %v1918
    %v2790 = vunpack.c.l.b16 %v1919
    %v2791 = vunpack.c.l.b16 %v1920
    %v2792 = vunpack.c.l.b16 %v1921
    %v2793 = vunpack.c.l.b16 %v1922
    %v2794 = vunpack.c.l.b16 %v1923
    %v2795 = vunpack.c.l.b16 %v1924
    %v2796 = vunpack.c.l.b16 %v1925
    %v2797 = vunpack.c.l.b16 %v1926
    %v2798 = vunpack.c.l.b16 %v1927
    %v2799 = vunpack.c.l.b16 %v1928
    %v2800 = vunpack.c.l.b16 %v1929
    %v2801 = vunpack.c.l.b16 %v1930
    %v2802 = vunpack.c.l.b16 %v1931
    %v2803 = vunpack.c.l.b16 %v1932
    %v2804 = vunpack.c.l.b16 %v1933
    %v2805 = vunpack.c.l.b16 %v1934
    %v2806 = vunpack.c.l.b16 %v1935
    %v2807 = vunpack.c.l.b16 %v1936
    %v2808 = vunpack.c.l.b16 %v1937
    %v2809 = vunpack.c.l.b16 %v1938
    %v2810 = vunpack.c.l.b16 %v1939
    %v2811 = vunpack.c.l.b16 %v1940
    %v2812 = vunpack.c.l.b16 %v1941
    %v2813 = vunpack.c.l.b16 %v1942
    %v2814 = vunpack.c.l.b16 %v1943
    %v2815 = vunpack.c.l.b16 %v1944
    %v2816 = vunpack.c.l.b16 %v1945
    %v2817 = vunpack.c.l.b16 %v1946
    %v2818 = vunpack.c.l.b16 %v1947
    %v2819 = vunpack.c.l.b16 %v1948
    %v2820 = vunpack.c.l.b16 %v1949
    %v2821 = vunpack.c.l.b16 %v1950
    %v2822 = vunpack.c.l.b16 %v1951
    %v2823 = vunpack.c.l.b16 %v1952
    %v2824 = vunpack.c.l.b16 %v1953
    %v2825 = vunpack.c.l.b16 %v1954
    %v2826 = vunpack.c.l.b16 %v1955
    %v2827 = vunpack.c.l.b16 %v1956
    %v2828 = vunpack.c.l.b16 %v1957
    %v2829 = vunpack.c.l.b16 %v1958
    %v2830 = vunpack.c.l.b16 %v1959
    %v2831 = vunpack.c.l.b16 %v1960
    %v2832 = vunpack.c.l.b16 %v1961
    %v2833 = vunpack.c.l.b16 %v1962
    %v2834 = vunpack.c.l.b16 %v1963
    %v2835 = vunpack.c.l.b16 %v1964
    %v2836 = vunpack.c.l.b16 %v1965
    %v2837 = vunpack.c.l.b16 %v1966
    %v2838 = vunpack.c.l.b16 %v1967
    %v2839 = vunpack.c.l.b16 %v1968
    %v2840 = vunpack.c.l.b16 %v1969
    %v2841 = vunpack.c.l.b16 %v1970
    %v2842 = vunpack.c.l.b16 %v1971
    %v2843 = vunpack.c.l.b16 %v1972
    %v2844 = vunpack.c.l.b16 %v1973
    %v2845 = vunpack.c.l.b16 %v1974
    %v2846 = vunpack.c.l.b16 %v1975
    %v2847 = vunpack.c.l.b16 %v1976
    %v2848 = vunpack.c.l.b16 %v1977
    %v2849 = vunpack.c.l.b16 %v1978
    %v2850 = vunpack.c.l.b16 %v1979
    %v2851 = vunpack.c.l.b16 %v1980
    %v2852 = vunpack.c.l.b16 %v1981
    %v2853 = vunpack.c.l.b16 %v1982
    %v2854 = vunpack.c.l.b16 %v1983
    %v2855 = vunpack.c.l.b16 %v1984
    %v2856 = vunpack.c.l.b16 %v1985
    %v2857 = vunpack.c.l.b16 %v1986
    %v2858 = vunpack.c.l.b16 %v1987
    %v2859 = vunpack.c.l.b16 %v1988
    %v2860 = vunpack.c.l.b16 %v1989
    %v2861 = vunpack.c.l.b16 %v1990
    %v2862 = vunpack.c.l.b16 %v1991
    %v2863 = vunpack.c.l.b16 %v1992
    %v2864 = vunpack.c.l.b16 %v1993
    %v2865 = vunpack.c.l.b16 %v1994
    %v2866 = vunpack.c.l.b16 %v1995
    %v2867 = vunpack.c.l.b16 %v1996
    %v2868 = vunpack.c.l.b16 %v1997
    %v2869 = vunpack.c.l.b16 %v1998
    %v2870 = vunpack.c.l.b16 %v1999
    %v2871 = vunpack.c.l.b16 %v2000
    %v2872 = vunpack.c.l.b16 %v2001
    %v2873 = vunpack.c.l.b16 %v2002
    %v2874 = vunpack.c.l.b16 %v2003
    %v2875 = vunpack.c.l.b16 %v2004
    %v2876 = vunpack.c.l.b16 %v2005
    %v2877 = vunpack.c.l.b16 %v2006
    %v2878 = vunpack.c.l.b16 %v2007
    %v2879 = vunpack.c.l.b16 %v2008
    %v2880 = vunpack.c.l.b16 %v2009
    %v2881 = vunpack.c.l.b16 %v2010
    %v2882 = vunpack.c.l.b16 %v2011
    %v2883 = vunpack.c.l.b16 %v2012
    %v2884 = vunpack.c.l.b16 %v2013
    %v2885 = vunpack.c.l.b16 %v2014
    %v2886 = vunpack.c.l.b16 %v2015
    %v2887 = vunpack.c.l.b16 %v2016
    %v2888 = vunpack.c.l.b16 %v2017
    %v2889 = vunpack.c.l.b16 %v2018
    %v2890 = vunpack.c.l.b16 %v2019
    %v2891 = vunpack.c.l.b16 %v2020
    %v2892 = vunpack.c.l.b16 %v2021
    %v2893 = vunpack.c.l.b16 %v2022
    %v2894 = vunpack.c.l.b16 %v2023
    %v2895 = vunpack.c.l.b16 %v2024
    %v2896 = vunpack.c.l.b16 %v2025
    %v2897 = vunpack.c.l.b16 %v2026
    %v2898 = vunpack.c.l.b16 %v2027
    %v2899 = vunpack.c.l.b16 %v2028
    %v2900 = vunpack.c.l.b16 %v2029
    %v2901 = vunpack.c.l.b16 %v2030
    %v2902 = vunpack.c.l.b16 %v2031
    %v2903 = vunpack.c.l.b16 %v2032
    %v2904 = vunpack.c.l.b16 %v2033
    %v2905 = vunpack.c.l.b16 %v2034
    %v2906 = vunpack.c.l.b16 %v2035
    %v2907 = vunpack.c.l.b16 %v2036
    %v2908 = vunpack.c.l.b16 %v2037
    %v2909 = vunpack.c.l.b16 %v2038
    %v2910 = vunpack.c.l.b16 %v2039
    %v2911 = vunpack.c.l.b16 %v2040
    %v2912 = vunpack.c.l.b16 %v2041
    %v2913 = vunpack.c.l.b16 %v2042
    %v2914 = vunpack.c.l.b16 %v2043
    %v2915 = vunpack.c.l.b16 %v2044
    %v2916 = vunpack.c.l.b16 %v2045
    %v2917 = vunpack.c.l.b16 %v2046
    %v2918 = vunpack.c.l.b16 %v2047
    %v2919 = vunpack.c.l.b16 %v2048
    %v2920 = vunpack.c.l.b16 %v2049
    %v2921 = vunpack.c.l.b16 %v2050
    %v2922 = vunpack.c.l.b16 %v2051
    %v2923 = vunpack.c.l.b16 %v2052
    %v2924 = vunpack.c.l.b16 %v2053
    %v2925 = vunpack.c.l.b16 %v2054
    %v2926 = vunpack.c.l.b16 %v2055
    %v2927 = vunpack.c.l.b16 %v2056
    %v2928 = vunpack.c.l.b16 %v2057
    %v2929 = vunpack.c.l.b16 %v2058
    %v2930 = vunpack.c.l.b16 %v2059
    %v2931 = vunpack.c.l.b16 %v2060
    %v2932 = vunpack.c.l.b16 %v2061
    %v2933 = vunpack.c.l.b16 %v2062
    %v2934 = vunpack.c.l.b16 %v2063
    %v2935 = vunpack.c.l.b16 %v2064
    %v2936 = vunpack.c.l.b16 %v2065
    %v2937 = vunpack.c.l.b16 %v2066
    %v2938 = vunpack.c.l.b16 %v2067
    %v2939 = vunpack.c.l.b16 %v2068
    %v2940 = vunpack.c.l.b16 %v2069
    %v2941 = vunpack.c.l.b16 %v2070
    %v2942 = vunpack.c.l.b16 %v2071
    %v2943 = vunpack.c.l.b16 %v2072
    %v2944 = vunpack.c.l.b16 %v2073
    %v2945 = vunpack.c.l.b16 %v2074
    %v2946 = vunpack.c.l.b16 %v2075
    %v2947 = vunpack.c.l.b16 %v2076
    %v2948 = vunpack.c.l.b16 %v2077
    %v2949 = vunpack.c.l.b16 %v2078
    %v2950 = vunpack.c.l.b16 %v2079
    %v2951 = vunpack.c.l.b16 %v2080
    %v2952 = vunpack.c.l.b16 %v2081
    %v2953 = vunpack.c.l.b16 %v2082
    %v2954 = vunpack.c.l.b16 %v2083
    %v2955 = vunpack.c.l.b16 %v2084
    %v2956 = vunpack.c.l.b16 %v2085
    %v2957 = vunpack.c.l.b16 %v2086
    %v2958 = vunpack.c.l.b16 %v2087
    %v2959 = vunpack.c.l.b16 %v2088
    %v2960 = vunpack.c.l.b16 %v2089
    %v2961 = vunpack.c.l.b16 %v2090
    %v2962 = vunpack.c.l.b16 %v2091
    %v2963 = vunpack.c.l.b16 %v2092
    %v2964 = vunpack.c.l.b16 %v2093
    %v2965 = vunpack.c.l.b16 %v2094
    %v2966 = vunpack.c.l.b16 %v2095
    %v2967 = vunpack.c.l.b16 %v2096
    %v2968 = vunpack.c.l.b16 %v2097
    %v2969 = vunpack.c.l.b16 %v2098
    %v2970 = vunpack.c.l.b16 %v2099
    %v2971 = vunpack.c.l.b16 %v2100
    %v2972 = vunpack.c.l.b16 %v2101
    %v2973 = vunpack.c.l.b16 %v2102
    %v2974 = vunpack.c.l.b16 %v2103
    %v2975 = vunpack.c.l.b16 %v2104
    %v2976 = vunpack.c.l.b16 %v2105
    %v2977 = vunpack.c.l.b16 %v2106
    %v2978 = vunpack.c.l.b16 %v2107
    %v2979 = vunpack.c.l.b16 %v2108
    %v2980 = vunpack.c.l.b16 %v2109
    %v2981 = vunpack.c.l.b16 %v2110
    %v2982 = vunpack.c.l.b16 %v2111
    %v2983 = vunpack.c.l.b16 %v2112
    %v2984 = vunpack.c.l.b16 %v2113
    %v2985 = vunpack.c.l.b16 %v2114
    %v2986 = vunpack.c.l.b16 %v2115
    %v2987 = vunpack.c.l.b16 %v2116
    %v2988 = vunpack.c.l.b16 %v2117
    %v2989 = vunpack.c.l.b16 %v2118
    %v2990 = vunpack.c.l.b16 %v2119
    %v2991 = vunpack.c.l.b16 %v2120
    %v2992 = vpack.c.b16 %v2561, %v2560
    %v2993 = vpack.c.b16 %v2563, %v2562
    %v2994 = vpack.c.b16 %v2565, %v2564
    %v2995 = vpack.c.b16 %v2567, %v2566
    %v2996 = vpack.c.b16 %v2569, %v2568
    %v2997 = vpack.c.b16 %v2571, %v2570
    %v2998 = vpack.c.b16 %v2573, %v2572
    %v2999 = vpack.c.b16 %v2575, %v2574
    %v3000 = vpack.c.b16 %v2577, %v2576
    %v3001 = vpack.c.b16 %v2579, %v2578
    %v3002 = vpack.c.b16 %v2581, %v2580
    %v3003 = vpack.c.b16 %v2583, %v2582
    %v3004 = vpack.c.b16 %v2585, %v2584
    %v3005 = vpack.c.b16 %v2587, %v2586
    %v3006 = vpack.c.b16 %v2589, %v2588
    %v3007 = vpack.c.b16 %v2591, %v2590
    %v3008 = vpack.c.b16 %v2593, %v2592
    %v3009 = vpack.c.b16 %v2595, %v2594
    %v3010 = vpack.c.b16 %v2597, %v2596
    %v3011 = vpack.c.b16 %v2599, %v2598
    %v3012 = vpack.c.b16 %v2601, %v2600
    %v3013 = vpack.c.b16 %v2603, %v2602
    %v3014 = vpack.c.b16 %v2605, %v2604
    %v3015 = vpack.c.b16 %v2607, %v2606
    %v3016 = vpack.c.b16 %v2609, %v2608
    %v3017 = vpack.c.b16 %v2611, %v2610
    %v3018 = vpack.c.b16 %v2613, %v2612
    %v3019 = vpack.c.b16 %v2615, %v2614
    %v3020 = vpack.c.b16 %v2617, %v2616
    %v3021 = vpack.c.b16 %v2619, %v2618
    %v3022 = vpack.c.b16 %v2621, %v2620
    %v3023 = vpack.c.b16 %v2623, %v2622
    %v3024 = vpack.c.b16 %v2625, %v2624
    %v3025 = vpack.c.b16 %v2627, %v2626
    %v3026 = vpack.c.b16 %v2629, %v2628
    %v3027 = vpack.c.b16 %v2631, %v2630
    %v3028 = vpack.c.b16 %v2633, %v2632
    %v3029 = vpack.c.b16 %v2635, %v2634
    %v3030 = vpack.c.b16 %v2637, %v2636
    %v3031 = vpack.c.b16 %v2639, %v2638
    %v3032 = vpack.c.b16 %v2641, %v2640
    %v3033 = vpack.c.b16 %v2643, %v2642
    %v3034 = vpack.c.b16 %v2645, %v2644
    %v3035 = vpack.c.b16 %v2647, %v2646
    %v3036 = vpack.c.b16 %v2649, %v2648
    %v3037 = vpack.c.b16 %v2651, %v2650
    %v3038 = vpack.c.b16 %v2653, %v2652
    %v3039 = vpack.c.b16 %v2655, %v2654
    %v3040 = vpack.c.b16 %v2657, %v2656
    %v3041 = vpack.c.b16 %v2659, %v2658
    %v3042 = vpack.c.b16 %v2661, %v2660
    %v3043 = vpack.c.b16 %v2663, %v2662
    %v3044 = vpack.c.b16 %v2665, %v2664
    %v3045 = vpack.c.b16 %v2667, %v2666
    %v3046 = vpack.c.b16 %v2669, %v2668
    %v3047 = vpack.c.b16 %v2671, %v2670
    %v3048 = vpack.c.b16 %v2673, %v2672
    %v3049 = vpack.c.b16 %v2675, %v2674
    %v3050 = vpack.c.b16 %v2677, %v2676
    %v3051 = vpack.c.b16 %v2679, %v2678
    %v3052 = vpack.c.b16 %v2681, %v2680
    %v3053 = vpack.c.b16 %v2683, %v2682
    %v3054 = vpack.c.b16 %v2685, %v2684
    %v3055 = vpack.c.b16 %v2687, %v2686
    %v3056 = vpack.c.b16 %v2689, %v2688
    %v3057 = vpack.c.b16 %v2691, %v2690
    %v3058 = vpack.c.b16 %v2693, %v2692
    %v3059 = vpack.c.b16 %v2695, %v2694
    %v3060 = vpack.c.b16 %v2697, %v2696
    %v3061 = vpack.c.b16 %v2699, %v2698
    %v3062 = vpack.c.b16 %v2701, %v2700
    %v3063 = vpack.c.b16 %v2703, %v2702
    %v3064 = vpack.c.b16 %v2705, %v2704
    %v3065 = vpack.c.b16 %v2707, %v2706
    %v3066 = vpack.c.b16 %v2709, %v2708
    %v3067 = vpack.c.b16 %v2711, %v2710
    %v3068 = vpack.c.b16 %v2713, %v2712
    %v3069 = vpack.c.b16 %v2715, %v2714
    %v3070 = vpack.c.b16 %v2717, %v2716
    %v3071 = vpack.c.b16 %v2719, %v2718
    %v3072 = vpack.c.b16 %v2721, %v2720
    %v3073 = vpack.c.b16 %v2723, %v2722
    %v3074 = vpack.c.b16 %v2725, %v2724
    %v3075 = vpack.c.b16 %v2727, %v2726
    %v3076 = vpack.c.b16 %v2729, %v2728
    %v3077 = vpack.c.b16 %v2731, %v2730
    %v3078 = vpack.c.b16 %v2733, %v2732
    %v3079 = vpack.c.b16 %v2735, %v2734
    %v3080 = vpack.c.b16 %v2737, %v2736
    %v3081 = vpack.c.b16 %v2739, %v2738
    %v3082 = vpack.c.b16 %v2741, %v2740
    %v3083 = vpack.c.b16 %v2743, %v2742
    %v3084 = vpack.c.b16 %v2745, %v2744
    %v3085 = vpack.c.b16 %v2747, %v2746
    %v3086 = vpack.c.b16 %v2749, %v2748
    %v3087 = vpack.c.b16 %v2751, %v2750
    %v3088 = vpack.c.b16 %v2753, %v2752
    %v3089 = vpack.c.b16 %v2755, %v2754
    %v3090 = vpack.c.b16 %v2757, %v2756
    %v3091 = vpack.c.b16 %v2759, %v2758
    %v3092 = vpack.c.b16 %v2761, %v2760
    %v3093 = vpack.c.b16 %v2763, %v2762
    %v3094 = vpack.c.b16 %v2765, %v2764
    %v3095 = vpack.c.b16 %v2767, %v2766
    %v3096 = vpack.c.b16 %v2769, %v2768
    %v3097 = vpack.c.b16 %v2771, %v2770
    %v3098 = vpack.c.b16 %v2773, %v2772
    %v3099 = vpack.c.b16 %v2775, %v2774
    %v3100 = vpack.c.b16 %v2777, %v2776
    %v3101 = vpack.c.b16 %v2779, %v2778
    %v3102 = vpack.c.b16 %v2781, %v2780
    %v3103 = vpack.c.b16 %v2783, %v2782
    %v3104 = vpack.c.b16 %v2785, %v2784
    %v3105 = vpack.c.b16 %v2787, %v2786
    %v3106 = vpack.c.b16 %v2789, %v2788
    %v3107 = vpack.c.b16 %v2791, %v2790
    %v3108 = vpack.c.b16 %v2793, %v2792
    %v3109 = vpack.c.b16 %v2795, %v2794
    %v3110 = vpack.c.b16 %v2797, %v2796
    %v3111 = vpack.c.b16 %v2799, %v2798
    %v3112 = vpack.c.b16 %v2801, %v2800
    %v3113 = vpack.c.b16 %v2803, %v2802
    %v3114 = vpack.c.b16 %v2805, %v2804
    %v3115 = vpack.c.b16 %v2807, %v2806
    %v3116 = vpack.c.b16 %v2809, %v2808
    %v3117 = vpack.c.b16 %v2811, %v2810
    %v3118 = vpack.c.b16 %v2813, %v2812
    %v3119 = vpack.c.b16 %v2815, %v2814
    %v3120 = vpack.c.b16 %v2817, %v2816
    %v3121 = vpack.c.b16 %v2819, %v2818
    %v3122 = vpack.c.b16 %v2821, %v2820
    %v3123 = vpack.c.b16 %v2823, %v2822
    %v3124 = vpack.c.b16 %v2825, %v2824
    %v3125 = vpack.c.b16 %v2827, %v2826
    %v3126 = vpack.c.b16 %v2829, %v2828
    %v3127 = vpack.c.b16 %v2831, %v2830
    %v3128 = vpack.c.b16 %v2833, %v2832
    %v3129 = vpack.c.b16 %v2835, %v2834
    %v3130 = vpack.c.b16 %v2837, %v2836
    %v3131 = vpack.c.b16 %v2839, %v2838
    %v3132 = vpack.c.b16 %v2841, %v2840
    %v3133 = vpack.c.b16 %v2843, %v2842
    %v3134 = vpack.c.b16 %v2845, %v2844
    %v3135 = vpack.c.b16 %v2847, %v2846
    %v3136 = vpack.c.b16 %v2849, %v2848
    %v3137 = vpack.c.b16 %v2851, %v2850
    %v3138 = vpack.c.b16 %v2853, %v2852
    %v3139 = vpack.c.b16 %v2855, %v2854
    %v3140 = vpack.c.b16 %v2857, %v2856
    %v3141 = vpack.c.b16 %v2859, %v2858
    %v3142 = vpack.c.b16 %v2861, %v2860
    %v3143 = vpack.c.b16 %v2863, %v2862
    %v3144 = vpack.c.b16 %v2865, %v2864
    %v3145 = vpack.c.b16 %v2867, %v2866
    %v3146 = vpack.c.b16 %v2869, %v2868
    %v3147 = vpack.c.b16 %v2871, %v2870
    %v3148 = vpack.c.b16 %v2873, %v2872
    %v3149 = vpack.c.b16 %v2875, %v2874
    %v3150 = vpack.c.b16 %v2877, %v2876
    %v3151 = vpack.c.b16 %v2879, %v2878
    %v3152 = vpack.c.b16 %v2881, %v2880
    %v3153 = vpack.c.b16 %v2883, %v2882
    %v3154 = vpack.c.b16 %v2885, %v2884
    %v3155 = vpack.c.b16 %v2887, %v2886
    %v3156 = vpack.c.b16 %v2889, %v2888
    %v3157 = vpack.c.b16 %v2891, %v2890
    %v3158 = vpack.c.b16 %v2893, %v2892
    %v3159 = vpack.c.b16 %v2895, %v2894
    %v3160 = vpack.c.b16 %v2897, %v2896
    %v3161 = vpack.c.b16 %v2899, %v2898
    %v3162 = vpack.c.b16 %v2901, %v2900
    %v3163 = vpack.c.b16 %v2903, %v2902
    %v3164 = vpack.c.b16 %v2905, %v2904
    %v3165 = vpack.c.b16 %v2907, %v2906
    %v3166 = vpack.c.b16 %v2909, %v2908
    %v3167 = vpack.c.b16 %v2911, %v2910
    %v3168 = vpack.c.b16 %v2913, %v2912
    %v3169 = vpack.c.b16 %v2915, %v2914
    %v3170 = vpack.c.b16 %v2917, %v2916
    %v3171 = vpack.c.b16 %v2919, %v2918
    %v3172 = vpack.c.b16 %v2921, %v2920
    %v3173 = vpack.c.b16 %v2923, %v2922
    %v3174 = vpack.c.b16 %v2925, %v2924
    %v3175 = vpack.c.b16 %v2927, %v2926
    %v3176 = vpack.c.b16 %v2929, %v2928
    %v3177 = vpack.c.b16 %v2931, %v2930
    %v3178 = vpack.c.b16 %v2933, %v2932
    %v3179 = vpack.c.b16 %v2935, %v2934
    %v3180 = vpack.c.b16 %v2937, %v2936
    %v3181 = vpack.c.b16 %v2939, %v2938
    %v3182 = vpack.c.b16 %v2941, %v2940
    %v3183 = vpack.c.b16 %v2943, %v2942
    %v3184 = vpack.c.b16 %v2945, %v2944
    %v3185 = vpack.c.b16 %v2947, %v2946
    %v3186 = vpack.c.b16 %v2949, %v2948
    %v3187 = vpack.c.b16 %v2951, %v2950
    %v3188 = vpack.c.b16 %v2953, %v2952
    %v3189 = vpack.c.b16 %v2955, %v2954
    %v3190 = vpack.c.b16 %v2957, %v2956
    %v3191 = vpack.c.b16 %v2959, %v2958
    %v3192 = vpack.c.b16 %v2961, %v2960
    %v3193 = vpack.c.b16 %v2963, %v2962
    %v3194 = vpack.c.b16 %v2965, %v2964
    %v3195 = vpack.c.b16 %v2967, %v2966
    %v3196 = vpack.c.b16 %v2969, %v2968
    %v3197 = vpack.c.b16 %v2971, %v2970
    %v3198 = vpack.c.b16 %v2973, %v2972
    %v3199 = vpack.c.b16 %v2975, %v2974
    %v3200 = vpack.c.b16 %v2977, %v2976
    %v3201 = vpack.c.b16 %v2979, %v2978
    %v3202 = vpack.c.b16 %v2981, %v2980
    %v3203 = vpack.c.b16 %v2983, %v2982
    %v3204 = vpack.c.b16 %v2985, %v2984
    %v3205 = vpack.c.b16 %v2987, %v2986
    %v3206 = vpack.c.b16 %v2989, %v2988
    %v3207 = vpack.c.b16 %v2991, %v2990
    %3424 = vmatprep.subr.bf16.mxu0 0
    %3425 = vmatpush1.bf16.msra.mxu0 %v2999
    %3426 = vmatprep.subr.bf16.mxu0 0
    %3427 = vmatpush1.bf16.msra.mxu0 %v2998
    %3428 = vmatprep.subr.bf16.mxu0 0
    %3429 = vmatpush1.bf16.msra.mxu0 %v2997
    %3430 = vmatprep.subr.bf16.mxu0 0
    %3431 = vmatpush1.bf16.msra.mxu0 %v2996
    %3432 = vmatprep.subr.bf16.mxu0 0
    %3433 = vmatpush1.bf16.msra.mxu0 %v2995
    %3434 = vmatprep.subr.bf16.mxu0 0
    %3435 = vmatpush1.bf16.msra.mxu0 %v2994
    %3436 = vmatprep.subr.bf16.mxu0 0
    %3437 = vmatpush1.bf16.msra.mxu0 %v2993
    %3438 = vmatprep.subr.bf16.mxu0 0
    %3439 = vmatpush1.bf16.msra.mxu0 %v2992
    %3440 = vmatprep.subr.bf16.mxu0 0
    %3441 = vmatpush2.bf16.msra.mxu0 %v3007
    %3442 = vmatprep.subr.bf16.mxu0 0
    %3443 = vmatpush2.bf16.msra.mxu0 %v3006
    %3444 = vmatprep.subr.bf16.mxu0 0
    %3445 = vmatpush2.bf16.msra.mxu0 %v3005
    %3446 = vmatprep.subr.bf16.mxu0 0
    %3447 = vmatpush2.bf16.msra.mxu0 %v3004
    %3448 = vmatprep.subr.bf16.mxu0 0
    %3449 = vmatpush2.bf16.msra.mxu0 %v3003
    %3450 = vmatprep.subr.bf16.mxu0 0
    %3451 = vmatpush2.bf16.msra.mxu0 %v3002
    %3452 = vmatprep.subr.bf16.mxu0 0
    %3453 = vmatpush2.bf16.msra.mxu0 %v3001
    %3454 = vmatprep.subr.bf16.mxu0 0
    %3455 = vmatpush2.bf16.msra.mxu0 %v3000
    %3456 = vmatprep.mubr.bf16.mxu0 %v1663
    %3457 = vmatmul.mubr.bf16.gmra.mxu0 %v1662
    %v3458 = vpop.f32.mrf.mxu0
    %v3459 = vadd.f32 %v2126, %v3458
    %v3460 = vpop.f32.mrf.mxu0
    %v3461 = vpop.f32.mrf.mxu0
    %v3462 = vpop.f32.mrf.mxu0
    %3463 = vdwg.mxu0
    %3464 = vmatprep.subr.bf16.mxu0 0
    %3465 = vmatpush1.bf16.msra.mxu0 %v3015
    %3466 = vmatprep.subr.bf16.mxu0 0
    %3467 = vmatpush1.bf16.msra.mxu0 %v3014
    %3468 = vmatprep.subr.bf16.mxu0 0
    %3469 = vmatpush1.bf16.msra.mxu0 %v3013
    %3470 = vmatprep.subr.bf16.mxu0 0
    %3471 = vmatpush1.bf16.msra.mxu0 %v3012
    %3472 = vmatprep.subr.bf16.mxu0 0
    %3473 = vmatpush1.bf16.msra.mxu0 %v3011
    %3474 = vmatprep.subr.bf16.mxu0 0
    %3475 = vmatpush1.bf16.msra.mxu0 %v3010
    %3476 = vmatprep.subr.bf16.mxu0 0
    %3477 = vmatpush1.bf16.msra.mxu0 %v3009
    %3478 = vmatprep.subr.bf16.mxu0 0
    %3479 = vmatpush1.bf16.msra.mxu0 %v3008
    %3480 = vmatprep.subr.bf16.mxu0 0
    %3481 = vmatpush2.bf16.msra.mxu0 %v3023
    %3482 = vmatprep.subr.bf16.mxu0 0
    %3483 = vmatpush2.bf16.msra.mxu0 %v3022
    %3484 = vmatprep.subr.bf16.mxu0 0
    %3485 = vmatpush2.bf16.msra.mxu0 %v3021
    %3486 = vmatprep.subr.bf16.mxu0 0
    %3487 = vmatpush2.bf16.msra.mxu0 %v3020
    %3488 = vmatprep.subr.bf16.mxu0 0
    %3489 = vmatpush2.bf16.msra.mxu0 %v3019
    %3490 = vmatprep.subr.bf16.mxu0 0
    %3491 = vmatpush2.bf16.msra.mxu0 %v3018
    %3492 = vmatprep.subr.bf16.mxu0 0
    %3493 = vmatpush2.bf16.msra.mxu0 %v3017
    %3494 = vmatprep.subr.bf16.mxu0 0
    %3495 = vmatpush2.bf16.msra.mxu0 %v3016
    %3496 = vmatprep.mubr.bf16.mxu0 %v1665
    %3497 = vmatmul.mubr.bf16.gmra.mxu0 %v1664
    %v3498 = vpop.f32.mrf.mxu0
    %v3499 = vadd.f32 %v3459, %v3498
    %v3500 = vpop.f32.mrf.mxu0
    %v3501 = vpop.f32.mrf.mxu0
    %v3502 = vpop.f32.mrf.mxu0
    %3503 = vdwg.mxu0
    %3504 = vmatprep.subr.bf16.mxu0 0
    %3505 = vmatpush1.bf16.msra.mxu0 %v3031
    %3506 = vmatprep.subr.bf16.mxu0 0
    %3507 = vmatpush1.bf16.msra.mxu0 %v3030
    %3508 = vmatprep.subr.bf16.mxu0 0
    %3509 = vmatpush1.bf16.msra.mxu0 %v3029
    %3510 = vmatprep.subr.bf16.mxu0 0
    %3511 = vmatpush1.bf16.msra.mxu0 %v3028
    %3512 = vmatprep.subr.bf16.mxu0 0
    %3513 = vmatpush1.bf16.msra.mxu0 %v3027
    %3514 = vmatprep.subr.bf16.mxu0 0
    %3515 = vmatpush1.bf16.msra.mxu0 %v3026
    %3516 = vmatprep.subr.bf16.mxu0 0
    %3517 = vmatpush1.bf16.msra.mxu0 %v3025
    %3518 = vmatprep.subr.bf16.mxu0 0
    %3519 = vmatpush1.bf16.msra.mxu0 %v3024
    %3520 = vmatprep.subr.bf16.mxu0 0
    %3521 = vmatpush2.bf16.msra.mxu0 %v3039
    %3522 = vmatprep.subr.bf16.mxu0 0
    %3523 = vmatpush2.bf16.msra.mxu0 %v3038
    %3524 = vmatprep.subr.bf16.mxu0 0
    %3525 = vmatpush2.bf16.msra.mxu0 %v3037
    %3526 = vmatprep.subr.bf16.mxu0 0
    %3527 = vmatpush2.bf16.msra.mxu0 %v3036
    %3528 = vmatprep.subr.bf16.mxu0 0
    %3529 = vmatpush2.bf16.msra.mxu0 %v3035
    %3530 = vmatprep.subr.bf16.mxu0 0
    %3531 = vmatpush2.bf16.msra.mxu0 %v3034
    %3532 = vmatprep.subr.bf16.mxu0 0
    %3533 = vmatpush2.bf16.msra.mxu0 %v3033
    %3534 = vmatprep.subr.bf16.mxu0 0
    %3535 = vmatpush2.bf16.msra.mxu0 %v3032
    %3536 = vmatprep.mubr.bf16.mxu0 %v1667
    %3537 = vmatmul.mubr.bf16.gmra.mxu0 %v1666
    %v3538 = vpop.f32.mrf.mxu0
    %v3539 = vadd.f32 %v3499, %v3538
    %v3540 = vpop.f32.mrf.mxu0
    %v3541 = vpop.f32.mrf.mxu0
    %v3542 = vpop.f32.mrf.mxu0
    %3543 = vdwg.mxu0
    %3544 = vmatprep.subr.bf16.mxu0 0
    %3545 = vmatpush1.bf16.msra.mxu0 %v3047
    %3546 = vmatprep.subr.bf16.mxu0 0
    %3547 = vmatpush1.bf16.msra.mxu0 %v3046
    %3548 = vmatprep.subr.bf16.mxu0 0
    %3549 = vmatpush1.bf16.msra.mxu0 %v3045
    %3550 = vmatprep.subr.bf16.mxu0 0
    %3551 = vmatpush1.bf16.msra.mxu0 %v3044
    %3552 = vmatprep.subr.bf16.mxu0 0
    %3553 = vmatpush1.bf16.msra.mxu0 %v3043
    %3554 = vmatprep.subr.bf16.mxu0 0
    %3555 = vmatpush1.bf16.msra.mxu0 %v3042
    %3556 = vmatprep.subr.bf16.mxu0 0
    %3557 = vmatpush1.bf16.msra.mxu0 %v3041
    %3558 = vmatprep.subr.bf16.mxu0 0
    %3559 = vmatpush1.bf16.msra.mxu0 %v3040
    %3560 = vmatprep.subr.bf16.mxu0 0
    %3561 = vmatpush2.bf16.msra.mxu0 %v3055
    %3562 = vmatprep.subr.bf16.mxu0 0
    %3563 = vmatpush2.bf16.msra.mxu0 %v3054
    %3564 = vmatprep.subr.bf16.mxu0 0
    %3565 = vmatpush2.bf16.msra.mxu0 %v3053
    %3566 = vmatprep.subr.bf16.mxu0 0
    %3567 = vmatpush2.bf16.msra.mxu0 %v3052
    %3568 = vmatprep.subr.bf16.mxu0 0
    %3569 = vmatpush2.bf16.msra.mxu0 %v3051
    %3570 = vmatprep.subr.bf16.mxu0 0
    %3571 = vmatpush2.bf16.msra.mxu0 %v3050
    %3572 = vmatprep.subr.bf16.mxu0 0
    %3573 = vmatpush2.bf16.msra.mxu0 %v3049
    %3574 = vmatprep.subr.bf16.mxu0 0
    %3575 = vmatpush2.bf16.msra.mxu0 %v3048
    %3576 = vmatprep.mubr.bf16.mxu0 %v1669
    %3577 = vmatmul.mubr.bf16.gmra.mxu0 %v1668
    %v3578 = vpop.f32.mrf.mxu0
    %v3579 = vadd.f32 %v3539, %v3578
    %v3580 = vpop.f32.mrf.mxu0
    %v3581 = vpop.f32.mrf.mxu0
    %v3582 = vpop.f32.mrf.mxu0
    %3583 = vdwg.mxu0
    %3584 = vmatprep.subr.bf16.mxu0 0
    %3585 = vmatpush1.bf16.msra.mxu0 %v3063
    %3586 = vmatprep.subr.bf16.mxu0 0
    %3587 = vmatpush1.bf16.msra.mxu0 %v3062
    %3588 = vmatprep.subr.bf16.mxu0 0
    %3589 = vmatpush1.bf16.msra.mxu0 %v3061
    %3590 = vmatprep.subr.bf16.mxu0 0
    %3591 = vmatpush1.bf16.msra.mxu0 %v3060
    %3592 = vmatprep.subr.bf16.mxu0 0
    %3593 = vmatpush1.bf16.msra.mxu0 %v3059
    %3594 = vmatprep.subr.bf16.mxu0 0
    %3595 = vmatpush1.bf16.msra.mxu0 %v3058
    %3596 = vmatprep.subr.bf16.mxu0 0
    %3597 = vmatpush1.bf16.msra.mxu0 %v3057
    %3598 = vmatprep.subr.bf16.mxu0 0
    %3599 = vmatpush1.bf16.msra.mxu0 %v3056
    %3600 = vmatprep.subr.bf16.mxu0 0
    %3601 = vmatpush2.bf16.msra.mxu0 %v3071
    %3602 = vmatprep.subr.bf16.mxu0 0
    %3603 = vmatpush2.bf16.msra.mxu0 %v3070
    %3604 = vmatprep.subr.bf16.mxu0 0
    %3605 = vmatpush2.bf16.msra.mxu0 %v3069
    %3606 = vmatprep.subr.bf16.mxu0 0
    %3607 = vmatpush2.bf16.msra.mxu0 %v3068
    %3608 = vmatprep.subr.bf16.mxu0 0
    %3609 = vmatpush2.bf16.msra.mxu0 %v3067
    %3610 = vmatprep.subr.bf16.mxu0 0
    %3611 = vmatpush2.bf16.msra.mxu0 %v3066
    %3612 = vmatprep.subr.bf16.mxu0 0
    %3613 = vmatpush2.bf16.msra.mxu0 %v3065
    %3614 = vmatprep.subr.bf16.mxu0 0
    %3615 = vmatpush2.bf16.msra.mxu0 %v3064
    %3616 = vmatprep.mubr.bf16.mxu0 %v1671
    %3617 = vmatmul.mubr.bf16.gmra.mxu0 %v1670
    %v3618 = vpop.f32.mrf.mxu0
    %v3619 = vadd.f32 %v3579, %v3618
    %v3620 = vpop.f32.mrf.mxu0
    %v3621 = vpop.f32.mrf.mxu0
    %v3622 = vpop.f32.mrf.mxu0
    %3623 = vdwg.mxu0
    %3624 = vmatprep.subr.bf16.mxu0 0
    %3625 = vmatpush1.bf16.msra.mxu0 %v3079
    %3626 = vmatprep.subr.bf16.mxu0 0
    %3627 = vmatpush1.bf16.msra.mxu0 %v3078
    %3628 = vmatprep.subr.bf16.mxu0 0
    %3629 = vmatpush1.bf16.msra.mxu0 %v3077
    %3630 = vmatprep.subr.bf16.mxu0 0
    %3631 = vmatpush1.bf16.msra.mxu0 %v3076
    %3632 = vmatprep.subr.bf16.mxu0 0
    %3633 = vmatpush1.bf16.msra.mxu0 %v3075
    %3634 = vmatprep.subr.bf16.mxu0 0
    %3635 = vmatpush1.bf16.msra.mxu0 %v3074
    %3636 = vmatprep.subr.bf16.mxu0 0
    %3637 = vmatpush1.bf16.msra.mxu0 %v3073
    %3638 = vmatprep.subr.bf16.mxu0 0
    %3639 = vmatpush1.bf16.msra.mxu0 %v3072
    %3640 = vmatprep.subr.bf16.mxu0 0
    %3641 = vmatpush2.bf16.msra.mxu0 %v3087
    %3642 = vmatprep.subr.bf16.mxu0 0
    %3643 = vmatpush2.bf16.msra.mxu0 %v3086
    %3644 = vmatprep.subr.bf16.mxu0 0
    %3645 = vmatpush2.bf16.msra.mxu0 %v3085
    %3646 = vmatprep.subr.bf16.mxu0 0
    %3647 = vmatpush2.bf16.msra.mxu0 %v3084
    %3648 = vmatprep.subr.bf16.mxu0 0
    %3649 = vmatpush2.bf16.msra.mxu0 %v3083
    %3650 = vmatprep.subr.bf16.mxu0 0
    %3651 = vmatpush2.bf16.msra.mxu0 %v3082
    %3652 = vmatprep.subr.bf16.mxu0 0
    %3653 = vmatpush2.bf16.msra.mxu0 %v3081
    %3654 = vmatprep.subr.bf16.mxu0 0
    %3655 = vmatpush2.bf16.msra.mxu0 %v3080
    %3656 = vmatprep.mubr.bf16.mxu0 %v1673
    %3657 = vmatmul.mubr.bf16.gmra.mxu0 %v1672
    %v3658 = vpop.f32.mrf.mxu0
    %v3659 = vadd.f32 %v3619, %v3658
    %v3660 = vpop.f32.mrf.mxu0
    %v3661 = vpop.f32.mrf.mxu0
    %v3662 = vpop.f32.mrf.mxu0
    %3663 = vdwg.mxu0
    %3664 = vmatprep.subr.bf16.mxu0 0
    %3665 = vmatpush1.bf16.msra.mxu0 %v3095
    %3666 = vmatprep.subr.bf16.mxu0 0
    %3667 = vmatpush1.bf16.msra.mxu0 %v3094
    %3668 = vmatprep.subr.bf16.mxu0 0
    %3669 = vmatpush1.bf16.msra.mxu0 %v3093
    %3670 = vmatprep.subr.bf16.mxu0 0
    %3671 = vmatpush1.bf16.msra.mxu0 %v3092
    %3672 = vmatprep.subr.bf16.mxu0 0
    %3673 = vmatpush1.bf16.msra.mxu0 %v3091
    %3674 = vmatprep.subr.bf16.mxu0 0
    %3675 = vmatpush1.bf16.msra.mxu0 %v3090
    %3676 = vmatprep.subr.bf16.mxu0 0
    %3677 = vmatpush1.bf16.msra.mxu0 %v3089
    %3678 = vmatprep.subr.bf16.mxu0 0
    %3679 = vmatpush1.bf16.msra.mxu0 %v3088
    %3680 = vmatprep.subr.bf16.mxu0 0
    %3681 = vmatpush2.bf16.msra.mxu0 %v3103
    %3682 = vmatprep.subr.bf16.mxu0 0
    %3683 = vmatpush2.bf16.msra.mxu0 %v3102
    %3684 = vmatprep.subr.bf16.mxu0 0
    %3685 = vmatpush2.bf16.msra.mxu0 %v3101
    %3686 = vmatprep.subr.bf16.mxu0 0
    %3687 = vmatpush2.bf16.msra.mxu0 %v3100
    %3688 = vmatprep.subr.bf16.mxu0 0
    %3689 = vmatpush2.bf16.msra.mxu0 %v3099
    %3690 = vmatprep.subr.bf16.mxu0 0
    %3691 = vmatpush2.bf16.msra.mxu0 %v3098
    %3692 = vmatprep.subr.bf16.mxu0 0
    %3693 = vmatpush2.bf16.msra.mxu0 %v3097
    %3694 = vmatprep.subr.bf16.mxu0 0
    %3695 = vmatpush2.bf16.msra.mxu0 %v3096
    %3696 = vmatprep.mubr.bf16.mxu0 %v1675
    %3697 = vmatmul.mubr.bf16.gmra.mxu0 %v1674
    %v3698 = vpop.f32.mrf.mxu0
    %v3699 = vadd.f32 %v3659, %v3698
    %v3700 = vpop.f32.mrf.mxu0
    %v3701 = vpop.f32.mrf.mxu0
    %v3702 = vpop.f32.mrf.mxu0
    %3703 = vdwg.mxu0
    %3704 = vmatprep.subr.bf16.mxu0 0
    %3705 = vmatpush1.bf16.msra.mxu0 %v3111
    %3706 = vmatprep.subr.bf16.mxu0 0
    %3707 = vmatpush1.bf16.msra.mxu0 %v3110
    %3708 = vmatprep.subr.bf16.mxu0 0
    %3709 = vmatpush1.bf16.msra.mxu0 %v3109
    %3710 = vmatprep.subr.bf16.mxu0 0
    %3711 = vmatpush1.bf16.msra.mxu0 %v3108
    %3712 = vmatprep.subr.bf16.mxu0 0
    %3713 = vmatpush1.bf16.msra.mxu0 %v3107
    %3714 = vmatprep.subr.bf16.mxu0 0
    %3715 = vmatpush1.bf16.msra.mxu0 %v3106
    %3716 = vmatprep.subr.bf16.mxu0 0
    %3717 = vmatpush1.bf16.msra.mxu0 %v3105
    %3718 = vmatprep.subr.bf16.mxu0 0
    %3719 = vmatpush1.bf16.msra.mxu0 %v3104
    %3720 = vmatprep.subr.bf16.mxu0 0
    %3721 = vmatpush2.bf16.msra.mxu0 %v3119
    %3722 = vmatprep.subr.bf16.mxu0 0
    %3723 = vmatpush2.bf16.msra.mxu0 %v3118
    %3724 = vmatprep.subr.bf16.mxu0 0
    %3725 = vmatpush2.bf16.msra.mxu0 %v3117
    %3726 = vmatprep.subr.bf16.mxu0 0
    %3727 = vmatpush2.bf16.msra.mxu0 %v3116
    %3728 = vmatprep.subr.bf16.mxu0 0
    %3729 = vmatpush2.bf16.msra.mxu0 %v3115
    %3730 = vmatprep.subr.bf16.mxu0 0
    %3731 = vmatpush2.bf16.msra.mxu0 %v3114
    %3732 = vmatprep.subr.bf16.mxu0 0
    %3733 = vmatpush2.bf16.msra.mxu0 %v3113
    %3734 = vmatprep.subr.bf16.mxu0 0
    %3735 = vmatpush2.bf16.msra.mxu0 %v3112
    %3736 = vmatprep.mubr.bf16.mxu0 %v1677
    %3737 = vmatmul.mubr.bf16.gmra.mxu0 %v1676
    %v3738 = vpop.f32.mrf.mxu0
    %v3739 = vadd.f32 %v3699, %v3738
    %v3740 = vpop.f32.mrf.mxu0
    %v3741 = vpop.f32.mrf.mxu0
    %v3742 = vpop.f32.mrf.mxu0
    %3743 = vdwg.mxu0
    %3744 = vmatprep.subr.bf16.mxu0 0
    %3745 = vmatpush1.bf16.msra.mxu0 %v3127
    %3746 = vmatprep.subr.bf16.mxu0 0
    %3747 = vmatpush1.bf16.msra.mxu0 %v3126
    %3748 = vmatprep.subr.bf16.mxu0 0
    %3749 = vmatpush1.bf16.msra.mxu0 %v3125
    %3750 = vmatprep.subr.bf16.mxu0 0
    %3751 = vmatpush1.bf16.msra.mxu0 %v3124
    %3752 = vmatprep.subr.bf16.mxu0 0
    %3753 = vmatpush1.bf16.msra.mxu0 %v3123
    %3754 = vmatprep.subr.bf16.mxu0 0
    %3755 = vmatpush1.bf16.msra.mxu0 %v3122
    %3756 = vmatprep.subr.bf16.mxu0 0
    %3757 = vmatpush1.bf16.msra.mxu0 %v3121
    %3758 = vmatprep.subr.bf16.mxu0 0
    %3759 = vmatpush1.bf16.msra.mxu0 %v3120
    %3760 = vmatprep.subr.bf16.mxu0 0
    %3761 = vmatpush2.bf16.msra.mxu0 %v3135
    %3762 = vmatprep.subr.bf16.mxu0 0
    %3763 = vmatpush2.bf16.msra.mxu0 %v3134
    %3764 = vmatprep.subr.bf16.mxu0 0
    %3765 = vmatpush2.bf16.msra.mxu0 %v3133
    %3766 = vmatprep.subr.bf16.mxu0 0
    %3767 = vmatpush2.bf16.msra.mxu0 %v3132
    %3768 = vmatprep.subr.bf16.mxu0 0
    %3769 = vmatpush2.bf16.msra.mxu0 %v3131
    %3770 = vmatprep.subr.bf16.mxu0 0
    %3771 = vmatpush2.bf16.msra.mxu0 %v3130
    %3772 = vmatprep.subr.bf16.mxu0 0
    %3773 = vmatpush2.bf16.msra.mxu0 %v3129
    %3774 = vmatprep.subr.bf16.mxu0 0
    %3775 = vmatpush2.bf16.msra.mxu0 %v3128
    %3776 = vmatprep.mubr.bf16.mxu0 %v1679
    %3777 = vmatmul.mubr.bf16.gmra.mxu0 %v1678
    %v3778 = vpop.f32.mrf.mxu0
    %v3779 = vadd.f32 %v3739, %v3778
    %v3780 = vpop.f32.mrf.mxu0
    %v3781 = vpop.f32.mrf.mxu0
    %v3782 = vpop.f32.mrf.mxu0
    %3783 = vdwg.mxu0
    %3784 = vmatprep.subr.bf16.mxu0 0
    %3785 = vmatpush1.bf16.msra.mxu0 %v3143
    %3786 = vmatprep.subr.bf16.mxu0 0
    %3787 = vmatpush1.bf16.msra.mxu0 %v3142
    %3788 = vmatprep.subr.bf16.mxu0 0
    %3789 = vmatpush1.bf16.msra.mxu0 %v3141
    %3790 = vmatprep.subr.bf16.mxu0 0
    %3791 = vmatpush1.bf16.msra.mxu0 %v3140
    %3792 = vmatprep.subr.bf16.mxu0 0
    %3793 = vmatpush1.bf16.msra.mxu0 %v3139
    %3794 = vmatprep.subr.bf16.mxu0 0
    %3795 = vmatpush1.bf16.msra.mxu0 %v3138
    %3796 = vmatprep.subr.bf16.mxu0 0
    %3797 = vmatpush1.bf16.msra.mxu0 %v3137
    %3798 = vmatprep.subr.bf16.mxu0 0
    %3799 = vmatpush1.bf16.msra.mxu0 %v3136
    %3800 = vmatprep.subr.bf16.mxu0 0
    %3801 = vmatpush2.bf16.msra.mxu0 %v3151
    %3802 = vmatprep.subr.bf16.mxu0 0
    %3803 = vmatpush2.bf16.msra.mxu0 %v3150
    %3804 = vmatprep.subr.bf16.mxu0 0
    %3805 = vmatpush2.bf16.msra.mxu0 %v3149
    %3806 = vmatprep.subr.bf16.mxu0 0
    %3807 = vmatpush2.bf16.msra.mxu0 %v3148
    %3808 = vmatprep.subr.bf16.mxu0 0
    %3809 = vmatpush2.bf16.msra.mxu0 %v3147
    %3810 = vmatprep.subr.bf16.mxu0 0
    %3811 = vmatpush2.bf16.msra.mxu0 %v3146
    %3812 = vmatprep.subr.bf16.mxu0 0
    %3813 = vmatpush2.bf16.msra.mxu0 %v3145
    %3814 = vmatprep.subr.bf16.mxu0 0
    %3815 = vmatpush2.bf16.msra.mxu0 %v3144
    %3816 = vmatprep.mubr.bf16.mxu0 %v1681
    %3817 = vmatmul.mubr.bf16.gmra.mxu0 %v1680
    %v3818 = vpop.f32.mrf.mxu0
    %v3819 = vadd.f32 %v3779, %v3818
    %v3820 = vpop.f32.mrf.mxu0
    %v3821 = vpop.f32.mrf.mxu0
    %v3822 = vpop.f32.mrf.mxu0
    %3823 = vdwg.mxu0
    %3824 = vmatprep.subr.bf16.mxu0 0
    %3825 = vmatpush1.bf16.msra.mxu0 %v3159
    %3826 = vmatprep.subr.bf16.mxu0 0
    %3827 = vmatpush1.bf16.msra.mxu0 %v3158
    %3828 = vmatprep.subr.bf16.mxu0 0
    %3829 = vmatpush1.bf16.msra.mxu0 %v3157
    %3830 = vmatprep.subr.bf16.mxu0 0
    %3831 = vmatpush1.bf16.msra.mxu0 %v3156
    %3832 = vmatprep.subr.bf16.mxu0 0
    %3833 = vmatpush1.bf16.msra.mxu0 %v3155
    %3834 = vmatprep.subr.bf16.mxu0 0
    %3835 = vmatpush1.bf16.msra.mxu0 %v3154
    %3836 = vmatprep.subr.bf16.mxu0 0
    %3837 = vmatpush1.bf16.msra.mxu0 %v3153
    %3838 = vmatprep.subr.bf16.mxu0 0
    %3839 = vmatpush1.bf16.msra.mxu0 %v3152
    %3840 = vmatprep.subr.bf16.mxu0 0
    %3841 = vmatpush2.bf16.msra.mxu0 %v3167
    %3842 = vmatprep.subr.bf16.mxu0 0
    %3843 = vmatpush2.bf16.msra.mxu0 %v3166
    %3844 = vmatprep.subr.bf16.mxu0 0
    %3845 = vmatpush2.bf16.msra.mxu0 %v3165
    %3846 = vmatprep.subr.bf16.mxu0 0
    %3847 = vmatpush2.bf16.msra.mxu0 %v3164
    %3848 = vmatprep.subr.bf16.mxu0 0
    %3849 = vmatpush2.bf16.msra.mxu0 %v3163
    %3850 = vmatprep.subr.bf16.mxu0 0
    %3851 = vmatpush2.bf16.msra.mxu0 %v3162
    %3852 = vmatprep.subr.bf16.mxu0 0
    %3853 = vmatpush2.bf16.msra.mxu0 %v3161
    %3854 = vmatprep.subr.bf16.mxu0 0
    %3855 = vmatpush2.bf16.msra.mxu0 %v3160
    %3856 = vmatprep.mubr.bf16.mxu0 %v1683
    %3857 = vmatmul.mubr.bf16.gmra.mxu0 %v1682
    %v3858 = vpop.f32.mrf.mxu0
    %v3859 = vadd.f32 %v3819, %v3858
    %v3860 = vpop.f32.mrf.mxu0
    %v3861 = vpop.f32.mrf.mxu0
    %v3862 = vpop.f32.mrf.mxu0
    %3863 = vdwg.mxu0
    %3864 = vmatprep.subr.bf16.mxu0 0
    %3865 = vmatpush1.bf16.msra.mxu0 %v3175
    %3866 = vmatprep.subr.bf16.mxu0 0
    %3867 = vmatpush1.bf16.msra.mxu0 %v3174
    %3868 = vmatprep.subr.bf16.mxu0 0
    %3869 = vmatpush1.bf16.msra.mxu0 %v3173
    %3870 = vmatprep.subr.bf16.mxu0 0
    %3871 = vmatpush1.bf16.msra.mxu0 %v3172
    %3872 = vmatprep.subr.bf16.mxu0 0
    %3873 = vmatpush1.bf16.msra.mxu0 %v3171
    %3874 = vmatprep.subr.bf16.mxu0 0
    %3875 = vmatpush1.bf16.msra.mxu0 %v3170
    %3876 = vmatprep.subr.bf16.mxu0 0
    %3877 = vmatpush1.bf16.msra.mxu0 %v3169
    %3878 = vmatprep.subr.bf16.mxu0 0
    %3879 = vmatpush1.bf16.msra.mxu0 %v3168
    %3880 = vmatprep.subr.bf16.mxu0 0
    %3881 = vmatpush2.bf16.msra.mxu0 %v3183
    %3882 = vmatprep.subr.bf16.mxu0 0
    %3883 = vmatpush2.bf16.msra.mxu0 %v3182
    %3884 = vmatprep.subr.bf16.mxu0 0
    %3885 = vmatpush2.bf16.msra.mxu0 %v3181
    %3886 = vmatprep.subr.bf16.mxu0 0
    %3887 = vmatpush2.bf16.msra.mxu0 %v3180
    %3888 = vmatprep.subr.bf16.mxu0 0
    %3889 = vmatpush2.bf16.msra.mxu0 %v3179
    %3890 = vmatprep.subr.bf16.mxu0 0
    %3891 = vmatpush2.bf16.msra.mxu0 %v3178
    %3892 = vmatprep.subr.bf16.mxu0 0
    %3893 = vmatpush2.bf16.msra.mxu0 %v3177
    %3894 = vmatprep.subr.bf16.mxu0 0
    %3895 = vmatpush2.bf16.msra.mxu0 %v3176
    %3896 = vmatprep.mubr.bf16.mxu0 %v1685
    %3897 = vmatmul.mubr.bf16.gmra.mxu0 %v1684
    %v3898 = vpop.f32.mrf.mxu0
    %v3899 = vadd.f32 %v3859, %v3898
    %v3900 = vpop.f32.mrf.mxu0
    %v3901 = vpop.f32.mrf.mxu0
    %v3902 = vpop.f32.mrf.mxu0
    %3903 = vdwg.mxu0
    %3904 = vmatprep.subr.bf16.mxu0 0
    %3905 = vmatpush1.bf16.msra.mxu0 %v3191
    %3906 = vmatprep.subr.bf16.mxu0 0
    %3907 = vmatpush1.bf16.msra.mxu0 %v3190
    %3908 = vmatprep.subr.bf16.mxu0 0
    %3909 = vmatpush1.bf16.msra.mxu0 %v3189
    %3910 = vmatprep.subr.bf16.mxu0 0
    %3911 = vmatpush1.bf16.msra.mxu0 %v3188
    %3912 = vmatprep.subr.bf16.mxu0 0
    %3913 = vmatpush1.bf16.msra.mxu0 %v3187
    %3914 = vmatprep.subr.bf16.mxu0 0
    %3915 = vmatpush1.bf16.msra.mxu0 %v3186
    %3916 = vmatprep.subr.bf16.mxu0 0
    %3917 = vmatpush1.bf16.msra.mxu0 %v3185
    %3918 = vmatprep.subr.bf16.mxu0 0
    %3919 = vmatpush1.bf16.msra.mxu0 %v3184
    %3920 = vmatprep.subr.bf16.mxu0 0
    %3921 = vmatpush2.bf16.msra.mxu0 %v3199
    %3922 = vmatprep.subr.bf16.mxu0 0
    %3923 = vmatpush2.bf16.msra.mxu0 %v3198
    %3924 = vmatprep.subr.bf16.mxu0 0
    %3925 = vmatpush2.bf16.msra.mxu0 %v3197
    %3926 = vmatprep.subr.bf16.mxu0 0
    %3927 = vmatpush2.bf16.msra.mxu0 %v3196
    %3928 = vmatprep.subr.bf16.mxu0 0
    %3929 = vmatpush2.bf16.msra.mxu0 %v3195
    %3930 = vmatprep.subr.bf16.mxu0 0
    %3931 = vmatpush2.bf16.msra.mxu0 %v3194
    %3932 = vmatprep.subr.bf16.mxu0 0
    %3933 = vmatpush2.bf16.msra.mxu0 %v3193
    %3934 = vmatprep.subr.bf16.mxu0 0
    %3935 = vmatpush2.bf16.msra.mxu0 %v3192
    %3936 = vmatprep.mubr.bf16.mxu0 %v1687
    %3937 = vmatmul.mubr.bf16.gmra.mxu0 %v1686
    %v3938 = vpop.f32.mrf.mxu0
    %v3939 = vadd.f32 %v3899, %v3938
    %v3940 = vpop.f32.mrf.mxu0
    %v3941 = vpop.f32.mrf.mxu0
    %v3942 = vpop.f32.mrf.mxu0
    %3943 = vdwg.mxu0
    %3944 = vmatprep.subr.bf16.mxu0 0
    %3945 = vmatpush1.bf16.msra.mxu0 %v3207
    %3946 = vmatprep.subr.bf16.mxu0 0
    %3947 = vmatpush1.bf16.msra.mxu0 %v3206
    %3948 = vmatprep.subr.bf16.mxu0 0
    %3949 = vmatpush1.bf16.msra.mxu0 %v3205
    %3950 = vmatprep.subr.bf16.mxu0 0
    %3951 = vmatpush1.bf16.msra.mxu0 %v3204
    %3952 = vmatprep.subr.bf16.mxu0 0
    %3953 = vmatpush1.bf16.msra.mxu0 %v3203
    %3954 = vmatprep.subr.bf16.mxu0 0
    %3955 = vmatpush1.bf16.msra.mxu0 %v3202
    %3956 = vmatprep.subr.bf16.mxu0 0
    %3957 = vmatpush1.bf16.msra.mxu0 %v3201
    %3958 = vmatprep.subr.bf16.mxu0 0
    %3959 = vmatpush1.bf16.msra.mxu0 %v3200
    %3960 = vmatprep.subr.bf16.mxu0 0
    %3961 = vmatpush2.bf16.msra.mxu0 0
    %3962 = vmatprep.subr.bf16.mxu0 0
    %3963 = vmatpush2.bf16.msra.mxu0 0
    %3964 = vmatprep.subr.bf16.mxu0 0
    %3965 = vmatpush2.bf16.msra.mxu0 0
    %3966 = vmatprep.subr.bf16.mxu0 0
    %3967 = vmatpush2.bf16.msra.mxu0 0
    %3968 = vmatprep.subr.bf16.mxu0 0
    %3969 = vmatpush2.bf16.msra.mxu0 0
    %3970 = vmatprep.subr.bf16.mxu0 0
    %3971 = vmatpush2.bf16.msra.mxu0 0
    %3972 = vmatprep.subr.bf16.mxu0 0
    %3973 = vmatpush2.bf16.msra.mxu0 0
    %3974 = vmatprep.subr.bf16.mxu0 0
    %3975 = vmatpush2.bf16.msra.mxu0 0
    %3976 = vmatprep.mubr.bf16.mxu0 0
    %3977 = vmatmul.mubr.bf16.gmra.mxu0 %v1688
    %v3978 = vpop.f32.mrf.mxu0
    %v3979 = vadd.f32 %v3939, %v3978
    %v3980 = vpop.f32.mrf.mxu0
    %v3981 = vpop.f32.mrf.mxu0
    %v3982 = vpop.f32.mrf.mxu0
    %3983 = vdwg.mxu0
    %v3984 = vmax.f32 %v3979, 0.0
    %v3985 = vld [vmem:[%s5] sm:$0xff]
    %v3986 = vld [vmem:[%s5 + $0x8] sm:$0xff]
    %v3987 = vld [vmem:[%s5 + $0x10] sm:$0xff]
    %v3988 = vld [vmem:[%s5 + $0x18] sm:$0xff]
    %v3989 = vld [vmem:[%s5 + $0x20] sm:$0xff]
    %v3990 = vld [vmem:[%s5 + $0x28] sm:$0xff]
    %v3991 = vld [vmem:[%s5 + $0x30] sm:$0xff]
    %v3992 = vld [vmem:[%s5 + $0x38] sm:$0xff]
    %v3993 = vld [vmem:[%s5 + $0x40] sm:$0xff]
    %v3994 = vld [vmem:[%s5 + $0x48] sm:$0xff]
    %v3995 = vld [vmem:[%s5 + $0x50] sm:$0xff]
    %v3996 = vld [vmem:[%s5 + $0x58] sm:$0xff]
    %v3997 = vld [vmem:[%s5 + $0x60] sm:$0xff]
    %v3998 = vld [vmem:[%s5 + $0x68] sm:$0xff]
    %v3999 = vld [vmem:[%s5 + $0x70] sm:$0xff]
    %v4000 = vld [vmem:[%s5 + $0x78] sm:$0xff]
    %v4001 = vld [vmem:[%s6] sm:$0x1]
    %v4003 = vlaneseq
    %v4004 = vshrl.u32 %v4003, 7
    %v4005 = vsub.s32 0, %v4004
    %v4006 = vrot.slane %v4001, %v4005
    %4008 = vmatprep.subr.mxu0 0.0
    %4009 = vmatpush1.msra.mxu0 %v4000
    %4010 = vmatprep.subr.mxu0 0.0
    %4011 = vmatpush1.msra.mxu0 %v3999
    %4012 = vmatprep.subr.mxu0 0.0
    %4013 = vmatpush1.msra.mxu0 %v3998
    %4014 = vmatprep.subr.mxu0 0.0
    %4015 = vmatpush1.msra.mxu0 %v3997
    %4016 = vmatprep.subr.mxu0 0.0
    %4017 = vmatpush1.msra.mxu0 %v3996
    %4018 = vmatprep.subr.mxu0 0.0
    %4019 = vmatpush1.msra.mxu0 %v3995
    %4020 = vmatprep.subr.mxu0 0.0
    %4021 = vmatpush1.msra.mxu0 %v3994
    %4022 = vmatprep.subr.mxu0 0.0
    %4023 = vmatpush1.msra.mxu0 %v3993
    %4024 = vmatprep.subr.mxu0 0.0
    %4025 = vmatpush1.msra.mxu0 %v3992
    %4026 = vmatprep.subr.mxu0 0.0
    %4027 = vmatpush1.msra.mxu0 %v3991
    %4028 = vmatprep.subr.mxu0 0.0
    %4029 = vmatpush1.msra.mxu0 %v3990
    %4030 = vmatprep.subr.mxu0 0.0
    %4031 = vmatpush1.msra.mxu0 %v3989
    %4032 = vmatprep.subr.mxu0 0.0
    %4033 = vmatpush1.msra.mxu0 %v3988
    %4034 = vmatprep.subr.mxu0 0.0
    %4035 = vmatpush1.msra.mxu0 %v3987
    %4036 = vmatprep.subr.mxu0 0.0
    %4037 = vmatpush1.msra.mxu0 %v3986
    %4038 = vmatprep.subr.mxu0 0.0
    %4039 = vmatpush1.msra.mxu0 %v3985
    %4040 = vmatprep.subr.mxu0 0.0
    %4041 = vmatpush2.msra.mxu0 0.0
    %4042 = vmatprep.subr.mxu0 0.0
    %4043 = vmatpush2.msra.mxu0 0.0
    %4044 = vmatprep.subr.mxu0 0.0
    %4045 = vmatpush2.msra.mxu0 0.0
    %4046 = vmatprep.subr.mxu0 0.0
    %4047 = vmatpush2.msra.mxu0 0.0
    %4048 = vmatprep.subr.mxu0 0.0
    %4049 = vmatpush2.msra.mxu0 0.0
    %4050 = vmatprep.subr.mxu0 0.0
    %4051 = vmatpush2.msra.mxu0 0.0
    %4052 = vmatprep.subr.mxu0 0.0
    %4053 = vmatpush2.msra.mxu0 0.0
    %4054 = vmatprep.subr.mxu0 0.0
    %4055 = vmatpush2.msra.mxu0 0.0
    %4056 = vmatprep.subr.mxu0 0.0
    %4057 = vmatpush2.msra.mxu0 0.0
    %4058 = vmatprep.subr.mxu0 0.0
    %4059 = vmatpush2.msra.mxu0 0.0
    %4060 = vmatprep.subr.mxu0 0.0
    %4061 = vmatpush2.msra.mxu0 0.0
    %4062 = vmatprep.subr.mxu0 0.0
    %4063 = vmatpush2.msra.mxu0 0.0
    %4064 = vmatprep.subr.mxu0 0.0
    %4065 = vmatpush2.msra.mxu0 0.0
    %4066 = vmatprep.subr.mxu0 0.0
    %4067 = vmatpush2.msra.mxu0 0.0
    %4068 = vmatprep.subr.mxu0 0.0
    %4069 = vmatpush2.msra.mxu0 0.0
    %4070 = vmatprep.subr.mxu0 0.0
    %4071 = vmatpush2.msra.mxu0 0.0
    %4072 = vmatprep.mubr.f32.mxu0 0.0
    %4073 = vmatmul.mubr.f32.gmra.mxu0 %v3984
    %v4074 = vpop.f32.mrf.mxu0
    %v4075 = vadd.f32 %v4006, %v4074
    %v4076 = vpop.f32.mrf.mxu0
    %4077 = vdwg.mxu0
    %4078 = vst [vmem:[#allocation3] sm:$0x3] %v4075
    // Predicated region
    $region30: #{mycnn_forward.1} parent=1 // pred_check
      _
    $region31: #{mycnn_forward.1} parent=1 // pred_check_branch
      %4080 = sbr.rel (0) target = $region33
    $region32: #{mycnn_forward.1} parent=1 // pred_region
      %s4082 = ssub.s32 32, 32
      %4083 = vsyncadd [#allocation4], %s4082
      %s4085 = sshll.u32 [#allocation3], 4
      %s4086 = int_to_ptr.vmem [resolvable:$true] %s4085
      %4088 = dma.vmem_to_hbm [thread:$0]  %s4086, 32, %s7, [#allocation4]
    $region33: #{mycnn_forward.1} parent=1 // pred_fallthru
      _
    // Predicated region
    $region34: #{mycnn_forward.1} parent=1 // pred_check
      _
    $region35: #{mycnn_forward.1} parent=1 // pred_check_branch
      %4090 = sbr.rel (0) target = $region37
    $region36: #{mycnn_forward.1} parent=1 // pred_region
      %4091 = dma.done [#allocation4], 32
    $region37: #{mycnn_forward.1} parent=1 // pred_fallthru
      _
    %4092 = vsyncpa [#allocation4], 1

</llo_original>
